<compile_context>
chip_gen: v7x
topology: tpu7x:2x2x1
jax: 0.10.0
libtpu: 0.0.40
codegen_flags: <defaults>
</compile_context>

<pallas_src>
import math

import jax
import jax.numpy as jnp
from jax import lax
from jax.experimental import pallas as pl
from jax.experimental.pallas import tpu as pltpu

# ----------------------------- config -------------------------------------
VOCAB = 64
HIDDEN = 32
NUM_HEADS = 4
HEAD_DIM = HIDDEN // NUM_HEADS
NUM_LAYERS = 2
SEQ = 8
BATCH = 2
EPS = 1e-5
MLP_HIDDEN = 4 * HIDDEN


# --------------------------- fused Pallas kernel ---------------------------
def llama_fwd_kernel(ids_ref, emb_ref, cos_ref, sin_ref, rotm_ref,
                     wqkv_ref, bqkv_ref, wo_ref, bo_ref,
                     an_ref, mn_ref, wgu_ref, wd_ref,
                     fn_ref, lw_ref, lb_ref, out_ref):
    """One grid step = the full forward pass for one batch element."""
    f32 = jnp.float32
    S = ids_ref.shape[0]                       # sequence length
    V, H = emb_ref.shape                       # vocab, hidden
    L, NH, _, three_hd = wqkv_ref.shape        # layers, heads, H, 3*head_dim
    HD = three_hd // 3
    MLPH = wd_ref.shape[1]
    scale = 1.0 / math.sqrt(HD)

    # ---- token embedding as a one-hot matmul (keeps activations on-chip) ----
    ids = ids_ref[...]                                              # [S, 1] i32
    vocab_iota = lax.broadcasted_iota(jnp.int32, (S, V), 1)
    onehot = (vocab_iota == jnp.broadcast_to(ids, (S, V))).astype(f32)
    x = jnp.dot(onehot, emb_ref[...], preferred_element_type=f32)   # [S, H]

    # ---- constants hoisted out of the layer loop ----
    cos = cos_ref[...]                                              # [1, S, HD]
    sin = sin_ref[...]
    rotm = rotm_ref[...]                                            # [NH, HD, HD]
    row = lax.broadcasted_iota(jnp.int32, (1, S, S), 1)
    col = lax.broadcasted_iota(jnp.int32, (1, S, S), 2)
    attn_bias = jnp.where(row >= col, f32(0.0), f32(-1e30))         # causal

    def rms(v, w):
        ms = jnp.mean(v * v, axis=-1, keepdims=True)
        return v * lax.rsqrt(ms + EPS) * w

    for l in range(L):                          # static unroll over layers
        # ------------------------- attention -------------------------
        h = rms(x, an_ref[l])                                        # [S, H]
        hb = jnp.broadcast_to(h[None], (NH, S, H))
        # fused head-major QKV projection: one batched contraction
        qkv = jnp.einsum("nsc,ncd->nsd", hb, wqkv_ref[l],
                         preferred_element_type=f32) + bqkv_ref[l]   # [NH,S,3HD]
        q = qkv[:, :, 0:HD]
        k = qkv[:, :, HD:2 * HD]
        v = qkv[:, :, 2 * HD:3 * HD]
        # RoPE: rotate_half expressed as a constant per-head rotation matrix
        q = q * cos + jnp.einsum("nsd,nde->nse", q, rotm,
                                 preferred_element_type=f32) * sin
        k = k * cos + jnp.einsum("nsd,nde->nse", k, rotm,
                                 preferred_element_type=f32) * sin
        # all heads in one batched contraction; contract last dims (no K.T)
        s = jnp.einsum("nqd,nkd->nqk", q, k,
                       preferred_element_type=f32) * scale + attn_bias
        m = jnp.max(s, axis=-1, keepdims=True)
        p = jnp.exp(s - m)
        denom = jnp.sum(p, axis=-1, keepdims=True)
        p = p * pl.reciprocal(denom, approx=True)
        o = jnp.einsum("nqk,nkd->nqd", p, v,
                       preferred_element_type=f32)                   # [NH,S,HD]
        # output projection: per-head [HD,H] matmul then sum over heads
        ov = jnp.einsum("nsd,ndc->nsc", o, wo_ref[l],
                        preferred_element_type=f32)                  # [NH,S,H]
        attn_out = ov[0]
        for hh in range(1, NH):
            attn_out = attn_out + ov[hh]
        x = x + attn_out + bo_ref[l]

        # ------------------------- SwiGLU MLP -------------------------
        hm = rms(x, mn_ref[l])
        gu = jnp.dot(hm, wgu_ref[l], preferred_element_type=f32)     # [S, 2*MLPH]
        g = gu[:, :MLPH]                       # vreg-aligned split at lane 128
        u = gu[:, MLPH:]
        x = x + jnp.dot(g * jax.nn.sigmoid(g) * u, wd_ref[l],
                        preferred_element_type=f32)

    # ------------------- final norm + LM head -------------------
    x = rms(x, fn_ref[...])
    out_ref[0] = jnp.dot(x, lw_ref[...], preferred_element_type=f32) + lb_ref[...]


# ------------------------------ host-side glue ------------------------------
def rope_tables(seq, head_dim):
    pos = jnp.arange(seq, dtype=jnp.float32)
    inv_freq = 1.0 / (
        10000.0 ** (jnp.arange(0, head_dim, 2, dtype=jnp.float32) / head_dim)
    )
    ang = pos[:, None] * inv_freq[None, :]                       # [S, HD/2]
    cos = jnp.concatenate([jnp.cos(ang), jnp.cos(ang)], axis=-1)  # [S, HD]
    sin = jnp.concatenate([jnp.sin(ang), jnp.sin(ang)], axis=-1)
    return cos[None], sin[None]                                   # [1, S, HD]


def rotate_half_matrix(head_dim):
    """R such that (row_vec @ R) == rotate_half(row_vec) for one head."""
    half = head_dim // 2
    idx = jnp.arange(half)
    r = jnp.zeros((head_dim, head_dim), jnp.float32)
    r = r.at[idx, idx + half].set(1.0)
    r = r.at[idx + half, idx].set(-1.0)
    return jnp.broadcast_to(r[None], (NUM_HEADS, head_dim, head_dim))


def _whole_spec(arr):
    """Whole-array BlockSpec (same block for every grid step)."""
    n = arr.ndim
    return pl.BlockSpec(arr.shape, lambda b: (0,) * n)


def llama_forward(packed, input_ids):
    B, S = input_ids.shape
    ids2 = input_ids.reshape(B * S, 1).astype(jnp.int32)
    cos, sin = rope_tables(S, HEAD_DIM)           # position_ids = arange(S)
    rotm = rotate_half_matrix(HEAD_DIM)

    weight_arrays = [
        packed["embedding"], cos, sin, rotm,
        packed["wqkv"], packed["bqkv"], packed["wo"], packed["bo"],
        packed["attn_norm"], packed["mlp_norm"],
        packed["wgu"], packed["wd"],
        packed["final_norm"], packed["lm_w"], packed["lm_b"],
    ]
    in_specs = ([pl.BlockSpec((S, 1), lambda b: (b, 0))]
                + [_whole_spec(a) for a in weight_arrays])

    return pl.pallas_call(
        llama_fwd_kernel,
        grid=(B,),
        in_specs=in_specs,
        out_specs=pl.BlockSpec((1, S, VOCAB), lambda b: (b, 0, 0)),
        out_shape=jax.ShapeDtypeStruct((B, S, VOCAB), jnp.float32),
        compiler_params=pltpu.CompilerParams(
            dimension_semantics=("parallel",)),   # v7x: 2 TCs share the batch
    )(ids2, *weight_arrays)


# ---------------------------- parameter init --------------------------------
def init_params(key):
    def normal(k, shape):
        return 0.02 * jax.random.normal(k, shape, dtype=jnp.float32)

    keys = jax.random.split(key, 2 + 7 * NUM_LAYERS)
    ki = iter(keys)
    params = {
        "embedding": normal(next(ki), (VOCAB, HIDDEN)),
        "final_norm_w": jnp.ones((HIDDEN,), jnp.float32),
        "lm_head_w": normal(next(ki), (HIDDEN, VOCAB)),
        "lm_head_b": jnp.zeros((VOCAB,), jnp.float32),
        "blocks": [],
    }
    for _ in range(NUM_LAYERS):
        blk = {
            "attn_norm_w": jnp.ones((HIDDEN,), jnp.float32),
            "wq": normal(next(ki), (HIDDEN, HIDDEN)),
            "wk": normal(next(ki), (HIDDEN, HIDDEN)),
            "wv": normal(next(ki), (HIDDEN, HIDDEN)),
            "wo": normal(next(ki), (HIDDEN, HIDDEN)),
            "mlp_norm_w": jnp.ones((HIDDEN,), jnp.float32),
            "wg": normal(next(ki), (HIDDEN, MLP_HIDDEN)),
            "wu": normal(next(ki), (HIDDEN, MLP_HIDDEN)),
            "wd": normal(next(ki), (MLP_HIDDEN, HIDDEN)),
            # biases zero-initialized (matches _init_weights zeroing Linear bias)
            "bq": jnp.zeros((HIDDEN,), jnp.float32),
            "bk": jnp.zeros((HIDDEN,), jnp.float32),
            "bv": jnp.zeros((HIDDEN,), jnp.float32),
            "bo": jnp.zeros((HIDDEN,), jnp.float32),
        }
        params["blocks"].append(blk)
    return params


def pack_params(params):
    """Stack per-layer weights and pre-reshape them head-major for the kernel."""
    L = NUM_LAYERS
    blocks = params["blocks"]

    def stack(name):
        return jnp.stack([blk[name] for blk in blocks], axis=0)

    def w_heads(w):   # [L, H, H] -> [L, NH, H, HD]   (columns grouped by head)
        return w.reshape(L, HIDDEN, NUM_HEADS, HEAD_DIM).transpose(0, 2, 1, 3)

    def b_heads(b):   # [L, H] -> [L, NH, 1, HD]
        return b.reshape(L, NUM_HEADS, 1, HEAD_DIM)

    wqkv = jnp.concatenate(
        [w_heads(stack("wq")), w_heads(stack("wk")), w_heads(stack("wv"))],
        axis=-1)                                                    # [L,NH,H,3HD]
    bqkv = jnp.concatenate(
        [b_heads(stack("bq")), b_heads(stack("bk")), b_heads(stack("bv"))],
        axis=-1)                                                    # [L,NH,1,3HD]
    return {
        "embedding": params["embedding"],                           # [V, H]
        "wqkv": wqkv,
        "bqkv": bqkv,
        "wo": stack("wo").reshape(L, NUM_HEADS, HEAD_DIM, HIDDEN),  # [L,NH,HD,H]
        "bo": stack("bo").reshape(L, 1, HIDDEN),
        "attn_norm": stack("attn_norm_w").reshape(L, 1, HIDDEN),
        "mlp_norm": stack("mlp_norm_w").reshape(L, 1, HIDDEN),
        "wgu": jnp.concatenate([stack("wg"), stack("wu")], axis=-1),  # [L,H,2*MLP]
        "wd": stack("wd"),                                            # [L,MLP,H]
        "final_norm": params["final_norm_w"].reshape(1, HIDDEN),
        "lm_w": params["lm_head_w"],                                  # [H, V]
        "lm_b": params["lm_head_b"].reshape(1, VOCAB),
    }


# --------------------------------- main --------------------------------------
if __name__ == "__main__":
    key = jax.random.PRNGKey(0)
    pkey, dkey = jax.random.split(key)
    params = init_params(pkey)
    packed = pack_params(params)
    input_ids = jax.random.randint(dkey, (BATCH, SEQ), 0, VOCAB, dtype=jnp.int32)

    logits = jax.jit(llama_forward)(packed, input_ids)
    jax.block_until_ready(logits)
    assert logits.shape == (BATCH, SEQ, VOCAB)
    assert bool(jnp.all(jnp.isfinite(logits)))
    print("KERNEL_OK")
</pallas_src>

<mosaic_0001>
module attributes {stable_mosaic.version = 11 : i64} {
  func.func @llama_fwd_kernel(%arg0: i32, %arg1: memref<8x1xi32, #tpu.memory_space<vmem>>, %arg2: memref<64x32xf32, #tpu.memory_space<vmem>>, %arg3: memref<1x8x8xf32, #tpu.memory_space<vmem>>, %arg4: memref<1x8x8xf32, #tpu.memory_space<vmem>>, %arg5: memref<4x8x8xf32, #tpu.memory_space<vmem>>, %arg6: memref<2x4x32x24xf32, #tpu.memory_space<vmem>>, %arg7: memref<2x4x1x24xf32, #tpu.memory_space<vmem>>, %arg8: memref<2x4x8x32xf32, #tpu.memory_space<vmem>>, %arg9: memref<2x1x32xf32, #tpu.memory_space<vmem>>, %arg10: memref<2x1x32xf32, #tpu.memory_space<vmem>>, %arg11: memref<2x1x32xf32, #tpu.memory_space<vmem>>, %arg12: memref<2x32x256xf32, #tpu.memory_space<vmem>>, %arg13: memref<2x128x32xf32, #tpu.memory_space<vmem>>, %arg14: memref<1x32xf32, #tpu.memory_space<vmem>>, %arg15: memref<32x64xf32, #tpu.memory_space<vmem>>, %arg16: memref<1x64xf32, #tpu.memory_space<vmem>>, %arg17: memref<1x8x64xf32, #tpu.memory_space<vmem>>) attributes {dimension_semantics = [#tpu.dimension_semantics<parallel>], iteration_bounds = array<i64: 2>, scalar_prefetch = 0 : i64, scratch_operands = 0 : i64, tpu.core_type = #tpu.core_type<tc>, window_params = [{transform_indices = @transform_0, window_bounds = array<i64: 8, 1>}, {pipeline_mode = #tpu.pipeline_mode<synchronous>, transform_indices = @transform_1, window_bounds = array<i64: 64, 32>}, {pipeline_mode = #tpu.pipeline_mode<synchronous>, transform_indices = @transform_2, window_bounds = array<i64: 1, 8, 8>}, {pipeline_mode = #tpu.pipeline_mode<synchronous>, transform_indices = @transform_3, window_bounds = array<i64: 1, 8, 8>}, {pipeline_mode = #tpu.pipeline_mode<synchronous>, transform_indices = @transform_4, window_bounds = array<i64: 4, 8, 8>}, {pipeline_mode = #tpu.pipeline_mode<synchronous>, transform_indices = @transform_5, window_bounds = array<i64: 2, 4, 32, 24>}, {pipeline_mode = #tpu.pipeline_mode<synchronous>, transform_indices = @transform_6, window_bounds = array<i64: 2, 4, 1, 24>}, {pipeline_mode = #tpu.pipeline_mode<synchronous>, transform_indices = @transform_7, window_bounds = array<i64: 2, 4, 8, 32>}, {pipeline_mode = #tpu.pipeline_mode<synchronous>, transform_indices = @transform_8, window_bounds = array<i64: 2, 1, 32>}, {pipeline_mode = #tpu.pipeline_mode<synchronous>, transform_indices = @transform_9, window_bounds = array<i64: 2, 1, 32>}, {pipeline_mode = #tpu.pipeline_mode<synchronous>, transform_indices = @transform_10, window_bounds = array<i64: 2, 1, 32>}, {pipeline_mode = #tpu.pipeline_mode<synchronous>, transform_indices = @transform_11, window_bounds = array<i64: 2, 32, 256>}, {pipeline_mode = #tpu.pipeline_mode<synchronous>, transform_indices = @transform_12, window_bounds = array<i64: 2, 128, 32>}, {pipeline_mode = #tpu.pipeline_mode<synchronous>, transform_indices = @transform_13, window_bounds = array<i64: 1, 32>}, {pipeline_mode = #tpu.pipeline_mode<synchronous>, transform_indices = @transform_14, window_bounds = array<i64: 32, 64>}, {pipeline_mode = #tpu.pipeline_mode<synchronous>, transform_indices = @transform_15, window_bounds = array<i64: 1, 64>}, {transform_indices = @transform_16, window_bounds = array<i64: 1, 8, 64>}]} {
    %c0 = arith.constant 0 : index
    %c0_0 = arith.constant 0 : index
    %0 = vector.load %arg1[%c0, %c0_0] : memref<8x1xi32, #tpu.memory_space<vmem>>, vector<8x1xi32>
    %1 = tpu.iota {dimensions = array<i32: 1>} : vector<8x64xi32>
    %2 = vector.shape_cast %0 : vector<8x1xi32> to vector<8x1xi32>
    %3 = vector.broadcast %2 : vector<8x1xi32> to vector<8x64xi32>
    %4 = arith.cmpi eq, %1, %3 : vector<8x64xi32>
    %5 = arith.extui %4 : vector<8x64xi1> to vector<8x64xi32>
    %6 = arith.sitofp %5 : vector<8x64xi32> to vector<8x64xf32>
    %c0_1 = arith.constant 0 : index
    %c0_2 = arith.constant 0 : index
    %7 = vector.load %arg2[%c0_1, %c0_2] : memref<64x32xf32, #tpu.memory_space<vmem>>, vector<64x32xf32>
    %cst = arith.constant dense<0.000000e+00> : vector<8x32xf32>
    %8 = tpu.matmul %6, %7, %cst {dimension_numbers = #tpu.dot_dimension_numbers<[1], [0], [0], [1], [0, 0, 1, 1], [], []>} : vector<8x64xf32>, vector<64x32xf32>, vector<8x32xf32> -> vector<8x32xf32>
    %c0_3 = arith.constant 0 : index
    %c0_4 = arith.constant 0 : index
    %c0_5 = arith.constant 0 : index
    %9 = vector.load %arg3[%c0_3, %c0_4, %c0_5] : memref<1x8x8xf32, #tpu.memory_space<vmem>>, vector<1x8x8xf32>
    %c0_6 = arith.constant 0 : index
    %c0_7 = arith.constant 0 : index
    %c0_8 = arith.constant 0 : index
    %10 = vector.load %arg4[%c0_6, %c0_7, %c0_8] : memref<1x8x8xf32, #tpu.memory_space<vmem>>, vector<1x8x8xf32>
    %c0_9 = arith.constant 0 : index
    %c0_10 = arith.constant 0 : index
    %c0_11 = arith.constant 0 : index
    %11 = vector.load %arg5[%c0_9, %c0_10, %c0_11] : memref<4x8x8xf32, #tpu.memory_space<vmem>>, vector<4x8x8xf32>
    %12 = tpu.iota {dimensions = array<i32: 1>} : vector<1x8x8xi32>
    %13 = tpu.iota {dimensions = array<i32: 2>} : vector<1x8x8xi32>
    %14 = arith.cmpi sge, %12, %13 : vector<1x8x8xi32>
    %cst_12 = arith.constant 0.000000e+00 : f32
    %cst_13 = arith.constant -1.000000e+30 : f32
    %15 = vector.broadcast %cst_12 : f32 to vector<1x8x8xf32>
    %16 = vector.broadcast %cst_13 : f32 to vector<1x8x8xf32>
    %17 = arith.select %14, %15, %16 : vector<1x8x8xi1>, vector<1x8x8xf32>
    %c0_14 = arith.constant 0 : index
    %c0_15 = arith.constant 0 : index
    %c0_16 = arith.constant 0 : index
    %18 = vector.load %arg10[%c0_14, %c0_15, %c0_16] : memref<2x1x32xf32, #tpu.memory_space<vmem>>, vector<1x1x32xf32>
    %19 = vector.shape_cast %18 : vector<1x1x32xf32> to vector<1x32xf32>
    %20 = arith.mulf %8, %8 : vector<8x32xf32>
    %cst_17 = arith.constant dense<0.000000e+00> : vector<8xf32>
    %21 = vector.multi_reduction <add>, %20, %cst_17 [1] : vector<8x32xf32> to vector<8xf32>
    %22 = vector.shape_cast %21 : vector<8xf32> to vector<8x1xf32>
    %cst_18 = arith.constant 3.200000e+01 : f32
    %23 = vector.broadcast %cst_18 : f32 to vector<8x1xf32>
    %24 = arith.divf %22, %23 : vector<8x1xf32>
    %cst_19 = arith.constant 9.99999974E-6 : f32
    %25 = vector.broadcast %cst_19 : f32 to vector<8x1xf32>
    %26 = arith.addf %24, %25 : vector<8x1xf32>
    %27 = math.rsqrt %26 : vector<8x1xf32>
    %28 = vector.broadcast %27 : vector<8x1xf32> to vector<8x32xf32>
    %29 = arith.mulf %8, %28 : vector<8x32xf32>
    %30 = vector.broadcast %19 : vector<1x32xf32> to vector<8x32xf32>
    %31 = arith.mulf %29, %30 : vector<8x32xf32>
    %32 = vector.shape_cast %31 : vector<8x32xf32> to vector<1x8x32xf32>
    %33 = vector.shape_cast %32 : vector<1x8x32xf32> to vector<1x8x32xf32>
    %34 = vector.broadcast %33 : vector<1x8x32xf32> to vector<4x8x32xf32>
    %c0_20 = arith.constant 0 : index
    %c0_21 = arith.constant 0 : index
    %c0_22 = arith.constant 0 : index
    %c0_23 = arith.constant 0 : index
    %35 = vector.load %arg6[%c0_20, %c0_21, %c0_22, %c0_23] : memref<2x4x32x24xf32, #tpu.memory_space<vmem>>, vector<1x4x32x24xf32>
    %36 = vector.shape_cast %35 : vector<1x4x32x24xf32> to vector<4x32x24xf32>
    "tpu.trace_start"() <{level = 10 : i32, message = "nsc,ncd->nsd"}> : () -> ()
    %cst_24 = arith.constant dense<0.000000e+00> : vector<4x8x24xf32>
    %37 = tpu.matmul %34, %36, %cst_24 {dimension_numbers = #tpu.dot_dimension_numbers<[2], [1], [1], [2], [0, 0, 0, 1, 1, 2], [0], [0]>} : vector<4x8x32xf32>, vector<4x32x24xf32>, vector<4x8x24xf32> -> vector<4x8x24xf32>
    "tpu.trace_stop"() : () -> ()
    %c0_25 = arith.constant 0 : index
    %c0_26 = arith.constant 0 : index
    %c0_27 = arith.constant 0 : index
    %c0_28 = arith.constant 0 : index
    %38 = vector.load %arg7[%c0_25, %c0_26, %c0_27, %c0_28] : memref<2x4x1x24xf32, #tpu.memory_space<vmem>>, vector<1x4x1x24xf32>
    %39 = vector.shape_cast %38 : vector<1x4x1x24xf32> to vector<4x1x24xf32>
    %40 = vector.broadcast %39 : vector<4x1x24xf32> to vector<4x8x24xf32>
    %41 = arith.addf %37, %40 : vector<4x8x24xf32>
    %42 = vector.extract_strided_slice %41 {offsets = [0, 0, 0], sizes = [4, 8, 8], strides = [1, 1, 1]} : vector<4x8x24xf32> to vector<4x8x8xf32>
    %43 = vector.extract_strided_slice %41 {offsets = [0, 0, 8], sizes = [4, 8, 8], strides = [1, 1, 1]} : vector<4x8x24xf32> to vector<4x8x8xf32>
    %44 = vector.extract_strided_slice %41 {offsets = [0, 0, 16], sizes = [4, 8, 8], strides = [1, 1, 1]} : vector<4x8x24xf32> to vector<4x8x8xf32>
    %45 = vector.broadcast %9 : vector<1x8x8xf32> to vector<4x8x8xf32>
    %46 = arith.mulf %42, %45 : vector<4x8x8xf32>
    "tpu.trace_start"() <{level = 10 : i32, message = "nsd,nde->nse"}> : () -> ()
    %cst_29 = arith.constant dense<0.000000e+00> : vector<4x8x8xf32>
    %47 = tpu.matmul %42, %11, %cst_29 {dimension_numbers = #tpu.dot_dimension_numbers<[2], [1], [1], [2], [0, 0, 0, 1, 1, 2], [0], [0]>} : vector<4x8x8xf32>, vector<4x8x8xf32>, vector<4x8x8xf32> -> vector<4x8x8xf32>
    "tpu.trace_stop"() : () -> ()
    %48 = vector.broadcast %10 : vector<1x8x8xf32> to vector<4x8x8xf32>
    %49 = arith.mulf %47, %48 : vector<4x8x8xf32>
    %50 = arith.addf %46, %49 : vector<4x8x8xf32>
    %51 = vector.broadcast %9 : vector<1x8x8xf32> to vector<4x8x8xf32>
    %52 = arith.mulf %43, %51 : vector<4x8x8xf32>
    "tpu.trace_start"() <{level = 10 : i32, message = "nsd,nde->nse"}> : () -> ()
    %cst_30 = arith.constant dense<0.000000e+00> : vector<4x8x8xf32>
    %53 = tpu.matmul %43, %11, %cst_30 {dimension_numbers = #tpu.dot_dimension_numbers<[2], [1], [1], [2], [0, 0, 0, 1, 1, 2], [0], [0]>} : vector<4x8x8xf32>, vector<4x8x8xf32>, vector<4x8x8xf32> -> vector<4x8x8xf32>
    "tpu.trace_stop"() : () -> ()
    %54 = vector.broadcast %10 : vector<1x8x8xf32> to vector<4x8x8xf32>
    %55 = arith.mulf %53, %54 : vector<4x8x8xf32>
    %56 = arith.addf %52, %55 : vector<4x8x8xf32>
    "tpu.trace_start"() <{level = 10 : i32, message = "nqd,nkd->nqk"}> : () -> ()
    %cst_31 = arith.constant dense<0.000000e+00> : vector<4x8x8xf32>
    %57 = tpu.matmul %50, %56, %cst_31 {dimension_numbers = #tpu.dot_dimension_numbers<[2], [2], [1], [1], [0, 0, 0, 1, 1, 1], [0], [0]>} : vector<4x8x8xf32>, vector<4x8x8xf32>, vector<4x8x8xf32> -> vector<4x8x8xf32>
    "tpu.trace_stop"() : () -> ()
    %cst_32 = arith.constant 0.353553385 : f32
    %58 = vector.broadcast %cst_32 : f32 to vector<4x8x8xf32>
    %59 = arith.mulf %57, %58 : vector<4x8x8xf32>
    %60 = vector.broadcast %17 : vector<1x8x8xf32> to vector<4x8x8xf32>
    %61 = arith.addf %59, %60 : vector<4x8x8xf32>
    %cst_33 = arith.constant dense<0xFF800000> : vector<4x8xf32>
    %62 = vector.multi_reduction <maximumf>, %61, %cst_33 [2] : vector<4x8x8xf32> to vector<4x8xf32>
    %63 = vector.shape_cast %62 : vector<4x8xf32> to vector<4x8x1xf32>
    %64 = vector.broadcast %63 : vector<4x8x1xf32> to vector<4x8x8xf32>
    %65 = arith.subf %61, %64 : vector<4x8x8xf32>
    %66 = math.exp %65 : vector<4x8x8xf32>
    %cst_34 = arith.constant dense<0.000000e+00> : vector<4x8xf32>
    %67 = vector.multi_reduction <add>, %66, %cst_34 [2] : vector<4x8x8xf32> to vector<4x8xf32>
    %68 = vector.shape_cast %67 : vector<4x8xf32> to vector<4x8x1xf32>
    %69 = tpu.reciprocal %68 {approx = true} : vector<4x8x1xf32> -> vector<4x8x1xf32>
    %70 = vector.broadcast %69 : vector<4x8x1xf32> to vector<4x8x8xf32>
    %71 = arith.mulf %66, %70 : vector<4x8x8xf32>
    "tpu.trace_start"() <{level = 10 : i32, message = "nqk,nkd->nqd"}> : () -> ()
    %cst_35 = arith.constant dense<0.000000e+00> : vector<4x8x8xf32>
    %72 = tpu.matmul %71, %44, %cst_35 {dimension_numbers = #tpu.dot_dimension_numbers<[2], [1], [1], [2], [0, 0, 0, 1, 1, 2], [0], [0]>} : vector<4x8x8xf32>, vector<4x8x8xf32>, vector<4x8x8xf32> -> vector<4x8x8xf32>
    "tpu.trace_stop"() : () -> ()
    %c0_36 = arith.constant 0 : index
    %c0_37 = arith.constant 0 : index
    %c0_38 = arith.constant 0 : index
    %c0_39 = arith.constant 0 : index
    %73 = vector.load %arg8[%c0_36, %c0_37, %c0_38, %c0_39] : memref<2x4x8x32xf32, #tpu.memory_space<vmem>>, vector<1x4x8x32xf32>
    %74 = vector.shape_cast %73 : vector<1x4x8x32xf32> to vector<4x8x32xf32>
    "tpu.trace_start"() <{level = 10 : i32, message = "nsd,ndc->nsc"}> : () -> ()
    %cst_40 = arith.constant dense<0.000000e+00> : vector<4x8x32xf32>
    %75 = tpu.matmul %72, %74, %cst_40 {dimension_numbers = #tpu.dot_dimension_numbers<[2], [1], [1], [2], [0, 0, 0, 1, 1, 2], [0], [0]>} : vector<4x8x8xf32>, vector<4x8x32xf32>, vector<4x8x32xf32> -> vector<4x8x32xf32>
    "tpu.trace_stop"() : () -> ()
    %76 = vector.extract_strided_slice %75 {offsets = [0, 0, 0], sizes = [1, 8, 32], strides = [1, 1, 1]} : vector<4x8x32xf32> to vector<1x8x32xf32>
    %77 = vector.shape_cast %76 : vector<1x8x32xf32> to vector<8x32xf32>
    %78 = vector.extract_strided_slice %75 {offsets = [1, 0, 0], sizes = [1, 8, 32], strides = [1, 1, 1]} : vector<4x8x32xf32> to vector<1x8x32xf32>
    %79 = vector.shape_cast %78 : vector<1x8x32xf32> to vector<8x32xf32>
    %80 = arith.addf %77, %79 : vector<8x32xf32>
    %81 = vector.extract_strided_slice %75 {offsets = [2, 0, 0], sizes = [1, 8, 32], strides = [1, 1, 1]} : vector<4x8x32xf32> to vector<1x8x32xf32>
    %82 = vector.shape_cast %81 : vector<1x8x32xf32> to vector<8x32xf32>
    %83 = arith.addf %80, %82 : vector<8x32xf32>
    %84 = vector.extract_strided_slice %75 {offsets = [3, 0, 0], sizes = [1, 8, 32], strides = [1, 1, 1]} : vector<4x8x32xf32> to vector<1x8x32xf32>
    %85 = vector.shape_cast %84 : vector<1x8x32xf32> to vector<8x32xf32>
    %86 = arith.addf %83, %85 : vector<8x32xf32>
    %87 = arith.addf %8, %86 : vector<8x32xf32>
    %c0_41 = arith.constant 0 : index
    %c0_42 = arith.constant 0 : index
    %c0_43 = arith.constant 0 : index
    %88 = vector.load %arg9[%c0_41, %c0_42, %c0_43] : memref<2x1x32xf32, #tpu.memory_space<vmem>>, vector<1x1x32xf32>
    %89 = vector.shape_cast %88 : vector<1x1x32xf32> to vector<1x32xf32>
    %90 = vector.broadcast %89 : vector<1x32xf32> to vector<8x32xf32>
    %91 = arith.addf %87, %90 : vector<8x32xf32>
    %c0_44 = arith.constant 0 : index
    %c0_45 = arith.constant 0 : index
    %c0_46 = arith.constant 0 : index
    %92 = vector.load %arg11[%c0_44, %c0_45, %c0_46] : memref<2x1x32xf32, #tpu.memory_space<vmem>>, vector<1x1x32xf32>
    %93 = vector.shape_cast %92 : vector<1x1x32xf32> to vector<1x32xf32>
    %94 = arith.mulf %91, %91 : vector<8x32xf32>
    %cst_47 = arith.constant dense<0.000000e+00> : vector<8xf32>
    %95 = vector.multi_reduction <add>, %94, %cst_47 [1] : vector<8x32xf32> to vector<8xf32>
    %96 = vector.shape_cast %95 : vector<8xf32> to vector<8x1xf32>
    %cst_48 = arith.constant 3.200000e+01 : f32
    %97 = vector.broadcast %cst_48 : f32 to vector<8x1xf32>
    %98 = arith.divf %96, %97 : vector<8x1xf32>
    %cst_49 = arith.constant 9.99999974E-6 : f32
    %99 = vector.broadcast %cst_49 : f32 to vector<8x1xf32>
    %100 = arith.addf %98, %99 : vector<8x1xf32>
    %101 = math.rsqrt %100 : vector<8x1xf32>
    %102 = vector.broadcast %101 : vector<8x1xf32> to vector<8x32xf32>
    %103 = arith.mulf %91, %102 : vector<8x32xf32>
    %104 = vector.broadcast %93 : vector<1x32xf32> to vector<8x32xf32>
    %105 = arith.mulf %103, %104 : vector<8x32xf32>
    %c0_50 = arith.constant 0 : index
    %c0_51 = arith.constant 0 : index
    %c0_52 = arith.constant 0 : index
    %106 = vector.load %arg12[%c0_50, %c0_51, %c0_52] : memref<2x32x256xf32, #tpu.memory_space<vmem>>, vector<1x32x256xf32>
    %107 = vector.shape_cast %106 : vector<1x32x256xf32> to vector<32x256xf32>
    %cst_53 = arith.constant dense<0.000000e+00> : vector<8x256xf32>
    %108 = tpu.matmul %105, %107, %cst_53 {dimension_numbers = #tpu.dot_dimension_numbers<[1], [0], [0], [1], [0, 0, 1, 1], [], []>} : vector<8x32xf32>, vector<32x256xf32>, vector<8x256xf32> -> vector<8x256xf32>
    %109 = vector.extract_strided_slice %108 {offsets = [0, 0], sizes = [8, 128], strides = [1, 1]} : vector<8x256xf32> to vector<8x128xf32>
    %110 = vector.extract_strided_slice %108 {offsets = [0, 128], sizes = [8, 128], strides = [1, 1]} : vector<8x256xf32> to vector<8x128xf32>
    %111 = arith.negf %109 : vector<8x128xf32>
    %112 = math.exp %111 : vector<8x128xf32>
    %cst_54 = arith.constant 1.000000e+00 : f32
    %113 = vector.broadcast %cst_54 : f32 to vector<8x128xf32>
    %114 = arith.addf %113, %112 : vector<8x128xf32>
    %115 = arith.divf %113, %114 : vector<8x128xf32>
    %116 = arith.mulf %109, %115 : vector<8x128xf32>
    %117 = arith.mulf %116, %110 : vector<8x128xf32>
    %c0_55 = arith.constant 0 : index
    %c0_56 = arith.constant 0 : index
    %c0_57 = arith.constant 0 : index
    %118 = vector.load %arg13[%c0_55, %c0_56, %c0_57] : memref<2x128x32xf32, #tpu.memory_space<vmem>>, vector<1x128x32xf32>
    %119 = vector.shape_cast %118 : vector<1x128x32xf32> to vector<128x32xf32>
    %cst_58 = arith.constant dense<0.000000e+00> : vector<8x32xf32>
    %120 = tpu.matmul %117, %119, %cst_58 {dimension_numbers = #tpu.dot_dimension_numbers<[1], [0], [0], [1], [0, 0, 1, 1], [], []>} : vector<8x128xf32>, vector<128x32xf32>, vector<8x32xf32> -> vector<8x32xf32>
    %121 = arith.addf %91, %120 : vector<8x32xf32>
    %c1 = arith.constant 1 : index
    %c0_59 = arith.constant 0 : index
    %c0_60 = arith.constant 0 : index
    %122 = vector.load %arg10[%c1, %c0_59, %c0_60] : memref<2x1x32xf32, #tpu.memory_space<vmem>>, vector<1x1x32xf32>
    %123 = vector.shape_cast %122 : vector<1x1x32xf32> to vector<1x32xf32>
    %124 = arith.mulf %121, %121 : vector<8x32xf32>
    %cst_61 = arith.constant dense<0.000000e+00> : vector<8xf32>
    %125 = vector.multi_reduction <add>, %124, %cst_61 [1] : vector<8x32xf32> to vector<8xf32>
    %126 = vector.shape_cast %125 : vector<8xf32> to vector<8x1xf32>
    %cst_62 = arith.constant 3.200000e+01 : f32
    %127 = vector.broadcast %cst_62 : f32 to vector<8x1xf32>
    %128 = arith.divf %126, %127 : vector<8x1xf32>
    %cst_63 = arith.constant 9.99999974E-6 : f32
    %129 = vector.broadcast %cst_63 : f32 to vector<8x1xf32>
    %130 = arith.addf %128, %129 : vector<8x1xf32>
    %131 = math.rsqrt %130 : vector<8x1xf32>
    %132 = vector.broadcast %131 : vector<8x1xf32> to vector<8x32xf32>
    %133 = arith.mulf %121, %132 : vector<8x32xf32>
    %134 = vector.broadcast %123 : vector<1x32xf32> to vector<8x32xf32>
    %135 = arith.mulf %133, %134 : vector<8x32xf32>
    %136 = vector.shape_cast %135 : vector<8x32xf32> to vector<1x8x32xf32>
    %137 = vector.shape_cast %136 : vector<1x8x32xf32> to vector<1x8x32xf32>
    %138 = vector.broadcast %137 : vector<1x8x32xf32> to vector<4x8x32xf32>
    %c1_64 = arith.constant 1 : index
    %c0_65 = arith.constant 0 : index
    %c0_66 = arith.constant 0 : index
    %c0_67 = arith.constant 0 : index
    %139 = vector.load %arg6[%c1_64, %c0_65, %c0_66, %c0_67] : memref<2x4x32x24xf32, #tpu.memory_space<vmem>>, vector<1x4x32x24xf32>
    %140 = vector.shape_cast %139 : vector<1x4x32x24xf32> to vector<4x32x24xf32>
    "tpu.trace_start"() <{level = 10 : i32, message = "nsc,ncd->nsd"}> : () -> ()
    %cst_68 = arith.constant dense<0.000000e+00> : vector<4x8x24xf32>
    %141 = tpu.matmul %138, %140, %cst_68 {dimension_numbers = #tpu.dot_dimension_numbers<[2], [1], [1], [2], [0, 0, 0, 1, 1, 2], [0], [0]>} : vector<4x8x32xf32>, vector<4x32x24xf32>, vector<4x8x24xf32> -> vector<4x8x24xf32>
    "tpu.trace_stop"() : () -> ()
    %c1_69 = arith.constant 1 : index
    %c0_70 = arith.constant 0 : index
    %c0_71 = arith.constant 0 : index
    %c0_72 = arith.constant 0 : index
    %142 = vector.load %arg7[%c1_69, %c0_70, %c0_71, %c0_72] : memref<2x4x1x24xf32, #tpu.memory_space<vmem>>, vector<1x4x1x24xf32>
    %143 = vector.shape_cast %142 : vector<1x4x1x24xf32> to vector<4x1x24xf32>
    %144 = vector.broadcast %143 : vector<4x1x24xf32> to vector<4x8x24xf32>
    %145 = arith.addf %141, %144 : vector<4x8x24xf32>
    %146 = vector.extract_strided_slice %145 {offsets = [0, 0, 0], sizes = [4, 8, 8], strides = [1, 1, 1]} : vector<4x8x24xf32> to vector<4x8x8xf32>
    %147 = vector.extract_strided_slice %145 {offsets = [0, 0, 8], sizes = [4, 8, 8], strides = [1, 1, 1]} : vector<4x8x24xf32> to vector<4x8x8xf32>
    %148 = vector.extract_strided_slice %145 {offsets = [0, 0, 16], sizes = [4, 8, 8], strides = [1, 1, 1]} : vector<4x8x24xf32> to vector<4x8x8xf32>
    %149 = vector.broadcast %9 : vector<1x8x8xf32> to vector<4x8x8xf32>
    %150 = arith.mulf %146, %149 : vector<4x8x8xf32>
    "tpu.trace_start"() <{level = 10 : i32, message = "nsd,nde->nse"}> : () -> ()
    %cst_73 = arith.constant dense<0.000000e+00> : vector<4x8x8xf32>
    %151 = tpu.matmul %146, %11, %cst_73 {dimension_numbers = #tpu.dot_dimension_numbers<[2], [1], [1], [2], [0, 0, 0, 1, 1, 2], [0], [0]>} : vector<4x8x8xf32>, vector<4x8x8xf32>, vector<4x8x8xf32> -> vector<4x8x8xf32>
    "tpu.trace_stop"() : () -> ()
    %152 = vector.broadcast %10 : vector<1x8x8xf32> to vector<4x8x8xf32>
    %153 = arith.mulf %151, %152 : vector<4x8x8xf32>
    %154 = arith.addf %150, %153 : vector<4x8x8xf32>
    %155 = vector.broadcast %9 : vector<1x8x8xf32> to vector<4x8x8xf32>
    %156 = arith.mulf %147, %155 : vector<4x8x8xf32>
    "tpu.trace_start"() <{level = 10 : i32, message = "nsd,nde->nse"}> : () -> ()
    %cst_74 = arith.constant dense<0.000000e+00> : vector<4x8x8xf32>
    %157 = tpu.matmul %147, %11, %cst_74 {dimension_numbers = #tpu.dot_dimension_numbers<[2], [1], [1], [2], [0, 0, 0, 1, 1, 2], [0], [0]>} : vector<4x8x8xf32>, vector<4x8x8xf32>, vector<4x8x8xf32> -> vector<4x8x8xf32>
    "tpu.trace_stop"() : () -> ()
    %158 = vector.broadcast %10 : vector<1x8x8xf32> to vector<4x8x8xf32>
    %159 = arith.mulf %157, %158 : vector<4x8x8xf32>
    %160 = arith.addf %156, %159 : vector<4x8x8xf32>
    "tpu.trace_start"() <{level = 10 : i32, message = "nqd,nkd->nqk"}> : () -> ()
    %cst_75 = arith.constant dense<0.000000e+00> : vector<4x8x8xf32>
    %161 = tpu.matmul %154, %160, %cst_75 {dimension_numbers = #tpu.dot_dimension_numbers<[2], [2], [1], [1], [0, 0, 0, 1, 1, 1], [0], [0]>} : vector<4x8x8xf32>, vector<4x8x8xf32>, vector<4x8x8xf32> -> vector<4x8x8xf32>
    "tpu.trace_stop"() : () -> ()
    %cst_76 = arith.constant 0.353553385 : f32
    %162 = vector.broadcast %cst_76 : f32 to vector<4x8x8xf32>
    %163 = arith.mulf %161, %162 : vector<4x8x8xf32>
    %164 = vector.broadcast %17 : vector<1x8x8xf32> to vector<4x8x8xf32>
    %165 = arith.addf %163, %164 : vector<4x8x8xf32>
    %cst_77 = arith.constant dense<0xFF800000> : vector<4x8xf32>
    %166 = vector.multi_reduction <maximumf>, %165, %cst_77 [2] : vector<4x8x8xf32> to vector<4x8xf32>
    %167 = vector.shape_cast %166 : vector<4x8xf32> to vector<4x8x1xf32>
    %168 = vector.broadcast %167 : vector<4x8x1xf32> to vector<4x8x8xf32>
    %169 = arith.subf %165, %168 : vector<4x8x8xf32>
    %170 = math.exp %169 : vector<4x8x8xf32>
    %cst_78 = arith.constant dense<0.000000e+00> : vector<4x8xf32>
    %171 = vector.multi_reduction <add>, %170, %cst_78 [2] : vector<4x8x8xf32> to vector<4x8xf32>
    %172 = vector.shape_cast %171 : vector<4x8xf32> to vector<4x8x1xf32>
    %173 = tpu.reciprocal %172 {approx = true} : vector<4x8x1xf32> -> vector<4x8x1xf32>
    %174 = vector.broadcast %173 : vector<4x8x1xf32> to vector<4x8x8xf32>
    %175 = arith.mulf %170, %174 : vector<4x8x8xf32>
    "tpu.trace_start"() <{level = 10 : i32, message = "nqk,nkd->nqd"}> : () -> ()
    %cst_79 = arith.constant dense<0.000000e+00> : vector<4x8x8xf32>
    %176 = tpu.matmul %175, %148, %cst_79 {dimension_numbers = #tpu.dot_dimension_numbers<[2], [1], [1], [2], [0, 0, 0, 1, 1, 2], [0], [0]>} : vector<4x8x8xf32>, vector<4x8x8xf32>, vector<4x8x8xf32> -> vector<4x8x8xf32>
    "tpu.trace_stop"() : () -> ()
    %c1_80 = arith.constant 1 : index
    %c0_81 = arith.constant 0 : index
    %c0_82 = arith.constant 0 : index
    %c0_83 = arith.constant 0 : index
    %177 = vector.load %arg8[%c1_80, %c0_81, %c0_82, %c0_83] : memref<2x4x8x32xf32, #tpu.memory_space<vmem>>, vector<1x4x8x32xf32>
    %178 = vector.shape_cast %177 : vector<1x4x8x32xf32> to vector<4x8x32xf32>
    "tpu.trace_start"() <{level = 10 : i32, message = "nsd,ndc->nsc"}> : () -> ()
    %cst_84 = arith.constant dense<0.000000e+00> : vector<4x8x32xf32>
    %179 = tpu.matmul %176, %178, %cst_84 {dimension_numbers = #tpu.dot_dimension_numbers<[2], [1], [1], [2], [0, 0, 0, 1, 1, 2], [0], [0]>} : vector<4x8x8xf32>, vector<4x8x32xf32>, vector<4x8x32xf32> -> vector<4x8x32xf32>
    "tpu.trace_stop"() : () -> ()
    %180 = vector.extract_strided_slice %179 {offsets = [0, 0, 0], sizes = [1, 8, 32], strides = [1, 1, 1]} : vector<4x8x32xf32> to vector<1x8x32xf32>
    %181 = vector.shape_cast %180 : vector<1x8x32xf32> to vector<8x32xf32>
    %182 = vector.extract_strided_slice %179 {offsets = [1, 0, 0], sizes = [1, 8, 32], strides = [1, 1, 1]} : vector<4x8x32xf32> to vector<1x8x32xf32>
    %183 = vector.shape_cast %182 : vector<1x8x32xf32> to vector<8x32xf32>
    %184 = arith.addf %181, %183 : vector<8x32xf32>
    %185 = vector.extract_strided_slice %179 {offsets = [2, 0, 0], sizes = [1, 8, 32], strides = [1, 1, 1]} : vector<4x8x32xf32> to vector<1x8x32xf32>
    %186 = vector.shape_cast %185 : vector<1x8x32xf32> to vector<8x32xf32>
    %187 = arith.addf %184, %186 : vector<8x32xf32>
    %188 = vector.extract_strided_slice %179 {offsets = [3, 0, 0], sizes = [1, 8, 32], strides = [1, 1, 1]} : vector<4x8x32xf32> to vector<1x8x32xf32>
    %189 = vector.shape_cast %188 : vector<1x8x32xf32> to vector<8x32xf32>
    %190 = arith.addf %187, %189 : vector<8x32xf32>
    %191 = arith.addf %121, %190 : vector<8x32xf32>
    %c1_85 = arith.constant 1 : index
    %c0_86 = arith.constant 0 : index
    %c0_87 = arith.constant 0 : index
    %192 = vector.load %arg9[%c1_85, %c0_86, %c0_87] : memref<2x1x32xf32, #tpu.memory_space<vmem>>, vector<1x1x32xf32>
    %193 = vector.shape_cast %192 : vector<1x1x32xf32> to vector<1x32xf32>
    %194 = vector.broadcast %193 : vector<1x32xf32> to vector<8x32xf32>
    %195 = arith.addf %191, %194 : vector<8x32xf32>
    %c1_88 = arith.constant 1 : index
    %c0_89 = arith.constant 0 : index
    %c0_90 = arith.constant 0 : index
    %196 = vector.load %arg11[%c1_88, %c0_89, %c0_90] : memref<2x1x32xf32, #tpu.memory_space<vmem>>, vector<1x1x32xf32>
    %197 = vector.shape_cast %196 : vector<1x1x32xf32> to vector<1x32xf32>
    %198 = arith.mulf %195, %195 : vector<8x32xf32>
    %cst_91 = arith.constant dense<0.000000e+00> : vector<8xf32>
    %199 = vector.multi_reduction <add>, %198, %cst_91 [1] : vector<8x32xf32> to vector<8xf32>
    %200 = vector.shape_cast %199 : vector<8xf32> to vector<8x1xf32>
    %cst_92 = arith.constant 3.200000e+01 : f32
    %201 = vector.broadcast %cst_92 : f32 to vector<8x1xf32>
    %202 = arith.divf %200, %201 : vector<8x1xf32>
    %cst_93 = arith.constant 9.99999974E-6 : f32
    %203 = vector.broadcast %cst_93 : f32 to vector<8x1xf32>
    %204 = arith.addf %202, %203 : vector<8x1xf32>
    %205 = math.rsqrt %204 : vector<8x1xf32>
    %206 = vector.broadcast %205 : vector<8x1xf32> to vector<8x32xf32>
    %207 = arith.mulf %195, %206 : vector<8x32xf32>
    %208 = vector.broadcast %197 : vector<1x32xf32> to vector<8x32xf32>
    %209 = arith.mulf %207, %208 : vector<8x32xf32>
    %c1_94 = arith.constant 1 : index
    %c0_95 = arith.constant 0 : index
    %c0_96 = arith.constant 0 : index
    %210 = vector.load %arg12[%c1_94, %c0_95, %c0_96] : memref<2x32x256xf32, #tpu.memory_space<vmem>>, vector<1x32x256xf32>
    %211 = vector.shape_cast %210 : vector<1x32x256xf32> to vector<32x256xf32>
    %cst_97 = arith.constant dense<0.000000e+00> : vector<8x256xf32>
    %212 = tpu.matmul %209, %211, %cst_97 {dimension_numbers = #tpu.dot_dimension_numbers<[1], [0], [0], [1], [0, 0, 1, 1], [], []>} : vector<8x32xf32>, vector<32x256xf32>, vector<8x256xf32> -> vector<8x256xf32>
    %213 = vector.extract_strided_slice %212 {offsets = [0, 0], sizes = [8, 128], strides = [1, 1]} : vector<8x256xf32> to vector<8x128xf32>
    %214 = vector.extract_strided_slice %212 {offsets = [0, 128], sizes = [8, 128], strides = [1, 1]} : vector<8x256xf32> to vector<8x128xf32>
    %215 = arith.negf %213 : vector<8x128xf32>
    %216 = math.exp %215 : vector<8x128xf32>
    %cst_98 = arith.constant 1.000000e+00 : f32
    %217 = vector.broadcast %cst_98 : f32 to vector<8x128xf32>
    %218 = arith.addf %217, %216 : vector<8x128xf32>
    %219 = arith.divf %217, %218 : vector<8x128xf32>
    %220 = arith.mulf %213, %219 : vector<8x128xf32>
    %221 = arith.mulf %220, %214 : vector<8x128xf32>
    %c1_99 = arith.constant 1 : index
    %c0_100 = arith.constant 0 : index
    %c0_101 = arith.constant 0 : index
    %222 = vector.load %arg13[%c1_99, %c0_100, %c0_101] : memref<2x128x32xf32, #tpu.memory_space<vmem>>, vector<1x128x32xf32>
    %223 = vector.shape_cast %222 : vector<1x128x32xf32> to vector<128x32xf32>
    %cst_102 = arith.constant dense<0.000000e+00> : vector<8x32xf32>
    %224 = tpu.matmul %221, %223, %cst_102 {dimension_numbers = #tpu.dot_dimension_numbers<[1], [0], [0], [1], [0, 0, 1, 1], [], []>} : vector<8x128xf32>, vector<128x32xf32>, vector<8x32xf32> -> vector<8x32xf32>
    %225 = arith.addf %195, %224 : vector<8x32xf32>
    %c0_103 = arith.constant 0 : index
    %c0_104 = arith.constant 0 : index
    %226 = vector.load %arg14[%c0_103, %c0_104] : memref<1x32xf32, #tpu.memory_space<vmem>>, vector<1x32xf32>
    %227 = arith.mulf %225, %225 : vector<8x32xf32>
    %cst_105 = arith.constant dense<0.000000e+00> : vector<8xf32>
    %228 = vector.multi_reduction <add>, %227, %cst_105 [1] : vector<8x32xf32> to vector<8xf32>
    %229 = vector.shape_cast %228 : vector<8xf32> to vector<8x1xf32>
    %cst_106 = arith.constant 3.200000e+01 : f32
    %230 = vector.broadcast %cst_106 : f32 to vector<8x1xf32>
    %231 = arith.divf %229, %230 : vector<8x1xf32>
    %cst_107 = arith.constant 9.99999974E-6 : f32
    %232 = vector.broadcast %cst_107 : f32 to vector<8x1xf32>
    %233 = arith.addf %231, %232 : vector<8x1xf32>
    %234 = math.rsqrt %233 : vector<8x1xf32>
    %235 = vector.broadcast %234 : vector<8x1xf32> to vector<8x32xf32>
    %236 = arith.mulf %225, %235 : vector<8x32xf32>
    %237 = vector.broadcast %226 : vector<1x32xf32> to vector<8x32xf32>
    %238 = arith.mulf %236, %237 : vector<8x32xf32>
    %c0_108 = arith.constant 0 : index
    %c0_109 = arith.constant 0 : index
    %239 = vector.load %arg15[%c0_108, %c0_109] : memref<32x64xf32, #tpu.memory_space<vmem>>, vector<32x64xf32>
    %cst_110 = arith.constant dense<0.000000e+00> : vector<8x64xf32>
    %240 = tpu.matmul %238, %239, %cst_110 {dimension_numbers = #tpu.dot_dimension_numbers<[1], [0], [0], [1], [0, 0, 1, 1], [], []>} : vector<8x32xf32>, vector<32x64xf32>, vector<8x64xf32> -> vector<8x64xf32>
    %c0_111 = arith.constant 0 : index
    %c0_112 = arith.constant 0 : index
    %241 = vector.load %arg16[%c0_111, %c0_112] : memref<1x64xf32, #tpu.memory_space<vmem>>, vector<1x64xf32>
    %242 = vector.broadcast %241 : vector<1x64xf32> to vector<8x64xf32>
    %243 = arith.addf %240, %242 : vector<8x64xf32>
    %c0_113 = arith.constant 0 : index
    %c0_114 = arith.constant 0 : index
    %c0_115 = arith.constant 0 : index
    %244 = vector.load %arg17[%c0_113, %c0_114, %c0_115] : memref<1x8x64xf32, #tpu.memory_space<vmem>>, vector<1x8x64xf32>
    %245 = vector.shape_cast %244 : vector<1x8x64xf32> to vector<8x64xf32>
    %246 = vector.shape_cast %243 : vector<8x64xf32> to vector<1x8x64xf32>
    tpu.vector_store %arg17[%c0_113, %c0_114, %c0_115], %246 {strides = array<i32>} : memref<1x8x64xf32, #tpu.memory_space<vmem>>, vector<1x8x64xf32>,
    return
  }
  func.func @transform_0(%arg0: i32) -> (i32, i32) {
    %c0_i32 = arith.constant 0 : i32
    %c0_i32_0 = arith.constant 0 : i32
    return %arg0, %c0_i32 : i32, i32
  }
  func.func @transform_1(%arg0: i32) -> (i32, i32) {
    %c0_i32 = arith.constant 0 : i32
    %c0_i32_0 = arith.constant 0 : i32
    %c0_i32_1 = arith.constant 0 : i32
    return %c0_i32, %c0_i32_0 : i32, i32
  }
  func.func @transform_2(%arg0: i32) -> (i32, i32, i32) {
    %c0_i32 = arith.constant 0 : i32
    %c0_i32_0 = arith.constant 0 : i32
    %c0_i32_1 = arith.constant 0 : i32
    %c0_i32_2 = arith.constant 0 : i32
    return %c0_i32, %c0_i32_0, %c0_i32_1 : i32, i32, i32
  }
  func.func @transform_3(%arg0: i32) -> (i32, i32, i32) {
    %c0_i32 = arith.constant 0 : i32
    %c0_i32_0 = arith.constant 0 : i32
    %c0_i32_1 = arith.constant 0 : i32
    %c0_i32_2 = arith.constant 0 : i32
    return %c0_i32, %c0_i32_0, %c0_i32_1 : i32, i32, i32
  }
  func.func @transform_4(%arg0: i32) -> (i32, i32, i32) {
    %c0_i32 = arith.constant 0 : i32
    %c0_i32_0 = arith.constant 0 : i32
    %c0_i32_1 = arith.constant 0 : i32
    %c0_i32_2 = arith.constant 0 : i32
    return %c0_i32, %c0_i32_0, %c0_i32_1 : i32, i32, i32
  }
  func.func @transform_5(%arg0: i32) -> (i32, i32, i32, i32) {
    %c0_i32 = arith.constant 0 : i32
    %c0_i32_0 = arith.constant 0 : i32
    %c0_i32_1 = arith.constant 0 : i32
    %c0_i32_2 = arith.constant 0 : i32
    %c0_i32_3 = arith.constant 0 : i32
    return %c0_i32, %c0_i32_0, %c0_i32_1, %c0_i32_2 : i32, i32, i32, i32
  }
  func.func @transform_6(%arg0: i32) -> (i32, i32, i32, i32) {
    %c0_i32 = arith.constant 0 : i32
    %c0_i32_0 = arith.constant 0 : i32
    %c0_i32_1 = arith.constant 0 : i32
    %c0_i32_2 = arith.constant 0 : i32
    %c0_i32_3 = arith.constant 0 : i32
    return %c0_i32, %c0_i32_0, %c0_i32_1, %c0_i32_2 : i32, i32, i32, i32
  }
  func.func @transform_7(%arg0: i32) -> (i32, i32, i32, i32) {
    %c0_i32 = arith.constant 0 : i32
    %c0_i32_0 = arith.constant 0 : i32
    %c0_i32_1 = arith.constant 0 : i32
    %c0_i32_2 = arith.constant 0 : i32
    %c0_i32_3 = arith.constant 0 : i32
    return %c0_i32, %c0_i32_0, %c0_i32_1, %c0_i32_2 : i32, i32, i32, i32
  }
  func.func @transform_8(%arg0: i32) -> (i32, i32, i32) {
    %c0_i32 = arith.constant 0 : i32
    %c0_i32_0 = arith.constant 0 : i32
    %c0_i32_1 = arith.constant 0 : i32
    %c0_i32_2 = arith.constant 0 : i32
    return %c0_i32, %c0_i32_0, %c0_i32_1 : i32, i32, i32
  }
  func.func @transform_9(%arg0: i32) -> (i32, i32, i32) {
    %c0_i32 = arith.constant 0 : i32
    %c0_i32_0 = arith.constant 0 : i32
    %c0_i32_1 = arith.constant 0 : i32
    %c0_i32_2 = arith.constant 0 : i32
    return %c0_i32, %c0_i32_0, %c0_i32_1 : i32, i32, i32
  }
  func.func @transform_10(%arg0: i32) -> (i32, i32, i32) {
    %c0_i32 = arith.constant 0 : i32
    %c0_i32_0 = arith.constant 0 : i32
    %c0_i32_1 = arith.constant 0 : i32
    %c0_i32_2 = arith.constant 0 : i32
    return %c0_i32, %c0_i32_0, %c0_i32_1 : i32, i32, i32
  }
  func.func @transform_11(%arg0: i32) -> (i32, i32, i32) {
    %c0_i32 = arith.constant 0 : i32
    %c0_i32_0 = arith.constant 0 : i32
    %c0_i32_1 = arith.constant 0 : i32
    %c0_i32_2 = arith.constant 0 : i32
    return %c0_i32, %c0_i32_0, %c0_i32_1 : i32, i32, i32
  }
  func.func @transform_12(%arg0: i32) -> (i32, i32, i32) {
    %c0_i32 = arith.constant 0 : i32
    %c0_i32_0 = arith.constant 0 : i32
    %c0_i32_1 = arith.constant 0 : i32
    %c0_i32_2 = arith.constant 0 : i32
    return %c0_i32, %c0_i32_0, %c0_i32_1 : i32, i32, i32
  }
  func.func @transform_13(%arg0: i32) -> (i32, i32) {
    %c0_i32 = arith.constant 0 : i32
    %c0_i32_0 = arith.constant 0 : i32
    %c0_i32_1 = arith.constant 0 : i32
    return %c0_i32, %c0_i32_0 : i32, i32
  }
  func.func @transform_14(%arg0: i32) -> (i32, i32) {
    %c0_i32 = arith.constant 0 : i32
    %c0_i32_0 = arith.constant 0 : i32
    %c0_i32_1 = arith.constant 0 : i32
    return %c0_i32, %c0_i32_0 : i32, i32
  }
  func.func @transform_15(%arg0: i32) -> (i32, i32) {
    %c0_i32 = arith.constant 0 : i32
    %c0_i32_0 = arith.constant 0 : i32
    %c0_i32_1 = arith.constant 0 : i32
    return %c0_i32, %c0_i32_0 : i32, i32
  }
  func.func @transform_16(%arg0: i32) -> (i32, i32, i32) {
    %c0_i32 = arith.constant 0 : i32
    %c0_i32_0 = arith.constant 0 : i32
    %c0_i32_1 = arith.constant 0 : i32
    return %arg0, %c0_i32, %c0_i32_0 : i32, i32, i32
  }
}

</mosaic_0001>

<llo_original>
// kernel: llama_forward.1
$region0: #{llama_forward.1}
  #allocation0 [shape = 'u32[]', space=smem, size = 0x4, offset = 0x4, fixed_abs, tag = 'smem constant byte address 0x4 - core index']
  #allocation1 [shape = 'u32[144,128]{1,0:T(1,128)}', space=vmem, size = 0x12000, scoped, tag = 'internal scratch']
  %s0 = inlined_call_operand.vmem [shape: s32[16,1], index: 0, kind: input, shape index: {}]
  %s1 = inlined_call_operand.vmem [shape: f32[64,32], index: 1, kind: input, shape index: {}]
  %s2 = inlined_call_operand.vmem [shape: f32[1,8,8], index: 2, kind: input, shape index: {}]
  %s3 = inlined_call_operand.vmem [shape: f32[1,8,8], index: 3, kind: input, shape index: {}]
  %s4 = inlined_call_operand.vmem [shape: f32[4,8,8], index: 4, kind: input, shape index: {}]
  %s5 = inlined_call_operand.vmem [shape: f32[2,4,32,24], index: 5, kind: input, shape index: {}]
  %s6 = inlined_call_operand.vmem [shape: f32[2,4,1,24], index: 6, kind: input, shape index: {}]
  %s7 = inlined_call_operand.vmem [shape: f32[2,4,8,32], index: 7, kind: input, shape index: {}]
  %s8 = inlined_call_operand.vmem [shape: f32[2,1,32], index: 8, kind: input, shape index: {}]
  %s9 = inlined_call_operand.vmem [shape: f32[2,1,32], index: 9, kind: input, shape index: {}]
  %s10 = inlined_call_operand.vmem [shape: f32[2,1,32], index: 10, kind: input, shape index: {}]
  %s11 = inlined_call_operand.vmem [shape: f32[2,32,256], index: 11, kind: input, shape index: {}]
  %s12 = inlined_call_operand.vmem [shape: f32[2,128,32], index: 12, kind: input, shape index: {}]
  %s13 = inlined_call_operand.vmem [shape: f32[1,32], index: 13, kind: input, shape index: {}]
  %s14 = inlined_call_operand.vmem [shape: f32[32,64], index: 14, kind: input, shape index: {}]
  %s15 = inlined_call_operand.vmem [shape: f32[1,64], index: 15, kind: input, shape index: {}]
  %s16 = inlined_call_operand.hbm [shape: f32[2,8,64], index: 16, kind: output, shape index: {}]
  %s17 = sld [smem:[#allocation0]]
  $region97: #{llama_forward.1} parent=0
    _
  %s19 = ssub.s32 1, %s17
  %s20 = scalar_select 0, %s19, %s17
  $region1: #{llama_forward.1} parent=0
    #allocation2 [shape = 'u8[8192]{0}', space=vmem, size = 0x2000, scoped, tag = 'output window, operand 0']
    #allocation3 [shape = 's32[2]{0}', space=sflag, size = 0x8, scoped, tag = 'scoped memory for llama_forward.1']
    %21 = vsyncpa [#allocation3], 0
    %s22 = scalar_lea.sflag [#allocation3], 1
    %23 = vsyncpa %s22, 0
    loop: start=0, step=1, limit=4
    $region2: #{llama_forward.1} parent=1 // loop_pre_header
      _
    $region3: #{llama_forward.1} parent=1 // loop_header
      %s25 = sphi 0, %s29
      %p26 = scmp.ge.s32.totalorder %s25, 4
      %s35 = sphi 0, %s37
      %s38 = sphi 0, %s35
      %s39 = sphi 0, %s38
      %s55 = sphi 0, %s39
      %s59 = sphi 0, %s59
      %s61 = sphi 0, %s59
      %s62 = sphi 0, %s61
      %s76 = sphi 0, %s62
      %s80 = sphi 0, %s80
      %s82 = sphi 0, %s80
      %s83 = sphi 0, %s82
      %s97 = sphi 0, %s83
      %s101 = sphi 0, %s101
      %s103 = sphi 0, %s101
      %s104 = sphi 0, %s103
      %s118 = sphi 0, %s104
      %s122 = sphi 0, %s122
      %s124 = sphi 0, %s122
      %s125 = sphi 0, %s124
      %s139 = sphi 0, %s125
      %s143 = sphi 0, %s143
      %s145 = sphi 0, %s143
      %s146 = sphi 0, %s145
      %s160 = sphi 0, %s146
      %s164 = sphi 0, %s164
      %s166 = sphi 0, %s164
      %s167 = sphi 0, %s166
      %s181 = sphi 0, %s167
      %s185 = sphi 0, %s185
      %s187 = sphi 0, %s185
      %s188 = sphi 0, %s187
      %s202 = sphi 0, %s188
      %s206 = sphi 0, %s206
      %s208 = sphi 0, %s206
      %s209 = sphi 0, %s208
      %s223 = sphi 0, %s209
      %s227 = sphi 0, %s227
      %s229 = sphi 0, %s227
      %s230 = sphi 0, %s229
      %s244 = sphi 0, %s230
      %s248 = sphi 0, %s248
      %s250 = sphi 0, %s248
      %s251 = sphi 0, %s250
      %s265 = sphi 0, %s251
      %s269 = sphi 0, %s269
      %s271 = sphi 0, %s269
      %s272 = sphi 0, %s271
      %s286 = sphi 0, %s272
      %s290 = sphi 0, %s290
      %s292 = sphi 0, %s290
      %s293 = sphi 0, %s292
      %s307 = sphi 0, %s293
      %s311 = sphi 0, %s311
      %s313 = sphi 0, %s311
      %s314 = sphi 0, %s313
      %s328 = sphi 0, %s314
      %s332 = sphi 0, %s332
      %s334 = sphi 0, %s332
      %s335 = sphi 0, %s334
      %s349 = sphi 0, %s335
      %s353 = sphi 0, %s353
      %s355 = sphi 0, %s353
      %s356 = sphi 0, %s355
      %s370 = sphi 0, %s356
      %s376 = sphi 0, %s378
      %s379 = sphi 0, %s376
      %s380 = sphi 0, %s379
      %s396 = sphi 0, %s380
    $region4: #{llama_forward.1} parent=1 // loop_header_branch
      %28 = sbr.rel (%p26) target = $region8
    $region5: #{llama_forward.1} parent=1 // loop_body
      %s30 = ssub.s32 %s25, 1
      %s31 = ssub.s32 %s25, 2
      %s32 = sadd.s32 %s25, 1
      %s33 = ssub.s32 %s25, %s32
      %p34 = scmp.eq.s32.totalorder %s33, 0
      %s36 = sadd.s32 %s35, 1
      %s37 = scalar_select %p34, %s35, %s36
      %p40 = pneg %p34
      %p41 = scmp.eq.s32.totalorder %s25, 1
      %p42 = por %p40, %p41
      %p43 = scmp.ne.s32.totalorder %s35, %s38
      %p44 = scmp.eq.s32.totalorder %s25, 0
      %p45 = por %p43, %p44
      %p46 = scmp.ne.s32.totalorder %s35, %s38
      %p47 = scmp.eq.s32.totalorder %s30, 1
      %p48 = por %p46, %p47
      %p49 = scmp.ne.s32.totalorder %s38, %s39
      %p50 = scmp.eq.s32.totalorder %s30, 0
      %p51 = por %p49, %p50
      %p52 = scmp.ne.s32.totalorder %s38, %s39
      %p53 = scmp.eq.s32.totalorder %s31, 1
      %p54 = por %p52, %p53
      %p56 = scmp.ne.s32.totalorder %s39, %s55
      %p57 = scmp.eq.s32.totalorder %s31, 0
      %p58 = por %p56, %p57
      %s60 = sadd.s32 %s59, 1
      %p63 = scmp.eq.s32.totalorder %s25, 1
      %p64 = scmp.ne.s32.totalorder %s59, %s61
      %p65 = scmp.eq.s32.totalorder %s25, 0
      %p66 = por %p64, %p65
      %p67 = scmp.ne.s32.totalorder %s59, %s61
      %p68 = scmp.eq.s32.totalorder %s30, 1
      %p69 = por %p67, %p68
      %p70 = scmp.ne.s32.totalorder %s61, %s62
      %p71 = scmp.eq.s32.totalorder %s30, 0
      %p72 = por %p70, %p71
      %p73 = scmp.ne.s32.totalorder %s61, %s62
      %p74 = scmp.eq.s32.totalorder %s31, 1
      %p75 = por %p73, %p74
      %p77 = scmp.ne.s32.totalorder %s62, %s76
      %p78 = scmp.eq.s32.totalorder %s31, 0
      %p79 = por %p77, %p78
      %s81 = sadd.s32 %s80, 1
      %p84 = scmp.eq.s32.totalorder %s25, 1
      %p85 = scmp.ne.s32.totalorder %s80, %s82
      %p86 = scmp.eq.s32.totalorder %s25, 0
      %p87 = por %p85, %p86
      %p88 = scmp.ne.s32.totalorder %s80, %s82
      %p89 = scmp.eq.s32.totalorder %s30, 1
      %p90 = por %p88, %p89
      %p91 = scmp.ne.s32.totalorder %s82, %s83
      %p92 = scmp.eq.s32.totalorder %s30, 0
      %p93 = por %p91, %p92
      %p94 = scmp.ne.s32.totalorder %s82, %s83
      %p95 = scmp.eq.s32.totalorder %s31, 1
      %p96 = por %p94, %p95
      %p98 = scmp.ne.s32.totalorder %s83, %s97
      %p99 = scmp.eq.s32.totalorder %s31, 0
      %p100 = por %p98, %p99
      %s102 = sadd.s32 %s101, 1
      %p105 = scmp.eq.s32.totalorder %s25, 1
      %p106 = scmp.ne.s32.totalorder %s101, %s103
      %p107 = scmp.eq.s32.totalorder %s25, 0
      %p108 = por %p106, %p107
      %p109 = scmp.ne.s32.totalorder %s101, %s103
      %p110 = scmp.eq.s32.totalorder %s30, 1
      %p111 = por %p109, %p110
      %p112 = scmp.ne.s32.totalorder %s103, %s104
      %p113 = scmp.eq.s32.totalorder %s30, 0
      %p114 = por %p112, %p113
      %p115 = scmp.ne.s32.totalorder %s103, %s104
      %p116 = scmp.eq.s32.totalorder %s31, 1
      %p117 = por %p115, %p116
      %p119 = scmp.ne.s32.totalorder %s104, %s118
      %p120 = scmp.eq.s32.totalorder %s31, 0
      %p121 = por %p119, %p120
      %s123 = sadd.s32 %s122, 1
      %p126 = scmp.eq.s32.totalorder %s25, 1
      %p127 = scmp.ne.s32.totalorder %s122, %s124
      %p128 = scmp.eq.s32.totalorder %s25, 0
      %p129 = por %p127, %p128
      %p130 = scmp.ne.s32.totalorder %s122, %s124
      %p131 = scmp.eq.s32.totalorder %s30, 1
      %p132 = por %p130, %p131
      %p133 = scmp.ne.s32.totalorder %s124, %s125
      %p134 = scmp.eq.s32.totalorder %s30, 0
      %p135 = por %p133, %p134
      %p136 = scmp.ne.s32.totalorder %s124, %s125
      %p137 = scmp.eq.s32.totalorder %s31, 1
      %p138 = por %p136, %p137
      %p140 = scmp.ne.s32.totalorder %s125, %s139
      %p141 = scmp.eq.s32.totalorder %s31, 0
      %p142 = por %p140, %p141
      %s144 = sadd.s32 %s143, 1
      %p147 = scmp.eq.s32.totalorder %s25, 1
      %p148 = scmp.ne.s32.totalorder %s143, %s145
      %p149 = scmp.eq.s32.totalorder %s25, 0
      %p150 = por %p148, %p149
      %p151 = scmp.ne.s32.totalorder %s143, %s145
      %p152 = scmp.eq.s32.totalorder %s30, 1
      %p153 = por %p151, %p152
      %p154 = scmp.ne.s32.totalorder %s145, %s146
      %p155 = scmp.eq.s32.totalorder %s30, 0
      %p156 = por %p154, %p155
      %p157 = scmp.ne.s32.totalorder %s145, %s146
      %p158 = scmp.eq.s32.totalorder %s31, 1
      %p159 = por %p157, %p158
      %p161 = scmp.ne.s32.totalorder %s146, %s160
      %p162 = scmp.eq.s32.totalorder %s31, 0
      %p163 = por %p161, %p162
      %s165 = sadd.s32 %s164, 1
      %p168 = scmp.eq.s32.totalorder %s25, 1
      %p169 = scmp.ne.s32.totalorder %s164, %s166
      %p170 = scmp.eq.s32.totalorder %s25, 0
      %p171 = por %p169, %p170
      %p172 = scmp.ne.s32.totalorder %s164, %s166
      %p173 = scmp.eq.s32.totalorder %s30, 1
      %p174 = por %p172, %p173
      %p175 = scmp.ne.s32.totalorder %s166, %s167
      %p176 = scmp.eq.s32.totalorder %s30, 0
      %p177 = por %p175, %p176
      %p178 = scmp.ne.s32.totalorder %s166, %s167
      %p179 = scmp.eq.s32.totalorder %s31, 1
      %p180 = por %p178, %p179
      %p182 = scmp.ne.s32.totalorder %s167, %s181
      %p183 = scmp.eq.s32.totalorder %s31, 0
      %p184 = por %p182, %p183
      %s186 = sadd.s32 %s185, 1
      %p189 = scmp.eq.s32.totalorder %s25, 1
      %p190 = scmp.ne.s32.totalorder %s185, %s187
      %p191 = scmp.eq.s32.totalorder %s25, 0
      %p192 = por %p190, %p191
      %p193 = scmp.ne.s32.totalorder %s185, %s187
      %p194 = scmp.eq.s32.totalorder %s30, 1
      %p195 = por %p193, %p194
      %p196 = scmp.ne.s32.totalorder %s187, %s188
      %p197 = scmp.eq.s32.totalorder %s30, 0
      %p198 = por %p196, %p197
      %p199 = scmp.ne.s32.totalorder %s187, %s188
      %p200 = scmp.eq.s32.totalorder %s31, 1
      %p201 = por %p199, %p200
      %p203 = scmp.ne.s32.totalorder %s188, %s202
      %p204 = scmp.eq.s32.totalorder %s31, 0
      %p205 = por %p203, %p204
      %s207 = sadd.s32 %s206, 1
      %p210 = scmp.eq.s32.totalorder %s25, 1
      %p211 = scmp.ne.s32.totalorder %s206, %s208
      %p212 = scmp.eq.s32.totalorder %s25, 0
      %p213 = por %p211, %p212
      %p214 = scmp.ne.s32.totalorder %s206, %s208
      %p215 = scmp.eq.s32.totalorder %s30, 1
      %p216 = por %p214, %p215
      %p217 = scmp.ne.s32.totalorder %s208, %s209
      %p218 = scmp.eq.s32.totalorder %s30, 0
      %p219 = por %p217, %p218
      %p220 = scmp.ne.s32.totalorder %s208, %s209
      %p221 = scmp.eq.s32.totalorder %s31, 1
      %p222 = por %p220, %p221
      %p224 = scmp.ne.s32.totalorder %s209, %s223
      %p225 = scmp.eq.s32.totalorder %s31, 0
      %p226 = por %p224, %p225
      %s228 = sadd.s32 %s227, 1
      %p231 = scmp.eq.s32.totalorder %s25, 1
      %p232 = scmp.ne.s32.totalorder %s227, %s229
      %p233 = scmp.eq.s32.totalorder %s25, 0
      %p234 = por %p232, %p233
      %p235 = scmp.ne.s32.totalorder %s227, %s229
      %p236 = scmp.eq.s32.totalorder %s30, 1
      %p237 = por %p235, %p236
      %p238 = scmp.ne.s32.totalorder %s229, %s230
      %p239 = scmp.eq.s32.totalorder %s30, 0
      %p240 = por %p238, %p239
      %p241 = scmp.ne.s32.totalorder %s229, %s230
      %p242 = scmp.eq.s32.totalorder %s31, 1
      %p243 = por %p241, %p242
      %p245 = scmp.ne.s32.totalorder %s230, %s244
      %p246 = scmp.eq.s32.totalorder %s31, 0
      %p247 = por %p245, %p246
      %s249 = sadd.s32 %s248, 1
      %p252 = scmp.eq.s32.totalorder %s25, 1
      %p253 = scmp.ne.s32.totalorder %s248, %s250
      %p254 = scmp.eq.s32.totalorder %s25, 0
      %p255 = por %p253, %p254
      %p256 = scmp.ne.s32.totalorder %s248, %s250
      %p257 = scmp.eq.s32.totalorder %s30, 1
      %p258 = por %p256, %p257
      %p259 = scmp.ne.s32.totalorder %s250, %s251
      %p260 = scmp.eq.s32.totalorder %s30, 0
      %p261 = por %p259, %p260
      %p262 = scmp.ne.s32.totalorder %s250, %s251
      %p263 = scmp.eq.s32.totalorder %s31, 1
      %p264 = por %p262, %p263
      %p266 = scmp.ne.s32.totalorder %s251, %s265
      %p267 = scmp.eq.s32.totalorder %s31, 0
      %p268 = por %p266, %p267
      %s270 = sadd.s32 %s269, 1
      %p273 = scmp.eq.s32.totalorder %s25, 1
      %p274 = scmp.ne.s32.totalorder %s269, %s271
      %p275 = scmp.eq.s32.totalorder %s25, 0
      %p276 = por %p274, %p275
      %p277 = scmp.ne.s32.totalorder %s269, %s271
      %p278 = scmp.eq.s32.totalorder %s30, 1
      %p279 = por %p277, %p278
      %p280 = scmp.ne.s32.totalorder %s271, %s272
      %p281 = scmp.eq.s32.totalorder %s30, 0
      %p282 = por %p280, %p281
      %p283 = scmp.ne.s32.totalorder %s271, %s272
      %p284 = scmp.eq.s32.totalorder %s31, 1
      %p285 = por %p283, %p284
      %p287 = scmp.ne.s32.totalorder %s272, %s286
      %p288 = scmp.eq.s32.totalorder %s31, 0
      %p289 = por %p287, %p288
      %s291 = sadd.s32 %s290, 1
      %p294 = scmp.eq.s32.totalorder %s25, 1
      %p295 = scmp.ne.s32.totalorder %s290, %s292
      %p296 = scmp.eq.s32.totalorder %s25, 0
      %p297 = por %p295, %p296
      %p298 = scmp.ne.s32.totalorder %s290, %s292
      %p299 = scmp.eq.s32.totalorder %s30, 1
      %p300 = por %p298, %p299
      %p301 = scmp.ne.s32.totalorder %s292, %s293
      %p302 = scmp.eq.s32.totalorder %s30, 0
      %p303 = por %p301, %p302
      %p304 = scmp.ne.s32.totalorder %s292, %s293
      %p305 = scmp.eq.s32.totalorder %s31, 1
      %p306 = por %p304, %p305
      %p308 = scmp.ne.s32.totalorder %s293, %s307
      %p309 = scmp.eq.s32.totalorder %s31, 0
      %p310 = por %p308, %p309
      %s312 = sadd.s32 %s311, 1
      %p315 = scmp.eq.s32.totalorder %s25, 1
      %p316 = scmp.ne.s32.totalorder %s311, %s313
      %p317 = scmp.eq.s32.totalorder %s25, 0
      %p318 = por %p316, %p317
      %p319 = scmp.ne.s32.totalorder %s311, %s313
      %p320 = scmp.eq.s32.totalorder %s30, 1
      %p321 = por %p319, %p320
      %p322 = scmp.ne.s32.totalorder %s313, %s314
      %p323 = scmp.eq.s32.totalorder %s30, 0
      %p324 = por %p322, %p323
      %p325 = scmp.ne.s32.totalorder %s313, %s314
      %p326 = scmp.eq.s32.totalorder %s31, 1
      %p327 = por %p325, %p326
      %p329 = scmp.ne.s32.totalorder %s314, %s328
      %p330 = scmp.eq.s32.totalorder %s31, 0
      %p331 = por %p329, %p330
      %s333 = sadd.s32 %s332, 1
      %p336 = scmp.eq.s32.totalorder %s25, 1
      %p337 = scmp.ne.s32.totalorder %s332, %s334
      %p338 = scmp.eq.s32.totalorder %s25, 0
      %p339 = por %p337, %p338
      %p340 = scmp.ne.s32.totalorder %s332, %s334
      %p341 = scmp.eq.s32.totalorder %s30, 1
      %p342 = por %p340, %p341
      %p343 = scmp.ne.s32.totalorder %s334, %s335
      %p344 = scmp.eq.s32.totalorder %s30, 0
      %p345 = por %p343, %p344
      %p346 = scmp.ne.s32.totalorder %s334, %s335
      %p347 = scmp.eq.s32.totalorder %s31, 1
      %p348 = por %p346, %p347
      %p350 = scmp.ne.s32.totalorder %s335, %s349
      %p351 = scmp.eq.s32.totalorder %s31, 0
      %p352 = por %p350, %p351
      %s354 = sadd.s32 %s353, 1
      %p357 = scmp.eq.s32.totalorder %s25, 1
      %p358 = scmp.ne.s32.totalorder %s353, %s355
      %p359 = scmp.eq.s32.totalorder %s25, 0
      %p360 = por %p358, %p359
      %p361 = scmp.ne.s32.totalorder %s353, %s355
      %p362 = scmp.eq.s32.totalorder %s30, 1
      %p363 = por %p361, %p362
      %p364 = scmp.ne.s32.totalorder %s355, %s356
      %p365 = scmp.eq.s32.totalorder %s30, 0
      %p366 = por %p364, %p365
      %p367 = scmp.ne.s32.totalorder %s355, %s356
      %p368 = scmp.eq.s32.totalorder %s31, 1
      %p369 = por %p367, %p368
      %p371 = scmp.ne.s32.totalorder %s356, %s370
      %p372 = scmp.eq.s32.totalorder %s31, 0
      %p373 = por %p371, %p372
      %s374 = ssub.s32 %s25, %s32
      %p375 = scmp.eq.s32.totalorder %s374, 0
      %s377 = sadd.s32 %s376, 1
      %s378 = scalar_select %p375, %s376, %s377
      %p381 = pneg %p375
      %p382 = scmp.eq.s32.totalorder %s25, 1
      %p383 = por %p381, %p382
      %p384 = scmp.ne.s32.totalorder %s376, %s379
      %p385 = scmp.eq.s32.totalorder %s25, 0
      %p386 = por %p384, %p385
      %p387 = scmp.ne.s32.totalorder %s376, %s379
      %p388 = scmp.eq.s32.totalorder %s30, 1
      %p389 = por %p387, %p388
      %p390 = scmp.ne.s32.totalorder %s379, %s380
      %p391 = scmp.eq.s32.totalorder %s30, 0
      %p392 = por %p390, %p391
      %p393 = scmp.ne.s32.totalorder %s379, %s380
      %p394 = scmp.eq.s32.totalorder %s31, 1
      %p395 = por %p393, %p394
      %p397 = scmp.ne.s32.totalorder %s380, %s396
      %p398 = scmp.eq.s32.totalorder %s31, 0
      %p399 = por %p397, %p398
      %p400 = scmp.le.s32.totalorder 1, %s25
      %p401 = scmp.lt.s32.totalorder %s25, 3
      %p402 = pnand %p400, %p401
      %p403 = pneg %p402
      // Predicated region
      $region9: #{llama_forward.1} parent=5 // pred_check
        _
      $region10: #{llama_forward.1} parent=5 // pred_check_branch
        %405 = sbr.rel (%p402) target = $region12
      $region11: #{llama_forward.1} parent=5 // pred_region
        %s406 = ssub.s32 %s25, 1
        // Predicated region
        $region13: #{llama_forward.1} parent=11 // pred_check
          %p407 = pneg %p72
        $region14: #{llama_forward.1} parent=11 // pred_check_branch
          %409 = sbr.rel (%p407) target = $region16
        $region15: #{llama_forward.1} parent=11 // pred_region
          _
        $region16: #{llama_forward.1} parent=11 // pred_fallthru
          _
        // Predicated region
        $region17: #{llama_forward.1} parent=11 // pred_check
          %p410 = pneg %p93
        $region18: #{llama_forward.1} parent=11 // pred_check_branch
          %412 = sbr.rel (%p410) target = $region20
        $region19: #{llama_forward.1} parent=11 // pred_region
          _
        $region20: #{llama_forward.1} parent=11 // pred_fallthru
          _
        // Predicated region
        $region21: #{llama_forward.1} parent=11 // pred_check
          %p413 = pneg %p114
        $region22: #{llama_forward.1} parent=11 // pred_check_branch
          %415 = sbr.rel (%p413) target = $region24
        $region23: #{llama_forward.1} parent=11 // pred_region
          _
        $region24: #{llama_forward.1} parent=11 // pred_fallthru
          _
        // Predicated region
        $region25: #{llama_forward.1} parent=11 // pred_check
          %p416 = pneg %p135
        $region26: #{llama_forward.1} parent=11 // pred_check_branch
          %418 = sbr.rel (%p416) target = $region28
        $region27: #{llama_forward.1} parent=11 // pred_region
          _
        $region28: #{llama_forward.1} parent=11 // pred_fallthru
          _
        // Predicated region
        $region29: #{llama_forward.1} parent=11 // pred_check
          %p419 = pneg %p156
        $region30: #{llama_forward.1} parent=11 // pred_check_branch
          %421 = sbr.rel (%p419) target = $region32
        $region31: #{llama_forward.1} parent=11 // pred_region
          _
        $region32: #{llama_forward.1} parent=11 // pred_fallthru
          _
        // Predicated region
        $region33: #{llama_forward.1} parent=11 // pred_check
          %p422 = pneg %p177
        $region34: #{llama_forward.1} parent=11 // pred_check_branch
          %424 = sbr.rel (%p422) target = $region36
        $region35: #{llama_forward.1} parent=11 // pred_region
          _
        $region36: #{llama_forward.1} parent=11 // pred_fallthru
          _
        // Predicated region
        $region37: #{llama_forward.1} parent=11 // pred_check
          %p425 = pneg %p198
        $region38: #{llama_forward.1} parent=11 // pred_check_branch
          %427 = sbr.rel (%p425) target = $region40
        $region39: #{llama_forward.1} parent=11 // pred_region
          _
        $region40: #{llama_forward.1} parent=11 // pred_fallthru
          _
        // Predicated region
        $region41: #{llama_forward.1} parent=11 // pred_check
          %p428 = pneg %p219
        $region42: #{llama_forward.1} parent=11 // pred_check_branch
          %430 = sbr.rel (%p428) target = $region44
        $region43: #{llama_forward.1} parent=11 // pred_region
          _
        $region44: #{llama_forward.1} parent=11 // pred_fallthru
          _
        // Predicated region
        $region45: #{llama_forward.1} parent=11 // pred_check
          %p431 = pneg %p240
        $region46: #{llama_forward.1} parent=11 // pred_check_branch
          %433 = sbr.rel (%p431) target = $region48
        $region47: #{llama_forward.1} parent=11 // pred_region
          _
        $region48: #{llama_forward.1} parent=11 // pred_fallthru
          _
        // Predicated region
        $region49: #{llama_forward.1} parent=11 // pred_check
          %p434 = pneg %p261
        $region50: #{llama_forward.1} parent=11 // pred_check_branch
          %436 = sbr.rel (%p434) target = $region52
        $region51: #{llama_forward.1} parent=11 // pred_region
          _
        $region52: #{llama_forward.1} parent=11 // pred_fallthru
          _
        // Predicated region
        $region53: #{llama_forward.1} parent=11 // pred_check
          %p437 = pneg %p282
        $region54: #{llama_forward.1} parent=11 // pred_check_branch
          %439 = sbr.rel (%p437) target = $region56
        $region55: #{llama_forward.1} parent=11 // pred_region
          _
        $region56: #{llama_forward.1} parent=11 // pred_fallthru
          _
        // Predicated region
        $region57: #{llama_forward.1} parent=11 // pred_check
          %p440 = pneg %p303
        $region58: #{llama_forward.1} parent=11 // pred_check_branch
          %442 = sbr.rel (%p440) target = $region60
        $region59: #{llama_forward.1} parent=11 // pred_region
          _
        $region60: #{llama_forward.1} parent=11 // pred_fallthru
          _
        // Predicated region
        $region61: #{llama_forward.1} parent=11 // pred_check
          %p443 = pneg %p324
        $region62: #{llama_forward.1} parent=11 // pred_check_branch
          %445 = sbr.rel (%p443) target = $region64
        $region63: #{llama_forward.1} parent=11 // pred_region
          _
        $region64: #{llama_forward.1} parent=11 // pred_fallthru
          _
        // Predicated region
        $region65: #{llama_forward.1} parent=11 // pred_check
          %p446 = pneg %p345
        $region66: #{llama_forward.1} parent=11 // pred_check_branch
          %448 = sbr.rel (%p446) target = $region68
        $region67: #{llama_forward.1} parent=11 // pred_region
          _
        $region68: #{llama_forward.1} parent=11 // pred_fallthru
          _
        // Predicated region
        $region69: #{llama_forward.1} parent=11 // pred_check
          %p449 = pneg %p366
        $region70: #{llama_forward.1} parent=11 // pred_check_branch
          %451 = sbr.rel (%p449) target = $region72
        $region71: #{llama_forward.1} parent=11 // pred_region
          _
        $region72: #{llama_forward.1} parent=11 // pred_fallthru
          _
      $region12: #{llama_forward.1} parent=5 // pred_fallthru
        _
      %p452 = scmp.lt.s32.totalorder %s25, 2
      // Predicated region
      $region73: #{llama_forward.1} parent=5 // pred_check
        %p453 = pneg %p452
      $region74: #{llama_forward.1} parent=5 // pred_check_branch
        %455 = sbr.rel (%p453) target = $region76
      $region75: #{llama_forward.1} parent=5 // pred_region
        // Predicated region
        $region77: #{llama_forward.1} parent=75 // pred_check
          %p456 = pneg %p45
        $region78: #{llama_forward.1} parent=75 // pred_check_branch
          %458 = sbr.rel (%p456) target = $region80
        $region79: #{llama_forward.1} parent=75 // pred_region
          %p459 = scmp.lt.s32.totalorder %s25, 1
          %s460 = scalar_select %p459, %s25, 1
          %s461 = smul.addr %s460, 8
          %s462 = scalar_lea.vmem %s0, %s461
        $region80: #{llama_forward.1} parent=75 // pred_fallthru
          _
      $region76: #{llama_forward.1} parent=5 // pred_fallthru
        _
      %p463 = scmp.le.s32.totalorder 1, %s25
      %p464 = scmp.lt.s32.totalorder %s25, 3
      %p465 = pnand %p463, %p464
      %p466 = pneg %p465
      // Predicated region
      $region81: #{llama_forward.1} parent=5 // pred_check
        _
      $region82: #{llama_forward.1} parent=5 // pred_check_branch
        %468 = sbr.rel (%p465) target = $region84
      $region83: #{llama_forward.1} parent=5 // pred_region
        %s469 = ssub.s32 %s25, 1
        %p470 = scmp.lt.s32.totalorder %s30, 1
        %s471 = scalar_select %p470, %s30, 1
        %s472 = smul.addr %s471, 8
        %s473 = scalar_lea.vmem %s0, %s472
        %p474 = pneg %p51
        %p475 = pneg %p48
        %p476 = pneg %p72
        %p477 = pneg %p69
        %p478 = pneg %p93
        %p479 = pneg %p90
        %p480 = pneg %p114
        %p481 = pneg %p111
        %p482 = pneg %p135
        %p483 = pneg %p132
        %p484 = pneg %p156
        %p485 = pneg %p153
        %p486 = pneg %p177
        %p487 = pneg %p174
        %p488 = pneg %p198
        %p489 = pneg %p195
        %p490 = pneg %p219
        %p491 = pneg %p216
        %p492 = pneg %p240
        %p493 = pneg %p237
        %p494 = pneg %p261
        %p495 = pneg %p258
        %p496 = pneg %p282
        %p497 = pneg %p279
        %p498 = pneg %p303
        %p499 = pneg %p300
        %p500 = pneg %p324
        %p501 = pneg %p321
        %p502 = pneg %p345
        %p503 = pneg %p342
        %p504 = pneg %p366
        %p505 = pneg %p363
        %p506 = pneg %p392
        %p507 = pneg %p389
        %s508 = sand.u32 %s379, 1
        %s509 = scalar_lea.sflag [#allocation3], %s508
        %s510 = sand.u32 %s379, 1
        %s511 = smul.addr %s510, 8
        %s512 = scalar_lea.vmem [#allocation2], %s511
        %p513 = scmp.lt.s32.totalorder %s30, 1
        %s514 = scalar_select %p513, %s30, 1
        %s515 = smul.addr %s514, 8
        %s516 = scalar_lea.vmem %s0, %s515
        %v517 = vld [vmem:[%s516] sm:$0xff]
        %v518 = vlaneseq
        %v519 = vand.u32 %v518, 127
        %520 = vset.pattern.permute.xlu0 0
        %521 = vperm.xlu0 %520, %v517
        %v522 = vpop.permute.xlu0 %521
        %vm523 = vcmp.eq.s32.totalorder %v519, %v522
        %v524 = vsel %vm523, 1, 0
        %v525 = vcvt.s32.f32 %v524
        %v526 = vld [vmem:[%s1] sm:$0xff]
        %v527 = vld [vmem:[%s1 + $0x8] sm:$0xff]
        %v528 = vld [vmem:[%s1 + $0x10] sm:$0xff]
        %v529 = vld [vmem:[%s1 + $0x18] sm:$0xff]
        %v530 = vld [vmem:[%s1 + $0x20] sm:$0xff]
        %v531 = vld [vmem:[%s1 + $0x28] sm:$0xff]
        %v532 = vld [vmem:[%s1 + $0x30] sm:$0xff]
        %v533 = vld [vmem:[%s1 + $0x38] sm:$0xff]
        %vm534 = vcmask 523264
        %v536 = vsel %vm534, %v525, 0
        %538 = vmatprep.subr.mxu0 0.0
        %539 = vmatpush1.msra.mxu0 %v526
        %540 = vmatprep.subr.mxu0 0.0
        %541 = vmatpush1.msra.mxu0 %v527
        %542 = vmatprep.subr.mxu0 0.0
        %543 = vmatpush1.msra.mxu0 %v528
        %544 = vmatprep.subr.mxu0 0.0
        %545 = vmatpush1.msra.mxu0 %v529
        %546 = vmatprep.subr.mxu0 0.0
        %547 = vmatpush1.msra.mxu0 %v530
        %548 = vmatprep.subr.mxu0 0.0
        %549 = vmatpush1.msra.mxu0 %v531
        %550 = vmatprep.subr.mxu0 0.0
        %551 = vmatpush1.msra.mxu0 %v532
        %552 = vmatprep.subr.mxu0 0.0
        %553 = vmatpush1.msra.mxu0 %v533
        %554 = vmatprep.subr.mxu0 0.0
        %555 = vmatpush1.msra.mxu0 0.0
        %556 = vmatprep.subr.mxu0 0.0
        %557 = vmatpush1.msra.mxu0 0.0
        %558 = vmatprep.subr.mxu0 0.0
        %559 = vmatpush1.msra.mxu0 0.0
        %560 = vmatprep.subr.mxu0 0.0
        %561 = vmatpush1.msra.mxu0 0.0
        %562 = vmatprep.subr.mxu0 0.0
        %563 = vmatpush1.msra.mxu0 0.0
        %564 = vmatprep.subr.mxu0 0.0
        %565 = vmatpush1.msra.mxu0 0.0
        %566 = vmatprep.subr.mxu0 0.0
        %567 = vmatpush1.msra.mxu0 0.0
        %568 = vmatprep.subr.mxu0 0.0
        %569 = vmatpush1.msra.mxu0 0.0
        %570 = vmatprep.subr.mxu0 0.0
        %571 = vmatpush1.msra.mxu0 0.0
        %572 = vmatprep.subr.mxu0 0.0
        %573 = vmatpush1.msra.mxu0 0.0
        %574 = vmatprep.subr.mxu0 0.0
        %575 = vmatpush1.msra.mxu0 0.0
        %576 = vmatprep.subr.mxu0 0.0
        %577 = vmatpush1.msra.mxu0 0.0
        %578 = vmatprep.subr.mxu0 0.0
        %579 = vmatpush1.msra.mxu0 0.0
        %580 = vmatprep.subr.mxu0 0.0
        %581 = vmatpush1.msra.mxu0 0.0
        %582 = vmatprep.subr.mxu0 0.0
        %583 = vmatpush1.msra.mxu0 0.0
        %584 = vmatprep.subr.mxu0 0.0
        %585 = vmatpush1.msra.mxu0 0.0
        %586 = vmatprep.subr.mxu0 0.0
        %587 = vmatpush1.msra.mxu0 0.0
        %588 = vmatprep.subr.mxu0 0.0
        %589 = vmatpush1.msra.mxu0 0.0
        %590 = vmatprep.subr.mxu0 0.0
        %591 = vmatpush1.msra.mxu0 0.0
        %592 = vmatprep.subr.mxu0 0.0
        %593 = vmatpush1.msra.mxu0 0.0
        %594 = vmatprep.subr.mxu0 0.0
        %595 = vmatpush1.msra.mxu0 0.0
        %596 = vmatprep.subr.mxu0 0.0
        %597 = vmatpush1.msra.mxu0 0.0
        %598 = vmatprep.subr.mxu0 0.0
        %599 = vmatpush1.msra.mxu0 0.0
        %600 = vmatprep.subr.mxu0 0.0
        %601 = vmatpush1.msra.mxu0 0.0
        %602 = vmatprep.mubr.f32.mxu0 0.0
        %603 = vmatmul.mubr.f32.gmra.mrb[0].mxu0 %v536
        %v604 = vpop.f32.mrb[0].mxu0
        %v605 = vadd.f32 0.0, %v604
        %v606 = vpop.f32.mrb[0].mxu0
        %607 = vdwg.mxu0
        %v608 = vld [vmem:[%s2] sm:$0xff]
        %v609 = vld [vmem:[%s3] sm:$0xff]
        %v610 = vld [vmem:[%s4] sm:$0xff]
        %v611 = vld [vmem:[%s4 + $0x8] sm:$0xff]
        %v612 = vld [vmem:[%s4 + $0x10] sm:$0xff]
        %v613 = vld [vmem:[%s4 + $0x18] sm:$0xff]
        %v614 = vlaneseq
        %v615 = vshrl.u32 %v614, 7
        %vm616 = vcmp.ge.s32.totalorder %v615, %v519
        %v617 = vsel %vm616, 0.0, -1e+30
        %v618 = vld [vmem:[%s9] sm:$0x1]
        %v619 = vmul.f32 %v605, %v605
        %vm620 = vcmask 261120
        %v621 = vsel %vm620, %v619, 0.0
        %622 = vadd.xlane.f32.xlu0 %v621
        %v623 = vpop.xlane.xlu0 %622
        %v624 = vrcp.pop 32.0
        %v625 = vmul.f32 %v623, %v624
        %v626 = vadd.f32 %v625, 1e-05
        %v627 = vrsqrt.pop %v626
        %v628 = vmul.f32 %v605, %v627
        %v630 = vlaneseq
        %v631 = vshrl.u32 %v630, 7
        %v632 = vsub.s32 0, %v631
        %v633 = vrot.slane %v618, %v632
        %v635 = vmul.f32 %v628, %v633
        %v636 = vld [vmem:[%s5] sm:$0xff]
        %v637 = vld [vmem:[%s5 + $0x8] sm:$0xff]
        %v638 = vld [vmem:[%s5 + $0x10] sm:$0xff]
        %v639 = vld [vmem:[%s5 + $0x18] sm:$0xff]
        %v640 = vld [vmem:[%s5 + $0x20] sm:$0xff]
        %v641 = vld [vmem:[%s5 + $0x28] sm:$0xff]
        %v642 = vld [vmem:[%s5 + $0x30] sm:$0xff]
        %v643 = vld [vmem:[%s5 + $0x38] sm:$0xff]
        %v644 = vld [vmem:[%s5 + $0x40] sm:$0xff]
        %v645 = vld [vmem:[%s5 + $0x48] sm:$0xff]
        %v646 = vld [vmem:[%s5 + $0x50] sm:$0xff]
        %v647 = vld [vmem:[%s5 + $0x58] sm:$0xff]
        %v648 = vld [vmem:[%s5 + $0x60] sm:$0xff]
        %v649 = vld [vmem:[%s5 + $0x68] sm:$0xff]
        %v650 = vld [vmem:[%s5 + $0x70] sm:$0xff]
        %v651 = vld [vmem:[%s5 + $0x78] sm:$0xff]
        %v652 = vld [vmem:[%s6] sm:$0x1]
        %v653 = vld [vmem:[%s6 + $0x1] sm:$0x1]
        %v654 = vld [vmem:[%s6 + $0x2] sm:$0x1]
        %v655 = vld [vmem:[%s6 + $0x3] sm:$0x1]
        %v660 = vlaneseq
        %v661 = vshrl.u32 %v660, 7
        %v662 = vsub.s32 0, %v661
        %v663 = vrot.slane %v652, %v662
        %v664 = vlaneseq
        %v665 = vshrl.u32 %v664, 7
        %v666 = vsub.s32 0, %v665
        %v667 = vrot.slane %v653, %v666
        %v668 = vlaneseq
        %v669 = vshrl.u32 %v668, 7
        %v670 = vsub.s32 0, %v669
        %v671 = vrot.slane %v654, %v670
        %v672 = vlaneseq
        %v673 = vshrl.u32 %v672, 7
        %v674 = vsub.s32 0, %v673
        %v675 = vrot.slane %v655, %v674
        %v681 = vsel %vm620, %v635, 0
        %683 = vmatprep.subr.mxu0 0.0
        %684 = vmatpush1.msra.mxu0 %v636
        %685 = vmatprep.subr.mxu0 0.0
        %686 = vmatpush1.msra.mxu0 %v637
        %687 = vmatprep.subr.mxu0 0.0
        %688 = vmatpush1.msra.mxu0 %v638
        %689 = vmatprep.subr.mxu0 0.0
        %690 = vmatpush1.msra.mxu0 %v639
        %691 = vmatprep.subr.mxu0 0.0
        %692 = vmatpush1.msra.mxu0 0.0
        %693 = vmatprep.subr.mxu0 0.0
        %694 = vmatpush1.msra.mxu0 0.0
        %695 = vmatprep.subr.mxu0 0.0
        %696 = vmatpush1.msra.mxu0 0.0
        %697 = vmatprep.subr.mxu0 0.0
        %698 = vmatpush1.msra.mxu0 0.0
        %699 = vmatprep.subr.mxu0 0.0
        %700 = vmatpush1.msra.mxu0 0.0
        %701 = vmatprep.subr.mxu0 0.0
        %702 = vmatpush1.msra.mxu0 0.0
        %703 = vmatprep.subr.mxu0 0.0
        %704 = vmatpush1.msra.mxu0 0.0
        %705 = vmatprep.subr.mxu0 0.0
        %706 = vmatpush1.msra.mxu0 0.0
        %707 = vmatprep.subr.mxu0 0.0
        %708 = vmatpush1.msra.mxu0 0.0
        %709 = vmatprep.subr.mxu0 0.0
        %710 = vmatpush1.msra.mxu0 0.0
        %711 = vmatprep.subr.mxu0 0.0
        %712 = vmatpush1.msra.mxu0 0.0
        %713 = vmatprep.subr.mxu0 0.0
        %714 = vmatpush1.msra.mxu0 0.0
        %715 = vmatprep.subr.mxu0 0.0
        %716 = vmatpush1.msra.mxu0 0.0
        %717 = vmatprep.subr.mxu0 0.0
        %718 = vmatpush1.msra.mxu0 0.0
        %719 = vmatprep.subr.mxu0 0.0
        %720 = vmatpush1.msra.mxu0 0.0
        %721 = vmatprep.subr.mxu0 0.0
        %722 = vmatpush1.msra.mxu0 0.0
        %723 = vmatprep.subr.mxu0 0.0
        %724 = vmatpush1.msra.mxu0 0.0
        %725 = vmatprep.subr.mxu0 0.0
        %726 = vmatpush1.msra.mxu0 0.0
        %727 = vmatprep.subr.mxu0 0.0
        %728 = vmatpush1.msra.mxu0 0.0
        %729 = vmatprep.subr.mxu0 0.0
        %730 = vmatpush1.msra.mxu0 0.0
        %731 = vmatprep.subr.mxu0 0.0
        %732 = vmatpush1.msra.mxu0 0.0
        %733 = vmatprep.subr.mxu0 0.0
        %734 = vmatpush1.msra.mxu0 0.0
        %735 = vmatprep.subr.mxu0 0.0
        %736 = vmatpush1.msra.mxu0 0.0
        %737 = vmatprep.subr.mxu0 0.0
        %738 = vmatpush1.msra.mxu0 0.0
        %739 = vmatprep.subr.mxu0 0.0
        %740 = vmatpush1.msra.mxu0 0.0
        %741 = vmatprep.subr.mxu0 0.0
        %742 = vmatpush1.msra.mxu0 0.0
        %743 = vmatprep.subr.mxu0 0.0
        %744 = vmatpush1.msra.mxu0 0.0
        %745 = vmatprep.subr.mxu0 0.0
        %746 = vmatpush1.msra.mxu0 0.0
        %747 = vmatprep.mubr.f32.mxu0 0.0
        %748 = vmatmul.mubr.f32.gmra.mrb[0].mxu0 %v681
        %v749 = vpop.f32.mrb[0].mxu0
        %v750 = vadd.f32 %v663, %v749
        %v751 = vpop.f32.mrb[0].mxu0
        %752 = vdwg.mxu0
        %753 = vmatprep.subr.mxu0 0.0
        %754 = vmatpush1.msra.mxu0 %v640
        %755 = vmatprep.subr.mxu0 0.0
        %756 = vmatpush1.msra.mxu0 %v641
        %757 = vmatprep.subr.mxu0 0.0
        %758 = vmatpush1.msra.mxu0 %v642
        %759 = vmatprep.subr.mxu0 0.0
        %760 = vmatpush1.msra.mxu0 %v643
        %761 = vmatprep.subr.mxu0 0.0
        %762 = vmatpush1.msra.mxu0 0.0
        %763 = vmatprep.subr.mxu0 0.0
        %764 = vmatpush1.msra.mxu0 0.0
        %765 = vmatprep.subr.mxu0 0.0
        %766 = vmatpush1.msra.mxu0 0.0
        %767 = vmatprep.subr.mxu0 0.0
        %768 = vmatpush1.msra.mxu0 0.0
        %769 = vmatprep.subr.mxu0 0.0
        %770 = vmatpush1.msra.mxu0 0.0
        %771 = vmatprep.subr.mxu0 0.0
        %772 = vmatpush1.msra.mxu0 0.0
        %773 = vmatprep.subr.mxu0 0.0
        %774 = vmatpush1.msra.mxu0 0.0
        %775 = vmatprep.subr.mxu0 0.0
        %776 = vmatpush1.msra.mxu0 0.0
        %777 = vmatprep.subr.mxu0 0.0
        %778 = vmatpush1.msra.mxu0 0.0
        %779 = vmatprep.subr.mxu0 0.0
        %780 = vmatpush1.msra.mxu0 0.0
        %781 = vmatprep.subr.mxu0 0.0
        %782 = vmatpush1.msra.mxu0 0.0
        %783 = vmatprep.subr.mxu0 0.0
        %784 = vmatpush1.msra.mxu0 0.0
        %785 = vmatprep.subr.mxu0 0.0
        %786 = vmatpush1.msra.mxu0 0.0
        %787 = vmatprep.subr.mxu0 0.0
        %788 = vmatpush1.msra.mxu0 0.0
        %789 = vmatprep.subr.mxu0 0.0
        %790 = vmatpush1.msra.mxu0 0.0
        %791 = vmatprep.subr.mxu0 0.0
        %792 = vmatpush1.msra.mxu0 0.0
        %793 = vmatprep.subr.mxu0 0.0
        %794 = vmatpush1.msra.mxu0 0.0
        %795 = vmatprep.subr.mxu0 0.0
        %796 = vmatpush1.msra.mxu0 0.0
        %797 = vmatprep.subr.mxu0 0.0
        %798 = vmatpush1.msra.mxu0 0.0
        %799 = vmatprep.subr.mxu0 0.0
        %800 = vmatpush1.msra.mxu0 0.0
        %801 = vmatprep.subr.mxu0 0.0
        %802 = vmatpush1.msra.mxu0 0.0
        %803 = vmatprep.subr.mxu0 0.0
        %804 = vmatpush1.msra.mxu0 0.0
        %805 = vmatprep.subr.mxu0 0.0
        %806 = vmatpush1.msra.mxu0 0.0
        %807 = vmatprep.subr.mxu0 0.0
        %808 = vmatpush1.msra.mxu0 0.0
        %809 = vmatprep.subr.mxu0 0.0
        %810 = vmatpush1.msra.mxu0 0.0
        %811 = vmatprep.subr.mxu0 0.0
        %812 = vmatpush1.msra.mxu0 0.0
        %813 = vmatprep.subr.mxu0 0.0
        %814 = vmatpush1.msra.mxu0 0.0
        %815 = vmatprep.subr.mxu0 0.0
        %816 = vmatpush1.msra.mxu0 0.0
        %817 = vmatprep.mubr.f32.mxu0 0.0
        %818 = vmatmul.mubr.f32.gmra.mrb[0].mxu0 %v681
        %v819 = vpop.f32.mrb[0].mxu0
        %v820 = vadd.f32 %v667, %v819
        %v821 = vpop.f32.mrb[0].mxu0
        %822 = vdwg.mxu0
        %823 = vmatprep.subr.mxu0 0.0
        %824 = vmatpush1.msra.mxu0 %v644
        %825 = vmatprep.subr.mxu0 0.0
        %826 = vmatpush1.msra.mxu0 %v645
        %827 = vmatprep.subr.mxu0 0.0
        %828 = vmatpush1.msra.mxu0 %v646
        %829 = vmatprep.subr.mxu0 0.0
        %830 = vmatpush1.msra.mxu0 %v647
        %831 = vmatprep.subr.mxu0 0.0
        %832 = vmatpush1.msra.mxu0 0.0
        %833 = vmatprep.subr.mxu0 0.0
        %834 = vmatpush1.msra.mxu0 0.0
        %835 = vmatprep.subr.mxu0 0.0
        %836 = vmatpush1.msra.mxu0 0.0
        %837 = vmatprep.subr.mxu0 0.0
        %838 = vmatpush1.msra.mxu0 0.0
        %839 = vmatprep.subr.mxu0 0.0
        %840 = vmatpush1.msra.mxu0 0.0
        %841 = vmatprep.subr.mxu0 0.0
        %842 = vmatpush1.msra.mxu0 0.0
        %843 = vmatprep.subr.mxu0 0.0
        %844 = vmatpush1.msra.mxu0 0.0
        %845 = vmatprep.subr.mxu0 0.0
        %846 = vmatpush1.msra.mxu0 0.0
        %847 = vmatprep.subr.mxu0 0.0
        %848 = vmatpush1.msra.mxu0 0.0
        %849 = vmatprep.subr.mxu0 0.0
        %850 = vmatpush1.msra.mxu0 0.0
        %851 = vmatprep.subr.mxu0 0.0
        %852 = vmatpush1.msra.mxu0 0.0
        %853 = vmatprep.subr.mxu0 0.0
        %854 = vmatpush1.msra.mxu0 0.0
        %855 = vmatprep.subr.mxu0 0.0
        %856 = vmatpush1.msra.mxu0 0.0
        %857 = vmatprep.subr.mxu0 0.0
        %858 = vmatpush1.msra.mxu0 0.0
        %859 = vmatprep.subr.mxu0 0.0
        %860 = vmatpush1.msra.mxu0 0.0
        %861 = vmatprep.subr.mxu0 0.0
        %862 = vmatpush1.msra.mxu0 0.0
        %863 = vmatprep.subr.mxu0 0.0
        %864 = vmatpush1.msra.mxu0 0.0
        %865 = vmatprep.subr.mxu0 0.0
        %866 = vmatpush1.msra.mxu0 0.0
        %867 = vmatprep.subr.mxu0 0.0
        %868 = vmatpush1.msra.mxu0 0.0
        %869 = vmatprep.subr.mxu0 0.0
        %870 = vmatpush1.msra.mxu0 0.0
        %871 = vmatprep.subr.mxu0 0.0
        %872 = vmatpush1.msra.mxu0 0.0
        %873 = vmatprep.subr.mxu0 0.0
        %874 = vmatpush1.msra.mxu0 0.0
        %875 = vmatprep.subr.mxu0 0.0
        %876 = vmatpush1.msra.mxu0 0.0
        %877 = vmatprep.subr.mxu0 0.0
        %878 = vmatpush1.msra.mxu0 0.0
        %879 = vmatprep.subr.mxu0 0.0
        %880 = vmatpush1.msra.mxu0 0.0
        %881 = vmatprep.subr.mxu0 0.0
        %882 = vmatpush1.msra.mxu0 0.0
        %883 = vmatprep.subr.mxu0 0.0
        %884 = vmatpush1.msra.mxu0 0.0
        %885 = vmatprep.subr.mxu0 0.0
        %886 = vmatpush1.msra.mxu0 0.0
        %887 = vmatprep.mubr.f32.mxu0 0.0
        %888 = vmatmul.mubr.f32.gmra.mrb[0].mxu0 %v681
        %v889 = vpop.f32.mrb[0].mxu0
        %v890 = vadd.f32 %v671, %v889
        %v891 = vpop.f32.mrb[0].mxu0
        %892 = vdwg.mxu0
        %893 = vmatprep.subr.mxu0 0.0
        %894 = vmatpush1.msra.mxu0 %v648
        %895 = vmatprep.subr.mxu0 0.0
        %896 = vmatpush1.msra.mxu0 %v649
        %897 = vmatprep.subr.mxu0 0.0
        %898 = vmatpush1.msra.mxu0 %v650
        %899 = vmatprep.subr.mxu0 0.0
        %900 = vmatpush1.msra.mxu0 %v651
        %901 = vmatprep.subr.mxu0 0.0
        %902 = vmatpush1.msra.mxu0 0.0
        %903 = vmatprep.subr.mxu0 0.0
        %904 = vmatpush1.msra.mxu0 0.0
        %905 = vmatprep.subr.mxu0 0.0
        %906 = vmatpush1.msra.mxu0 0.0
        %907 = vmatprep.subr.mxu0 0.0
        %908 = vmatpush1.msra.mxu0 0.0
        %909 = vmatprep.subr.mxu0 0.0
        %910 = vmatpush1.msra.mxu0 0.0
        %911 = vmatprep.subr.mxu0 0.0
        %912 = vmatpush1.msra.mxu0 0.0
        %913 = vmatprep.subr.mxu0 0.0
        %914 = vmatpush1.msra.mxu0 0.0
        %915 = vmatprep.subr.mxu0 0.0
        %916 = vmatpush1.msra.mxu0 0.0
        %917 = vmatprep.subr.mxu0 0.0
        %918 = vmatpush1.msra.mxu0 0.0
        %919 = vmatprep.subr.mxu0 0.0
        %920 = vmatpush1.msra.mxu0 0.0
        %921 = vmatprep.subr.mxu0 0.0
        %922 = vmatpush1.msra.mxu0 0.0
        %923 = vmatprep.subr.mxu0 0.0
        %924 = vmatpush1.msra.mxu0 0.0
        %925 = vmatprep.subr.mxu0 0.0
        %926 = vmatpush1.msra.mxu0 0.0
        %927 = vmatprep.subr.mxu0 0.0
        %928 = vmatpush1.msra.mxu0 0.0
        %929 = vmatprep.subr.mxu0 0.0
        %930 = vmatpush1.msra.mxu0 0.0
        %931 = vmatprep.subr.mxu0 0.0
        %932 = vmatpush1.msra.mxu0 0.0
        %933 = vmatprep.subr.mxu0 0.0
        %934 = vmatpush1.msra.mxu0 0.0
        %935 = vmatprep.subr.mxu0 0.0
        %936 = vmatpush1.msra.mxu0 0.0
        %937 = vmatprep.subr.mxu0 0.0
        %938 = vmatpush1.msra.mxu0 0.0
        %939 = vmatprep.subr.mxu0 0.0
        %940 = vmatpush1.msra.mxu0 0.0
        %941 = vmatprep.subr.mxu0 0.0
        %942 = vmatpush1.msra.mxu0 0.0
        %943 = vmatprep.subr.mxu0 0.0
        %944 = vmatpush1.msra.mxu0 0.0
        %945 = vmatprep.subr.mxu0 0.0
        %946 = vmatpush1.msra.mxu0 0.0
        %947 = vmatprep.subr.mxu0 0.0
        %948 = vmatpush1.msra.mxu0 0.0
        %949 = vmatprep.subr.mxu0 0.0
        %950 = vmatpush1.msra.mxu0 0.0
        %951 = vmatprep.subr.mxu0 0.0
        %952 = vmatpush1.msra.mxu0 0.0
        %953 = vmatprep.subr.mxu0 0.0
        %954 = vmatpush1.msra.mxu0 0.0
        %955 = vmatprep.subr.mxu0 0.0
        %956 = vmatpush1.msra.mxu0 0.0
        %957 = vmatprep.mubr.f32.mxu0 0.0
        %958 = vmatmul.mubr.f32.gmra.mrb[0].mxu0 %v681
        %v959 = vpop.f32.mrb[0].mxu0
        %v960 = vadd.f32 %v675, %v959
        %v961 = vpop.f32.mrb[0].mxu0
        %962 = vdwg.mxu0
        %v963 = vmul.f32 %v750, %v608
        %v964 = vmul.f32 %v820, %v608
        %v965 = vmul.f32 %v890, %v608
        %v966 = vmul.f32 %v960, %v608
        %vm967 = vcmask 64512
        %v969 = vsel %vm967, %v750, 0
        %971 = vmatprep.subr.mxu0 0.0
        %972 = vmatpush1.msra.mxu0 %v610
        %973 = vmatprep.subr.mxu0 0.0
        %974 = vmatpush1.msra.mxu0 0.0
        %975 = vmatprep.subr.mxu0 0.0
        %976 = vmatpush1.msra.mxu0 0.0
        %977 = vmatprep.subr.mxu0 0.0
        %978 = vmatpush1.msra.mxu0 0.0
        %979 = vmatprep.subr.mxu0 0.0
        %980 = vmatpush1.msra.mxu0 0.0
        %981 = vmatprep.subr.mxu0 0.0
        %982 = vmatpush1.msra.mxu0 0.0
        %983 = vmatprep.subr.mxu0 0.0
        %984 = vmatpush1.msra.mxu0 0.0
        %985 = vmatprep.subr.mxu0 0.0
        %986 = vmatpush1.msra.mxu0 0.0
        %987 = vmatprep.subr.mxu0 0.0
        %988 = vmatpush1.msra.mxu0 0.0
        %989 = vmatprep.subr.mxu0 0.0
        %990 = vmatpush1.msra.mxu0 0.0
        %991 = vmatprep.subr.mxu0 0.0
        %992 = vmatpush1.msra.mxu0 0.0
        %993 = vmatprep.subr.mxu0 0.0
        %994 = vmatpush1.msra.mxu0 0.0
        %995 = vmatprep.subr.mxu0 0.0
        %996 = vmatpush1.msra.mxu0 0.0
        %997 = vmatprep.subr.mxu0 0.0
        %998 = vmatpush1.msra.mxu0 0.0
        %999 = vmatprep.subr.mxu0 0.0
        %1000 = vmatpush1.msra.mxu0 0.0
        %1001 = vmatprep.subr.mxu0 0.0
        %1002 = vmatpush1.msra.mxu0 0.0
        %1003 = vmatprep.subr.mxu0 0.0
        %1004 = vmatpush1.msra.mxu0 0.0
        %1005 = vmatprep.subr.mxu0 0.0
        %1006 = vmatpush1.msra.mxu0 0.0
        %1007 = vmatprep.subr.mxu0 0.0
        %1008 = vmatpush1.msra.mxu0 0.0
        %1009 = vmatprep.subr.mxu0 0.0
        %1010 = vmatpush1.msra.mxu0 0.0
        %1011 = vmatprep.subr.mxu0 0.0
        %1012 = vmatpush1.msra.mxu0 0.0
        %1013 = vmatprep.subr.mxu0 0.0
        %1014 = vmatpush1.msra.mxu0 0.0
        %1015 = vmatprep.subr.mxu0 0.0
        %1016 = vmatpush1.msra.mxu0 0.0
        %1017 = vmatprep.subr.mxu0 0.0
        %1018 = vmatpush1.msra.mxu0 0.0
        %1019 = vmatprep.subr.mxu0 0.0
        %1020 = vmatpush1.msra.mxu0 0.0
        %1021 = vmatprep.subr.mxu0 0.0
        %1022 = vmatpush1.msra.mxu0 0.0
        %1023 = vmatprep.subr.mxu0 0.0
        %1024 = vmatpush1.msra.mxu0 0.0
        %1025 = vmatprep.subr.mxu0 0.0
        %1026 = vmatpush1.msra.mxu0 0.0
        %1027 = vmatprep.subr.mxu0 0.0
        %1028 = vmatpush1.msra.mxu0 0.0
        %1029 = vmatprep.subr.mxu0 0.0
        %1030 = vmatpush1.msra.mxu0 0.0
        %1031 = vmatprep.subr.mxu0 0.0
        %1032 = vmatpush1.msra.mxu0 0.0
        %1033 = vmatprep.subr.mxu0 0.0
        %1034 = vmatpush1.msra.mxu0 0.0
        %1035 = vmatprep.mubr.f32.mxu0 0.0
        %1036 = vmatmul.mubr.f32.gmra.mrb[0].mxu0 %v969
        %v1037 = vpop.f32.mrb[0].mxu0
        %v1038 = vadd.f32 0.0, %v1037
        %v1039 = vpop.f32.mrb[0].mxu0
        %1040 = vdwg.mxu0
        %v1042 = vsel %vm967, %v820, 0
        %1044 = vmatprep.subr.mxu0 0.0
        %1045 = vmatpush1.msra.mxu0 %v611
        %1046 = vmatprep.subr.mxu0 0.0
        %1047 = vmatpush1.msra.mxu0 0.0
        %1048 = vmatprep.subr.mxu0 0.0
        %1049 = vmatpush1.msra.mxu0 0.0
        %1050 = vmatprep.subr.mxu0 0.0
        %1051 = vmatpush1.msra.mxu0 0.0
        %1052 = vmatprep.subr.mxu0 0.0
        %1053 = vmatpush1.msra.mxu0 0.0
        %1054 = vmatprep.subr.mxu0 0.0
        %1055 = vmatpush1.msra.mxu0 0.0
        %1056 = vmatprep.subr.mxu0 0.0
        %1057 = vmatpush1.msra.mxu0 0.0
        %1058 = vmatprep.subr.mxu0 0.0
        %1059 = vmatpush1.msra.mxu0 0.0
        %1060 = vmatprep.subr.mxu0 0.0
        %1061 = vmatpush1.msra.mxu0 0.0
        %1062 = vmatprep.subr.mxu0 0.0
        %1063 = vmatpush1.msra.mxu0 0.0
        %1064 = vmatprep.subr.mxu0 0.0
        %1065 = vmatpush1.msra.mxu0 0.0
        %1066 = vmatprep.subr.mxu0 0.0
        %1067 = vmatpush1.msra.mxu0 0.0
        %1068 = vmatprep.subr.mxu0 0.0
        %1069 = vmatpush1.msra.mxu0 0.0
        %1070 = vmatprep.subr.mxu0 0.0
        %1071 = vmatpush1.msra.mxu0 0.0
        %1072 = vmatprep.subr.mxu0 0.0
        %1073 = vmatpush1.msra.mxu0 0.0
        %1074 = vmatprep.subr.mxu0 0.0
        %1075 = vmatpush1.msra.mxu0 0.0
        %1076 = vmatprep.subr.mxu0 0.0
        %1077 = vmatpush1.msra.mxu0 0.0
        %1078 = vmatprep.subr.mxu0 0.0
        %1079 = vmatpush1.msra.mxu0 0.0
        %1080 = vmatprep.subr.mxu0 0.0
        %1081 = vmatpush1.msra.mxu0 0.0
        %1082 = vmatprep.subr.mxu0 0.0
        %1083 = vmatpush1.msra.mxu0 0.0
        %1084 = vmatprep.subr.mxu0 0.0
        %1085 = vmatpush1.msra.mxu0 0.0
        %1086 = vmatprep.subr.mxu0 0.0
        %1087 = vmatpush1.msra.mxu0 0.0
        %1088 = vmatprep.subr.mxu0 0.0
        %1089 = vmatpush1.msra.mxu0 0.0
        %1090 = vmatprep.subr.mxu0 0.0
        %1091 = vmatpush1.msra.mxu0 0.0
        %1092 = vmatprep.subr.mxu0 0.0
        %1093 = vmatpush1.msra.mxu0 0.0
        %1094 = vmatprep.subr.mxu0 0.0
        %1095 = vmatpush1.msra.mxu0 0.0
        %1096 = vmatprep.subr.mxu0 0.0
        %1097 = vmatpush1.msra.mxu0 0.0
        %1098 = vmatprep.subr.mxu0 0.0
        %1099 = vmatpush1.msra.mxu0 0.0
        %1100 = vmatprep.subr.mxu0 0.0
        %1101 = vmatpush1.msra.mxu0 0.0
        %1102 = vmatprep.subr.mxu0 0.0
        %1103 = vmatpush1.msra.mxu0 0.0
        %1104 = vmatprep.subr.mxu0 0.0
        %1105 = vmatpush1.msra.mxu0 0.0
        %1106 = vmatprep.subr.mxu0 0.0
        %1107 = vmatpush1.msra.mxu0 0.0
        %1108 = vmatprep.mubr.f32.mxu0 0.0
        %1109 = vmatmul.mubr.f32.gmra.mrb[0].mxu0 %v1042
        %v1110 = vpop.f32.mrb[0].mxu0
        %v1111 = vadd.f32 0.0, %v1110
        %v1112 = vpop.f32.mrb[0].mxu0
        %1113 = vdwg.mxu0
        %v1115 = vsel %vm967, %v890, 0
        %1117 = vmatprep.subr.mxu0 0.0
        %1118 = vmatpush1.msra.mxu0 %v612
        %1119 = vmatprep.subr.mxu0 0.0
        %1120 = vmatpush1.msra.mxu0 0.0
        %1121 = vmatprep.subr.mxu0 0.0
        %1122 = vmatpush1.msra.mxu0 0.0
        %1123 = vmatprep.subr.mxu0 0.0
        %1124 = vmatpush1.msra.mxu0 0.0
        %1125 = vmatprep.subr.mxu0 0.0
        %1126 = vmatpush1.msra.mxu0 0.0
        %1127 = vmatprep.subr.mxu0 0.0
        %1128 = vmatpush1.msra.mxu0 0.0
        %1129 = vmatprep.subr.mxu0 0.0
        %1130 = vmatpush1.msra.mxu0 0.0
        %1131 = vmatprep.subr.mxu0 0.0
        %1132 = vmatpush1.msra.mxu0 0.0
        %1133 = vmatprep.subr.mxu0 0.0
        %1134 = vmatpush1.msra.mxu0 0.0
        %1135 = vmatprep.subr.mxu0 0.0
        %1136 = vmatpush1.msra.mxu0 0.0
        %1137 = vmatprep.subr.mxu0 0.0
        %1138 = vmatpush1.msra.mxu0 0.0
        %1139 = vmatprep.subr.mxu0 0.0
        %1140 = vmatpush1.msra.mxu0 0.0
        %1141 = vmatprep.subr.mxu0 0.0
        %1142 = vmatpush1.msra.mxu0 0.0
        %1143 = vmatprep.subr.mxu0 0.0
        %1144 = vmatpush1.msra.mxu0 0.0
        %1145 = vmatprep.subr.mxu0 0.0
        %1146 = vmatpush1.msra.mxu0 0.0
        %1147 = vmatprep.subr.mxu0 0.0
        %1148 = vmatpush1.msra.mxu0 0.0
        %1149 = vmatprep.subr.mxu0 0.0
        %1150 = vmatpush1.msra.mxu0 0.0
        %1151 = vmatprep.subr.mxu0 0.0
        %1152 = vmatpush1.msra.mxu0 0.0
        %1153 = vmatprep.subr.mxu0 0.0
        %1154 = vmatpush1.msra.mxu0 0.0
        %1155 = vmatprep.subr.mxu0 0.0
        %1156 = vmatpush1.msra.mxu0 0.0
        %1157 = vmatprep.subr.mxu0 0.0
        %1158 = vmatpush1.msra.mxu0 0.0
        %1159 = vmatprep.subr.mxu0 0.0
        %1160 = vmatpush1.msra.mxu0 0.0
        %1161 = vmatprep.subr.mxu0 0.0
        %1162 = vmatpush1.msra.mxu0 0.0
        %1163 = vmatprep.subr.mxu0 0.0
        %1164 = vmatpush1.msra.mxu0 0.0
        %1165 = vmatprep.subr.mxu0 0.0
        %1166 = vmatpush1.msra.mxu0 0.0
        %1167 = vmatprep.subr.mxu0 0.0
        %1168 = vmatpush1.msra.mxu0 0.0
        %1169 = vmatprep.subr.mxu0 0.0
        %1170 = vmatpush1.msra.mxu0 0.0
        %1171 = vmatprep.subr.mxu0 0.0
        %1172 = vmatpush1.msra.mxu0 0.0
        %1173 = vmatprep.subr.mxu0 0.0
        %1174 = vmatpush1.msra.mxu0 0.0
        %1175 = vmatprep.subr.mxu0 0.0
        %1176 = vmatpush1.msra.mxu0 0.0
        %1177 = vmatprep.subr.mxu0 0.0
        %1178 = vmatpush1.msra.mxu0 0.0
        %1179 = vmatprep.subr.mxu0 0.0
        %1180 = vmatpush1.msra.mxu0 0.0
        %1181 = vmatprep.mubr.f32.mxu0 0.0
        %1182 = vmatmul.mubr.f32.gmra.mrb[0].mxu0 %v1115
        %v1183 = vpop.f32.mrb[0].mxu0
        %v1184 = vadd.f32 0.0, %v1183
        %v1185 = vpop.f32.mrb[0].mxu0
        %1186 = vdwg.mxu0
        %v1188 = vsel %vm967, %v960, 0
        %1190 = vmatprep.subr.mxu0 0.0
        %1191 = vmatpush1.msra.mxu0 %v613
        %1192 = vmatprep.subr.mxu0 0.0
        %1193 = vmatpush1.msra.mxu0 0.0
        %1194 = vmatprep.subr.mxu0 0.0
        %1195 = vmatpush1.msra.mxu0 0.0
        %1196 = vmatprep.subr.mxu0 0.0
        %1197 = vmatpush1.msra.mxu0 0.0
        %1198 = vmatprep.subr.mxu0 0.0
        %1199 = vmatpush1.msra.mxu0 0.0
        %1200 = vmatprep.subr.mxu0 0.0
        %1201 = vmatpush1.msra.mxu0 0.0
        %1202 = vmatprep.subr.mxu0 0.0
        %1203 = vmatpush1.msra.mxu0 0.0
        %1204 = vmatprep.subr.mxu0 0.0
        %1205 = vmatpush1.msra.mxu0 0.0
        %1206 = vmatprep.subr.mxu0 0.0
        %1207 = vmatpush1.msra.mxu0 0.0
        %1208 = vmatprep.subr.mxu0 0.0
        %1209 = vmatpush1.msra.mxu0 0.0
        %1210 = vmatprep.subr.mxu0 0.0
        %1211 = vmatpush1.msra.mxu0 0.0
        %1212 = vmatprep.subr.mxu0 0.0
        %1213 = vmatpush1.msra.mxu0 0.0
        %1214 = vmatprep.subr.mxu0 0.0
        %1215 = vmatpush1.msra.mxu0 0.0
        %1216 = vmatprep.subr.mxu0 0.0
        %1217 = vmatpush1.msra.mxu0 0.0
        %1218 = vmatprep.subr.mxu0 0.0
        %1219 = vmatpush1.msra.mxu0 0.0
        %1220 = vmatprep.subr.mxu0 0.0
        %1221 = vmatpush1.msra.mxu0 0.0
        %1222 = vmatprep.subr.mxu0 0.0
        %1223 = vmatpush1.msra.mxu0 0.0
        %1224 = vmatprep.subr.mxu0 0.0
        %1225 = vmatpush1.msra.mxu0 0.0
        %1226 = vmatprep.subr.mxu0 0.0
        %1227 = vmatpush1.msra.mxu0 0.0
        %1228 = vmatprep.subr.mxu0 0.0
        %1229 = vmatpush1.msra.mxu0 0.0
        %1230 = vmatprep.subr.mxu0 0.0
        %1231 = vmatpush1.msra.mxu0 0.0
        %1232 = vmatprep.subr.mxu0 0.0
        %1233 = vmatpush1.msra.mxu0 0.0
        %1234 = vmatprep.subr.mxu0 0.0
        %1235 = vmatpush1.msra.mxu0 0.0
        %1236 = vmatprep.subr.mxu0 0.0
        %1237 = vmatpush1.msra.mxu0 0.0
        %1238 = vmatprep.subr.mxu0 0.0
        %1239 = vmatpush1.msra.mxu0 0.0
        %1240 = vmatprep.subr.mxu0 0.0
        %1241 = vmatpush1.msra.mxu0 0.0
        %1242 = vmatprep.subr.mxu0 0.0
        %1243 = vmatpush1.msra.mxu0 0.0
        %1244 = vmatprep.subr.mxu0 0.0
        %1245 = vmatpush1.msra.mxu0 0.0
        %1246 = vmatprep.subr.mxu0 0.0
        %1247 = vmatpush1.msra.mxu0 0.0
        %1248 = vmatprep.subr.mxu0 0.0
        %1249 = vmatpush1.msra.mxu0 0.0
        %1250 = vmatprep.subr.mxu0 0.0
        %1251 = vmatpush1.msra.mxu0 0.0
        %1252 = vmatprep.subr.mxu0 0.0
        %1253 = vmatpush1.msra.mxu0 0.0
        %1254 = vmatprep.mubr.f32.mxu0 0.0
        %1255 = vmatmul.mubr.f32.gmra.mrb[0].mxu0 %v1188
        %v1256 = vpop.f32.mrb[0].mxu0
        %v1257 = vadd.f32 0.0, %v1256
        %v1258 = vpop.f32.mrb[0].mxu0
        %1259 = vdwg.mxu0
        %v1260 = vmul.f32 %v1038, %v609
        %v1261 = vmul.f32 %v1111, %v609
        %v1262 = vmul.f32 %v1184, %v609
        %v1263 = vmul.f32 %v1257, %v609
        %v1264 = vadd.f32 %v963, %v1260
        %v1265 = vadd.f32 %v964, %v1261
        %v1266 = vadd.f32 %v965, %v1262
        %v1267 = vadd.f32 %v966, %v1263
        %1269 = vrot.lane.b32.xlu0 %v608, 8
        %v1270 = vpop.permute.xlu0 %1269
        %v1272 = vmul.f32 %v750, %v1270
        %v1273 = vmul.f32 %v820, %v1270
        %v1274 = vmul.f32 %v890, %v1270
        %v1275 = vmul.f32 %v960, %v1270
        %1276 = vrot.lane.b32.xlu0 %v750, 120
        %v1277 = vpop.permute.xlu0 %1276
        %v1278 = vsel %vm967, %v1277, 0
        %1280 = vmatprep.subr.mxu0 0.0
        %1281 = vmatpush1.msra.mxu0 %v610
        %1282 = vmatprep.subr.mxu0 0.0
        %1283 = vmatpush1.msra.mxu0 0.0
        %1284 = vmatprep.subr.mxu0 0.0
        %1285 = vmatpush1.msra.mxu0 0.0
        %1286 = vmatprep.subr.mxu0 0.0
        %1287 = vmatpush1.msra.mxu0 0.0
        %1288 = vmatprep.subr.mxu0 0.0
        %1289 = vmatpush1.msra.mxu0 0.0
        %1290 = vmatprep.subr.mxu0 0.0
        %1291 = vmatpush1.msra.mxu0 0.0
        %1292 = vmatprep.subr.mxu0 0.0
        %1293 = vmatpush1.msra.mxu0 0.0
        %1294 = vmatprep.subr.mxu0 0.0
        %1295 = vmatpush1.msra.mxu0 0.0
        %1296 = vmatprep.subr.mxu0 0.0
        %1297 = vmatpush1.msra.mxu0 0.0
        %1298 = vmatprep.subr.mxu0 0.0
        %1299 = vmatpush1.msra.mxu0 0.0
        %1300 = vmatprep.subr.mxu0 0.0
        %1301 = vmatpush1.msra.mxu0 0.0
        %1302 = vmatprep.subr.mxu0 0.0
        %1303 = vmatpush1.msra.mxu0 0.0
        %1304 = vmatprep.subr.mxu0 0.0
        %1305 = vmatpush1.msra.mxu0 0.0
        %1306 = vmatprep.subr.mxu0 0.0
        %1307 = vmatpush1.msra.mxu0 0.0
        %1308 = vmatprep.subr.mxu0 0.0
        %1309 = vmatpush1.msra.mxu0 0.0
        %1310 = vmatprep.subr.mxu0 0.0
        %1311 = vmatpush1.msra.mxu0 0.0
        %1312 = vmatprep.subr.mxu0 0.0
        %1313 = vmatpush1.msra.mxu0 0.0
        %1314 = vmatprep.subr.mxu0 0.0
        %1315 = vmatpush1.msra.mxu0 0.0
        %1316 = vmatprep.subr.mxu0 0.0
        %1317 = vmatpush1.msra.mxu0 0.0
        %1318 = vmatprep.subr.mxu0 0.0
        %1319 = vmatpush1.msra.mxu0 0.0
        %1320 = vmatprep.subr.mxu0 0.0
        %1321 = vmatpush1.msra.mxu0 0.0
        %1322 = vmatprep.subr.mxu0 0.0
        %1323 = vmatpush1.msra.mxu0 0.0
        %1324 = vmatprep.subr.mxu0 0.0
        %1325 = vmatpush1.msra.mxu0 0.0
        %1326 = vmatprep.subr.mxu0 0.0
        %1327 = vmatpush1.msra.mxu0 0.0
        %1328 = vmatprep.subr.mxu0 0.0
        %1329 = vmatpush1.msra.mxu0 0.0
        %1330 = vmatprep.subr.mxu0 0.0
        %1331 = vmatpush1.msra.mxu0 0.0
        %1332 = vmatprep.subr.mxu0 0.0
        %1333 = vmatpush1.msra.mxu0 0.0
        %1334 = vmatprep.subr.mxu0 0.0
        %1335 = vmatpush1.msra.mxu0 0.0
        %1336 = vmatprep.subr.mxu0 0.0
        %1337 = vmatpush1.msra.mxu0 0.0
        %1338 = vmatprep.subr.mxu0 0.0
        %1339 = vmatpush1.msra.mxu0 0.0
        %1340 = vmatprep.subr.mxu0 0.0
        %1341 = vmatpush1.msra.mxu0 0.0
        %1342 = vmatprep.subr.mxu0 0.0
        %1343 = vmatpush1.msra.mxu0 0.0
        %1344 = vmatprep.mubr.f32.mxu0 0.0
        %1345 = vmatmul.mubr.f32.gmra.mrb[0].mxu0 %v1278
        %v1346 = vpop.f32.mrb[0].mxu0
        %v1347 = vadd.f32 0.0, %v1346
        %v1348 = vpop.f32.mrb[0].mxu0
        %1349 = vdwg.mxu0
        %1350 = vrot.lane.b32.xlu0 %v820, 120
        %v1351 = vpop.permute.xlu0 %1350
        %v1352 = vsel %vm967, %v1351, 0
        %1354 = vmatprep.subr.mxu0 0.0
        %1355 = vmatpush1.msra.mxu0 %v611
        %1356 = vmatprep.subr.mxu0 0.0
        %1357 = vmatpush1.msra.mxu0 0.0
        %1358 = vmatprep.subr.mxu0 0.0
        %1359 = vmatpush1.msra.mxu0 0.0
        %1360 = vmatprep.subr.mxu0 0.0
        %1361 = vmatpush1.msra.mxu0 0.0
        %1362 = vmatprep.subr.mxu0 0.0
        %1363 = vmatpush1.msra.mxu0 0.0
        %1364 = vmatprep.subr.mxu0 0.0
        %1365 = vmatpush1.msra.mxu0 0.0
        %1366 = vmatprep.subr.mxu0 0.0
        %1367 = vmatpush1.msra.mxu0 0.0
        %1368 = vmatprep.subr.mxu0 0.0
        %1369 = vmatpush1.msra.mxu0 0.0
        %1370 = vmatprep.subr.mxu0 0.0
        %1371 = vmatpush1.msra.mxu0 0.0
        %1372 = vmatprep.subr.mxu0 0.0
        %1373 = vmatpush1.msra.mxu0 0.0
        %1374 = vmatprep.subr.mxu0 0.0
        %1375 = vmatpush1.msra.mxu0 0.0
        %1376 = vmatprep.subr.mxu0 0.0
        %1377 = vmatpush1.msra.mxu0 0.0
        %1378 = vmatprep.subr.mxu0 0.0
        %1379 = vmatpush1.msra.mxu0 0.0
        %1380 = vmatprep.subr.mxu0 0.0
        %1381 = vmatpush1.msra.mxu0 0.0
        %1382 = vmatprep.subr.mxu0 0.0
        %1383 = vmatpush1.msra.mxu0 0.0
        %1384 = vmatprep.subr.mxu0 0.0
        %1385 = vmatpush1.msra.mxu0 0.0
        %1386 = vmatprep.subr.mxu0 0.0
        %1387 = vmatpush1.msra.mxu0 0.0
        %1388 = vmatprep.subr.mxu0 0.0
        %1389 = vmatpush1.msra.mxu0 0.0
        %1390 = vmatprep.subr.mxu0 0.0
        %1391 = vmatpush1.msra.mxu0 0.0
        %1392 = vmatprep.subr.mxu0 0.0
        %1393 = vmatpush1.msra.mxu0 0.0
        %1394 = vmatprep.subr.mxu0 0.0
        %1395 = vmatpush1.msra.mxu0 0.0
        %1396 = vmatprep.subr.mxu0 0.0
        %1397 = vmatpush1.msra.mxu0 0.0
        %1398 = vmatprep.subr.mxu0 0.0
        %1399 = vmatpush1.msra.mxu0 0.0
        %1400 = vmatprep.subr.mxu0 0.0
        %1401 = vmatpush1.msra.mxu0 0.0
        %1402 = vmatprep.subr.mxu0 0.0
        %1403 = vmatpush1.msra.mxu0 0.0
        %1404 = vmatprep.subr.mxu0 0.0
        %1405 = vmatpush1.msra.mxu0 0.0
        %1406 = vmatprep.subr.mxu0 0.0
        %1407 = vmatpush1.msra.mxu0 0.0
        %1408 = vmatprep.subr.mxu0 0.0
        %1409 = vmatpush1.msra.mxu0 0.0
        %1410 = vmatprep.subr.mxu0 0.0
        %1411 = vmatpush1.msra.mxu0 0.0
        %1412 = vmatprep.subr.mxu0 0.0
        %1413 = vmatpush1.msra.mxu0 0.0
        %1414 = vmatprep.subr.mxu0 0.0
        %1415 = vmatpush1.msra.mxu0 0.0
        %1416 = vmatprep.subr.mxu0 0.0
        %1417 = vmatpush1.msra.mxu0 0.0
        %1418 = vmatprep.mubr.f32.mxu0 0.0
        %1419 = vmatmul.mubr.f32.gmra.mrb[0].mxu0 %v1352
        %v1420 = vpop.f32.mrb[0].mxu0
        %v1421 = vadd.f32 0.0, %v1420
        %v1422 = vpop.f32.mrb[0].mxu0
        %1423 = vdwg.mxu0
        %1424 = vrot.lane.b32.xlu0 %v890, 120
        %v1425 = vpop.permute.xlu0 %1424
        %v1426 = vsel %vm967, %v1425, 0
        %1428 = vmatprep.subr.mxu0 0.0
        %1429 = vmatpush1.msra.mxu0 %v612
        %1430 = vmatprep.subr.mxu0 0.0
        %1431 = vmatpush1.msra.mxu0 0.0
        %1432 = vmatprep.subr.mxu0 0.0
        %1433 = vmatpush1.msra.mxu0 0.0
        %1434 = vmatprep.subr.mxu0 0.0
        %1435 = vmatpush1.msra.mxu0 0.0
        %1436 = vmatprep.subr.mxu0 0.0
        %1437 = vmatpush1.msra.mxu0 0.0
        %1438 = vmatprep.subr.mxu0 0.0
        %1439 = vmatpush1.msra.mxu0 0.0
        %1440 = vmatprep.subr.mxu0 0.0
        %1441 = vmatpush1.msra.mxu0 0.0
        %1442 = vmatprep.subr.mxu0 0.0
        %1443 = vmatpush1.msra.mxu0 0.0
        %1444 = vmatprep.subr.mxu0 0.0
        %1445 = vmatpush1.msra.mxu0 0.0
        %1446 = vmatprep.subr.mxu0 0.0
        %1447 = vmatpush1.msra.mxu0 0.0
        %1448 = vmatprep.subr.mxu0 0.0
        %1449 = vmatpush1.msra.mxu0 0.0
        %1450 = vmatprep.subr.mxu0 0.0
        %1451 = vmatpush1.msra.mxu0 0.0
        %1452 = vmatprep.subr.mxu0 0.0
        %1453 = vmatpush1.msra.mxu0 0.0
        %1454 = vmatprep.subr.mxu0 0.0
        %1455 = vmatpush1.msra.mxu0 0.0
        %1456 = vmatprep.subr.mxu0 0.0
        %1457 = vmatpush1.msra.mxu0 0.0
        %1458 = vmatprep.subr.mxu0 0.0
        %1459 = vmatpush1.msra.mxu0 0.0
        %1460 = vmatprep.subr.mxu0 0.0
        %1461 = vmatpush1.msra.mxu0 0.0
        %1462 = vmatprep.subr.mxu0 0.0
        %1463 = vmatpush1.msra.mxu0 0.0
        %1464 = vmatprep.subr.mxu0 0.0
        %1465 = vmatpush1.msra.mxu0 0.0
        %1466 = vmatprep.subr.mxu0 0.0
        %1467 = vmatpush1.msra.mxu0 0.0
        %1468 = vmatprep.subr.mxu0 0.0
        %1469 = vmatpush1.msra.mxu0 0.0
        %1470 = vmatprep.subr.mxu0 0.0
        %1471 = vmatpush1.msra.mxu0 0.0
        %1472 = vmatprep.subr.mxu0 0.0
        %1473 = vmatpush1.msra.mxu0 0.0
        %1474 = vmatprep.subr.mxu0 0.0
        %1475 = vmatpush1.msra.mxu0 0.0
        %1476 = vmatprep.subr.mxu0 0.0
        %1477 = vmatpush1.msra.mxu0 0.0
        %1478 = vmatprep.subr.mxu0 0.0
        %1479 = vmatpush1.msra.mxu0 0.0
        %1480 = vmatprep.subr.mxu0 0.0
        %1481 = vmatpush1.msra.mxu0 0.0
        %1482 = vmatprep.subr.mxu0 0.0
        %1483 = vmatpush1.msra.mxu0 0.0
        %1484 = vmatprep.subr.mxu0 0.0
        %1485 = vmatpush1.msra.mxu0 0.0
        %1486 = vmatprep.subr.mxu0 0.0
        %1487 = vmatpush1.msra.mxu0 0.0
        %1488 = vmatprep.subr.mxu0 0.0
        %1489 = vmatpush1.msra.mxu0 0.0
        %1490 = vmatprep.subr.mxu0 0.0
        %1491 = vmatpush1.msra.mxu0 0.0
        %1492 = vmatprep.mubr.f32.mxu0 0.0
        %1493 = vmatmul.mubr.f32.gmra.mrb[0].mxu0 %v1426
        %v1494 = vpop.f32.mrb[0].mxu0
        %v1495 = vadd.f32 0.0, %v1494
        %v1496 = vpop.f32.mrb[0].mxu0
        %1497 = vdwg.mxu0
        %1498 = vrot.lane.b32.xlu0 %v960, 120
        %v1499 = vpop.permute.xlu0 %1498
        %v1500 = vsel %vm967, %v1499, 0
        %1502 = vmatprep.subr.mxu0 0.0
        %1503 = vmatpush1.msra.mxu0 %v613
        %1504 = vmatprep.subr.mxu0 0.0
        %1505 = vmatpush1.msra.mxu0 0.0
        %1506 = vmatprep.subr.mxu0 0.0
        %1507 = vmatpush1.msra.mxu0 0.0
        %1508 = vmatprep.subr.mxu0 0.0
        %1509 = vmatpush1.msra.mxu0 0.0
        %1510 = vmatprep.subr.mxu0 0.0
        %1511 = vmatpush1.msra.mxu0 0.0
        %1512 = vmatprep.subr.mxu0 0.0
        %1513 = vmatpush1.msra.mxu0 0.0
        %1514 = vmatprep.subr.mxu0 0.0
        %1515 = vmatpush1.msra.mxu0 0.0
        %1516 = vmatprep.subr.mxu0 0.0
        %1517 = vmatpush1.msra.mxu0 0.0
        %1518 = vmatprep.subr.mxu0 0.0
        %1519 = vmatpush1.msra.mxu0 0.0
        %1520 = vmatprep.subr.mxu0 0.0
        %1521 = vmatpush1.msra.mxu0 0.0
        %1522 = vmatprep.subr.mxu0 0.0
        %1523 = vmatpush1.msra.mxu0 0.0
        %1524 = vmatprep.subr.mxu0 0.0
        %1525 = vmatpush1.msra.mxu0 0.0
        %1526 = vmatprep.subr.mxu0 0.0
        %1527 = vmatpush1.msra.mxu0 0.0
        %1528 = vmatprep.subr.mxu0 0.0
        %1529 = vmatpush1.msra.mxu0 0.0
        %1530 = vmatprep.subr.mxu0 0.0
        %1531 = vmatpush1.msra.mxu0 0.0
        %1532 = vmatprep.subr.mxu0 0.0
        %1533 = vmatpush1.msra.mxu0 0.0
        %1534 = vmatprep.subr.mxu0 0.0
        %1535 = vmatpush1.msra.mxu0 0.0
        %1536 = vmatprep.subr.mxu0 0.0
        %1537 = vmatpush1.msra.mxu0 0.0
        %1538 = vmatprep.subr.mxu0 0.0
        %1539 = vmatpush1.msra.mxu0 0.0
        %1540 = vmatprep.subr.mxu0 0.0
        %1541 = vmatpush1.msra.mxu0 0.0
        %1542 = vmatprep.subr.mxu0 0.0
        %1543 = vmatpush1.msra.mxu0 0.0
        %1544 = vmatprep.subr.mxu0 0.0
        %1545 = vmatpush1.msra.mxu0 0.0
        %1546 = vmatprep.subr.mxu0 0.0
        %1547 = vmatpush1.msra.mxu0 0.0
        %1548 = vmatprep.subr.mxu0 0.0
        %1549 = vmatpush1.msra.mxu0 0.0
        %1550 = vmatprep.subr.mxu0 0.0
        %1551 = vmatpush1.msra.mxu0 0.0
        %1552 = vmatprep.subr.mxu0 0.0
        %1553 = vmatpush1.msra.mxu0 0.0
        %1554 = vmatprep.subr.mxu0 0.0
        %1555 = vmatpush1.msra.mxu0 0.0
        %1556 = vmatprep.subr.mxu0 0.0
        %1557 = vmatpush1.msra.mxu0 0.0
        %1558 = vmatprep.subr.mxu0 0.0
        %1559 = vmatpush1.msra.mxu0 0.0
        %1560 = vmatprep.subr.mxu0 0.0
        %1561 = vmatpush1.msra.mxu0 0.0
        %1562 = vmatprep.subr.mxu0 0.0
        %1563 = vmatpush1.msra.mxu0 0.0
        %1564 = vmatprep.subr.mxu0 0.0
        %1565 = vmatpush1.msra.mxu0 0.0
        %1566 = vmatprep.mubr.f32.mxu0 0.0
        %1567 = vmatmul.mubr.f32.gmra.mrb[0].mxu0 %v1500
        %v1568 = vpop.f32.mrb[0].mxu0
        %v1569 = vadd.f32 0.0, %v1568
        %v1570 = vpop.f32.mrb[0].mxu0
        %1571 = vdwg.mxu0
        %v1572 = vmul.f32 %v1347, %v609
        %v1573 = vmul.f32 %v1421, %v609
        %v1574 = vmul.f32 %v1495, %v609
        %v1575 = vmul.f32 %v1569, %v609
        %1580 = vrot.lane.b32.xlu0 %v1572, 8
        %v1581 = vpop.permute.xlu0 %1580
        %1582 = vrot.lane.b32.xlu0 %v1573, 8
        %v1583 = vpop.permute.xlu0 %1582
        %1584 = vrot.lane.b32.xlu0 %v1574, 8
        %v1585 = vpop.permute.xlu0 %1584
        %1586 = vrot.lane.b32.xlu0 %v1575, 8
        %v1587 = vpop.permute.xlu0 %1586
        %v1592 = vadd.f32 %v1272, %v1581
        %v1593 = vadd.f32 %v1273, %v1583
        %v1594 = vadd.f32 %v1274, %v1585
        %v1595 = vadd.f32 %v1275, %v1587
        %1597 = vrot.lane.b32.xlu0 %v1592, 120
        %v1598 = vpop.permute.xlu0 %1597
        %v1600 = vsel %vm967, %v1264, 0
        %v1602 = vsel %vm967, %v1598, 0
        %1604 = vmatprep.subr.mxu0 0.0
        %1605 = vmatpush1.xpose.msra.mxu0 %v1602
        %1606 = vmatprep.subr.mxu0 0.0
        %1607 = vmatpush1.xpose.msra.mxu0 0.0
        %1608 = vmatprep.subr.mxu0 0.0
        %1609 = vmatpush1.xpose.msra.mxu0 0.0
        %1610 = vmatprep.subr.mxu0 0.0
        %1611 = vmatpush1.xpose.msra.mxu0 0.0
        %1612 = vmatprep.subr.mxu0 0.0
        %1613 = vmatpush1.xpose.msra.mxu0 0.0
        %1614 = vmatprep.subr.mxu0 0.0
        %1615 = vmatpush1.xpose.msra.mxu0 0.0
        %1616 = vmatprep.subr.mxu0 0.0
        %1617 = vmatpush1.xpose.msra.mxu0 0.0
        %1618 = vmatprep.subr.mxu0 0.0
        %1619 = vmatpush1.xpose.msra.mxu0 0.0
        %1620 = vmatprep.subr.mxu0 0.0
        %1621 = vmatpush1.xpose.msra.mxu0 0.0
        %1622 = vmatprep.subr.mxu0 0.0
        %1623 = vmatpush1.xpose.msra.mxu0 0.0
        %1624 = vmatprep.subr.mxu0 0.0
        %1625 = vmatpush1.xpose.msra.mxu0 0.0
        %1626 = vmatprep.subr.mxu0 0.0
        %1627 = vmatpush1.xpose.msra.mxu0 0.0
        %1628 = vmatprep.subr.mxu0 0.0
        %1629 = vmatpush1.xpose.msra.mxu0 0.0
        %1630 = vmatprep.subr.mxu0 0.0
        %1631 = vmatpush1.xpose.msra.mxu0 0.0
        %1632 = vmatprep.subr.mxu0 0.0
        %1633 = vmatpush1.xpose.msra.mxu0 0.0
        %1634 = vmatprep.subr.mxu0 0.0
        %1635 = vmatpush1.xpose.msra.mxu0 0.0
        %1636 = vmatprep.subr.mxu0 0.0
        %1637 = vmatpush1.xpose.msra.mxu0 0.0
        %1638 = vmatprep.subr.mxu0 0.0
        %1639 = vmatpush1.xpose.msra.mxu0 0.0
        %1640 = vmatprep.subr.mxu0 0.0
        %1641 = vmatpush1.xpose.msra.mxu0 0.0
        %1642 = vmatprep.subr.mxu0 0.0
        %1643 = vmatpush1.xpose.msra.mxu0 0.0
        %1644 = vmatprep.subr.mxu0 0.0
        %1645 = vmatpush1.xpose.msra.mxu0 0.0
        %1646 = vmatprep.subr.mxu0 0.0
        %1647 = vmatpush1.xpose.msra.mxu0 0.0
        %1648 = vmatprep.subr.mxu0 0.0
        %1649 = vmatpush1.xpose.msra.mxu0 0.0
        %1650 = vmatprep.subr.mxu0 0.0
        %1651 = vmatpush1.xpose.msra.mxu0 0.0
        %1652 = vmatprep.subr.mxu0 0.0
        %1653 = vmatpush1.xpose.msra.mxu0 0.0
        %1654 = vmatprep.subr.mxu0 0.0
        %1655 = vmatpush1.xpose.msra.mxu0 0.0
        %1656 = vmatprep.subr.mxu0 0.0
        %1657 = vmatpush1.xpose.msra.mxu0 0.0
        %1658 = vmatprep.subr.mxu0 0.0
        %1659 = vmatpush1.xpose.msra.mxu0 0.0
        %1660 = vmatprep.subr.mxu0 0.0
        %1661 = vmatpush1.xpose.msra.mxu0 0.0
        %1662 = vmatprep.subr.mxu0 0.0
        %1663 = vmatpush1.xpose.msra.mxu0 0.0
        %1664 = vmatprep.subr.mxu0 0.0
        %1665 = vmatpush1.xpose.msra.mxu0 0.0
        %1666 = vmatprep.subr.mxu0 0.0
        %1667 = vmatpush1.xpose.msra.mxu0 0.0
        %1668 = vmatprep.mubr.f32.mxu0 0.0
        %1669 = vmatmul.mubr.f32.gmra.mrb[0].mxu0 %v1600
        %v1670 = vpop.f32.mrb[0].mxu0
        %v1671 = vadd.f32 0.0, %v1670
        %v1672 = vpop.f32.mrb[0].mxu0
        %1673 = vdwg.mxu0
        %1675 = vrot.lane.b32.xlu0 %v1593, 120
        %v1676 = vpop.permute.xlu0 %1675
        %v1678 = vsel %vm967, %v1265, 0
        %v1680 = vsel %vm967, %v1676, 0
        %1682 = vmatprep.subr.mxu0 0.0
        %1683 = vmatpush1.xpose.msra.mxu0 %v1680
        %1684 = vmatprep.subr.mxu0 0.0
        %1685 = vmatpush1.xpose.msra.mxu0 0.0
        %1686 = vmatprep.subr.mxu0 0.0
        %1687 = vmatpush1.xpose.msra.mxu0 0.0
        %1688 = vmatprep.subr.mxu0 0.0
        %1689 = vmatpush1.xpose.msra.mxu0 0.0
        %1690 = vmatprep.subr.mxu0 0.0
        %1691 = vmatpush1.xpose.msra.mxu0 0.0
        %1692 = vmatprep.subr.mxu0 0.0
        %1693 = vmatpush1.xpose.msra.mxu0 0.0
        %1694 = vmatprep.subr.mxu0 0.0
        %1695 = vmatpush1.xpose.msra.mxu0 0.0
        %1696 = vmatprep.subr.mxu0 0.0
        %1697 = vmatpush1.xpose.msra.mxu0 0.0
        %1698 = vmatprep.subr.mxu0 0.0
        %1699 = vmatpush1.xpose.msra.mxu0 0.0
        %1700 = vmatprep.subr.mxu0 0.0
        %1701 = vmatpush1.xpose.msra.mxu0 0.0
        %1702 = vmatprep.subr.mxu0 0.0
        %1703 = vmatpush1.xpose.msra.mxu0 0.0
        %1704 = vmatprep.subr.mxu0 0.0
        %1705 = vmatpush1.xpose.msra.mxu0 0.0
        %1706 = vmatprep.subr.mxu0 0.0
        %1707 = vmatpush1.xpose.msra.mxu0 0.0
        %1708 = vmatprep.subr.mxu0 0.0
        %1709 = vmatpush1.xpose.msra.mxu0 0.0
        %1710 = vmatprep.subr.mxu0 0.0
        %1711 = vmatpush1.xpose.msra.mxu0 0.0
        %1712 = vmatprep.subr.mxu0 0.0
        %1713 = vmatpush1.xpose.msra.mxu0 0.0
        %1714 = vmatprep.subr.mxu0 0.0
        %1715 = vmatpush1.xpose.msra.mxu0 0.0
        %1716 = vmatprep.subr.mxu0 0.0
        %1717 = vmatpush1.xpose.msra.mxu0 0.0
        %1718 = vmatprep.subr.mxu0 0.0
        %1719 = vmatpush1.xpose.msra.mxu0 0.0
        %1720 = vmatprep.subr.mxu0 0.0
        %1721 = vmatpush1.xpose.msra.mxu0 0.0
        %1722 = vmatprep.subr.mxu0 0.0
        %1723 = vmatpush1.xpose.msra.mxu0 0.0
        %1724 = vmatprep.subr.mxu0 0.0
        %1725 = vmatpush1.xpose.msra.mxu0 0.0
        %1726 = vmatprep.subr.mxu0 0.0
        %1727 = vmatpush1.xpose.msra.mxu0 0.0
        %1728 = vmatprep.subr.mxu0 0.0
        %1729 = vmatpush1.xpose.msra.mxu0 0.0
        %1730 = vmatprep.subr.mxu0 0.0
        %1731 = vmatpush1.xpose.msra.mxu0 0.0
        %1732 = vmatprep.subr.mxu0 0.0
        %1733 = vmatpush1.xpose.msra.mxu0 0.0
        %1734 = vmatprep.subr.mxu0 0.0
        %1735 = vmatpush1.xpose.msra.mxu0 0.0
        %1736 = vmatprep.subr.mxu0 0.0
        %1737 = vmatpush1.xpose.msra.mxu0 0.0
        %1738 = vmatprep.subr.mxu0 0.0
        %1739 = vmatpush1.xpose.msra.mxu0 0.0
        %1740 = vmatprep.subr.mxu0 0.0
        %1741 = vmatpush1.xpose.msra.mxu0 0.0
        %1742 = vmatprep.subr.mxu0 0.0
        %1743 = vmatpush1.xpose.msra.mxu0 0.0
        %1744 = vmatprep.subr.mxu0 0.0
        %1745 = vmatpush1.xpose.msra.mxu0 0.0
        %1746 = vmatprep.mubr.f32.mxu0 0.0
        %1747 = vmatmul.mubr.f32.gmra.mrb[0].mxu0 %v1678
        %v1748 = vpop.f32.mrb[0].mxu0
        %v1749 = vadd.f32 0.0, %v1748
        %v1750 = vpop.f32.mrb[0].mxu0
        %1751 = vdwg.mxu0
        %1753 = vrot.lane.b32.xlu0 %v1594, 120
        %v1754 = vpop.permute.xlu0 %1753
        %v1756 = vsel %vm967, %v1266, 0
        %v1758 = vsel %vm967, %v1754, 0
        %1760 = vmatprep.subr.mxu0 0.0
        %1761 = vmatpush1.xpose.msra.mxu0 %v1758
        %1762 = vmatprep.subr.mxu0 0.0
        %1763 = vmatpush1.xpose.msra.mxu0 0.0
        %1764 = vmatprep.subr.mxu0 0.0
        %1765 = vmatpush1.xpose.msra.mxu0 0.0
        %1766 = vmatprep.subr.mxu0 0.0
        %1767 = vmatpush1.xpose.msra.mxu0 0.0
        %1768 = vmatprep.subr.mxu0 0.0
        %1769 = vmatpush1.xpose.msra.mxu0 0.0
        %1770 = vmatprep.subr.mxu0 0.0
        %1771 = vmatpush1.xpose.msra.mxu0 0.0
        %1772 = vmatprep.subr.mxu0 0.0
        %1773 = vmatpush1.xpose.msra.mxu0 0.0
        %1774 = vmatprep.subr.mxu0 0.0
        %1775 = vmatpush1.xpose.msra.mxu0 0.0
        %1776 = vmatprep.subr.mxu0 0.0
        %1777 = vmatpush1.xpose.msra.mxu0 0.0
        %1778 = vmatprep.subr.mxu0 0.0
        %1779 = vmatpush1.xpose.msra.mxu0 0.0
        %1780 = vmatprep.subr.mxu0 0.0
        %1781 = vmatpush1.xpose.msra.mxu0 0.0
        %1782 = vmatprep.subr.mxu0 0.0
        %1783 = vmatpush1.xpose.msra.mxu0 0.0
        %1784 = vmatprep.subr.mxu0 0.0
        %1785 = vmatpush1.xpose.msra.mxu0 0.0
        %1786 = vmatprep.subr.mxu0 0.0
        %1787 = vmatpush1.xpose.msra.mxu0 0.0
        %1788 = vmatprep.subr.mxu0 0.0
        %1789 = vmatpush1.xpose.msra.mxu0 0.0
        %1790 = vmatprep.subr.mxu0 0.0
        %1791 = vmatpush1.xpose.msra.mxu0 0.0
        %1792 = vmatprep.subr.mxu0 0.0
        %1793 = vmatpush1.xpose.msra.mxu0 0.0
        %1794 = vmatprep.subr.mxu0 0.0
        %1795 = vmatpush1.xpose.msra.mxu0 0.0
        %1796 = vmatprep.subr.mxu0 0.0
        %1797 = vmatpush1.xpose.msra.mxu0 0.0
        %1798 = vmatprep.subr.mxu0 0.0
        %1799 = vmatpush1.xpose.msra.mxu0 0.0
        %1800 = vmatprep.subr.mxu0 0.0
        %1801 = vmatpush1.xpose.msra.mxu0 0.0
        %1802 = vmatprep.subr.mxu0 0.0
        %1803 = vmatpush1.xpose.msra.mxu0 0.0
        %1804 = vmatprep.subr.mxu0 0.0
        %1805 = vmatpush1.xpose.msra.mxu0 0.0
        %1806 = vmatprep.subr.mxu0 0.0
        %1807 = vmatpush1.xpose.msra.mxu0 0.0
        %1808 = vmatprep.subr.mxu0 0.0
        %1809 = vmatpush1.xpose.msra.mxu0 0.0
        %1810 = vmatprep.subr.mxu0 0.0
        %1811 = vmatpush1.xpose.msra.mxu0 0.0
        %1812 = vmatprep.subr.mxu0 0.0
        %1813 = vmatpush1.xpose.msra.mxu0 0.0
        %1814 = vmatprep.subr.mxu0 0.0
        %1815 = vmatpush1.xpose.msra.mxu0 0.0
        %1816 = vmatprep.subr.mxu0 0.0
        %1817 = vmatpush1.xpose.msra.mxu0 0.0
        %1818 = vmatprep.subr.mxu0 0.0
        %1819 = vmatpush1.xpose.msra.mxu0 0.0
        %1820 = vmatprep.subr.mxu0 0.0
        %1821 = vmatpush1.xpose.msra.mxu0 0.0
        %1822 = vmatprep.subr.mxu0 0.0
        %1823 = vmatpush1.xpose.msra.mxu0 0.0
        %1824 = vmatprep.mubr.f32.mxu0 0.0
        %1825 = vmatmul.mubr.f32.gmra.mrb[0].mxu0 %v1756
        %v1826 = vpop.f32.mrb[0].mxu0
        %v1827 = vadd.f32 0.0, %v1826
        %v1828 = vpop.f32.mrb[0].mxu0
        %1829 = vdwg.mxu0
        %1831 = vrot.lane.b32.xlu0 %v1595, 120
        %v1832 = vpop.permute.xlu0 %1831
        %v1834 = vsel %vm967, %v1267, 0
        %v1836 = vsel %vm967, %v1832, 0
        %1838 = vmatprep.subr.mxu0 0.0
        %1839 = vmatpush1.xpose.msra.mxu0 %v1836
        %1840 = vmatprep.subr.mxu0 0.0
        %1841 = vmatpush1.xpose.msra.mxu0 0.0
        %1842 = vmatprep.subr.mxu0 0.0
        %1843 = vmatpush1.xpose.msra.mxu0 0.0
        %1844 = vmatprep.subr.mxu0 0.0
        %1845 = vmatpush1.xpose.msra.mxu0 0.0
        %1846 = vmatprep.subr.mxu0 0.0
        %1847 = vmatpush1.xpose.msra.mxu0 0.0
        %1848 = vmatprep.subr.mxu0 0.0
        %1849 = vmatpush1.xpose.msra.mxu0 0.0
        %1850 = vmatprep.subr.mxu0 0.0
        %1851 = vmatpush1.xpose.msra.mxu0 0.0
        %1852 = vmatprep.subr.mxu0 0.0
        %1853 = vmatpush1.xpose.msra.mxu0 0.0
        %1854 = vmatprep.subr.mxu0 0.0
        %1855 = vmatpush1.xpose.msra.mxu0 0.0
        %1856 = vmatprep.subr.mxu0 0.0
        %1857 = vmatpush1.xpose.msra.mxu0 0.0
        %1858 = vmatprep.subr.mxu0 0.0
        %1859 = vmatpush1.xpose.msra.mxu0 0.0
        %1860 = vmatprep.subr.mxu0 0.0
        %1861 = vmatpush1.xpose.msra.mxu0 0.0
        %1862 = vmatprep.subr.mxu0 0.0
        %1863 = vmatpush1.xpose.msra.mxu0 0.0
        %1864 = vmatprep.subr.mxu0 0.0
        %1865 = vmatpush1.xpose.msra.mxu0 0.0
        %1866 = vmatprep.subr.mxu0 0.0
        %1867 = vmatpush1.xpose.msra.mxu0 0.0
        %1868 = vmatprep.subr.mxu0 0.0
        %1869 = vmatpush1.xpose.msra.mxu0 0.0
        %1870 = vmatprep.subr.mxu0 0.0
        %1871 = vmatpush1.xpose.msra.mxu0 0.0
        %1872 = vmatprep.subr.mxu0 0.0
        %1873 = vmatpush1.xpose.msra.mxu0 0.0
        %1874 = vmatprep.subr.mxu0 0.0
        %1875 = vmatpush1.xpose.msra.mxu0 0.0
        %1876 = vmatprep.subr.mxu0 0.0
        %1877 = vmatpush1.xpose.msra.mxu0 0.0
        %1878 = vmatprep.subr.mxu0 0.0
        %1879 = vmatpush1.xpose.msra.mxu0 0.0
        %1880 = vmatprep.subr.mxu0 0.0
        %1881 = vmatpush1.xpose.msra.mxu0 0.0
        %1882 = vmatprep.subr.mxu0 0.0
        %1883 = vmatpush1.xpose.msra.mxu0 0.0
        %1884 = vmatprep.subr.mxu0 0.0
        %1885 = vmatpush1.xpose.msra.mxu0 0.0
        %1886 = vmatprep.subr.mxu0 0.0
        %1887 = vmatpush1.xpose.msra.mxu0 0.0
        %1888 = vmatprep.subr.mxu0 0.0
        %1889 = vmatpush1.xpose.msra.mxu0 0.0
        %1890 = vmatprep.subr.mxu0 0.0
        %1891 = vmatpush1.xpose.msra.mxu0 0.0
        %1892 = vmatprep.subr.mxu0 0.0
        %1893 = vmatpush1.xpose.msra.mxu0 0.0
        %1894 = vmatprep.subr.mxu0 0.0
        %1895 = vmatpush1.xpose.msra.mxu0 0.0
        %1896 = vmatprep.subr.mxu0 0.0
        %1897 = vmatpush1.xpose.msra.mxu0 0.0
        %1898 = vmatprep.subr.mxu0 0.0
        %1899 = vmatpush1.xpose.msra.mxu0 0.0
        %1900 = vmatprep.subr.mxu0 0.0
        %1901 = vmatpush1.xpose.msra.mxu0 0.0
        %1902 = vmatprep.mubr.f32.mxu0 0.0
        %1903 = vmatmul.mubr.f32.gmra.mrb[0].mxu0 %v1834
        %v1904 = vpop.f32.mrb[0].mxu0
        %v1905 = vadd.f32 0.0, %v1904
        %v1906 = vpop.f32.mrb[0].mxu0
        %1907 = vdwg.mxu0
        %v1908 = vmul.f32 %v1671, 0.35355338
        %v1909 = vmul.f32 %v1749, 0.35355338
        %v1910 = vmul.f32 %v1827, 0.35355338
        %v1911 = vmul.f32 %v1905, 0.35355338
        %v1912 = vadd.f32 %v1908, %v617
        %v1913 = vadd.f32 %v1909, %v617
        %v1914 = vadd.f32 %v1910, %v617
        %v1915 = vadd.f32 %v1911, %v617
        %v1916 = vsel %vm967, %v1912, -inf
        %1917 = vmax.xlane.f32.xlu0 %v1916
        %v1918 = vpop.xlane.xlu0 %1917
        %v1919 = vsel %vm967, %v1913, -inf
        %1920 = vmax.xlane.f32.xlu0 %v1919
        %v1921 = vpop.xlane.xlu0 %1920
        %v1922 = vsel %vm967, %v1914, -inf
        %1923 = vmax.xlane.f32.xlu0 %v1922
        %v1924 = vpop.xlane.xlu0 %1923
        %v1925 = vsel %vm967, %v1915, -inf
        %1926 = vmax.xlane.f32.xlu0 %v1925
        %v1927 = vpop.xlane.xlu0 %1926
        %v1928 = vsub.f32 %v1912, %v1918
        %v1929 = vsub.f32 %v1913, %v1921
        %v1930 = vsub.f32 %v1914, %v1924
        %v1931 = vsub.f32 %v1915, %v1927
        %v1932 = vmul.f32 %v1928, 1.442695
        %v1933 = vpow.pop %v1932
        %v1934 = vmul.f32 %v1929, 1.442695
        %v1935 = vpow.pop %v1934
        %v1936 = vmul.f32 %v1930, 1.442695
        %v1937 = vpow.pop %v1936
        %v1938 = vmul.f32 %v1931, 1.442695
        %v1939 = vpow.pop %v1938
        %v1940 = vsel %vm967, %v1933, 0.0
        %1941 = vadd.xlane.f32.xlu0 %v1940
        %v1942 = vpop.xlane.xlu0 %1941
        %v1943 = vsel %vm967, %v1935, 0.0
        %1944 = vadd.xlane.f32.xlu0 %v1943
        %v1945 = vpop.xlane.xlu0 %1944
        %v1946 = vsel %vm967, %v1937, 0.0
        %1947 = vadd.xlane.f32.xlu0 %v1946
        %v1948 = vpop.xlane.xlu0 %1947
        %v1949 = vsel %vm967, %v1939, 0.0
        %1950 = vadd.xlane.f32.xlu0 %v1949
        %v1951 = vpop.xlane.xlu0 %1950
        %v1952 = vrcp.pop %v1942
        %v1953 = vrcp.pop %v1945
        %v1954 = vrcp.pop %v1948
        %v1955 = vrcp.pop %v1951
        %v1956 = vmul.f32 %v1933, %v1952
        %v1957 = vmul.f32 %v1935, %v1953
        %v1958 = vmul.f32 %v1937, %v1954
        %v1959 = vmul.f32 %v1939, %v1955
        %1960 = vrot.lane.b32.xlu0 %v750, 112
        %v1961 = vpop.permute.xlu0 %1960
        %v1964 = vsel %vm967, %v1956, 0
        %1966 = vmatprep.subr.mxu0 0.0
        %1967 = vmatpush1.msra.mxu0 %v1961
        %1968 = vmatprep.subr.mxu0 0.0
        %1969 = vmatpush1.msra.mxu0 0.0
        %1970 = vmatprep.subr.mxu0 0.0
        %1971 = vmatpush1.msra.mxu0 0.0
        %1972 = vmatprep.subr.mxu0 0.0
        %1973 = vmatpush1.msra.mxu0 0.0
        %1974 = vmatprep.subr.mxu0 0.0
        %1975 = vmatpush1.msra.mxu0 0.0
        %1976 = vmatprep.subr.mxu0 0.0
        %1977 = vmatpush1.msra.mxu0 0.0
        %1978 = vmatprep.subr.mxu0 0.0
        %1979 = vmatpush1.msra.mxu0 0.0
        %1980 = vmatprep.subr.mxu0 0.0
        %1981 = vmatpush1.msra.mxu0 0.0
        %1982 = vmatprep.subr.mxu0 0.0
        %1983 = vmatpush1.msra.mxu0 0.0
        %1984 = vmatprep.subr.mxu0 0.0
        %1985 = vmatpush1.msra.mxu0 0.0
        %1986 = vmatprep.subr.mxu0 0.0
        %1987 = vmatpush1.msra.mxu0 0.0
        %1988 = vmatprep.subr.mxu0 0.0
        %1989 = vmatpush1.msra.mxu0 0.0
        %1990 = vmatprep.subr.mxu0 0.0
        %1991 = vmatpush1.msra.mxu0 0.0
        %1992 = vmatprep.subr.mxu0 0.0
        %1993 = vmatpush1.msra.mxu0 0.0
        %1994 = vmatprep.subr.mxu0 0.0
        %1995 = vmatpush1.msra.mxu0 0.0
        %1996 = vmatprep.subr.mxu0 0.0
        %1997 = vmatpush1.msra.mxu0 0.0
        %1998 = vmatprep.subr.mxu0 0.0
        %1999 = vmatpush1.msra.mxu0 0.0
        %2000 = vmatprep.subr.mxu0 0.0
        %2001 = vmatpush1.msra.mxu0 0.0
        %2002 = vmatprep.subr.mxu0 0.0
        %2003 = vmatpush1.msra.mxu0 0.0
        %2004 = vmatprep.subr.mxu0 0.0
        %2005 = vmatpush1.msra.mxu0 0.0
        %2006 = vmatprep.subr.mxu0 0.0
        %2007 = vmatpush1.msra.mxu0 0.0
        %2008 = vmatprep.subr.mxu0 0.0
        %2009 = vmatpush1.msra.mxu0 0.0
        %2010 = vmatprep.subr.mxu0 0.0
        %2011 = vmatpush1.msra.mxu0 0.0
        %2012 = vmatprep.subr.mxu0 0.0
        %2013 = vmatpush1.msra.mxu0 0.0
        %2014 = vmatprep.subr.mxu0 0.0
        %2015 = vmatpush1.msra.mxu0 0.0
        %2016 = vmatprep.subr.mxu0 0.0
        %2017 = vmatpush1.msra.mxu0 0.0
        %2018 = vmatprep.subr.mxu0 0.0
        %2019 = vmatpush1.msra.mxu0 0.0
        %2020 = vmatprep.subr.mxu0 0.0
        %2021 = vmatpush1.msra.mxu0 0.0
        %2022 = vmatprep.subr.mxu0 0.0
        %2023 = vmatpush1.msra.mxu0 0.0
        %2024 = vmatprep.subr.mxu0 0.0
        %2025 = vmatpush1.msra.mxu0 0.0
        %2026 = vmatprep.subr.mxu0 0.0
        %2027 = vmatpush1.msra.mxu0 0.0
        %2028 = vmatprep.subr.mxu0 0.0
        %2029 = vmatpush1.msra.mxu0 0.0
        %2030 = vmatprep.mubr.f32.mxu0 0.0
        %2031 = vmatmul.mubr.f32.gmra.mrb[0].mxu0 %v1964
        %v2032 = vpop.f32.mrb[0].mxu0
        %v2033 = vadd.f32 0.0, %v2032
        %v2034 = vpop.f32.mrb[0].mxu0
        %2035 = vdwg.mxu0
        %2036 = vrot.lane.b32.xlu0 %v820, 112
        %v2037 = vpop.permute.xlu0 %2036
        %v2040 = vsel %vm967, %v1957, 0
        %2042 = vmatprep.subr.mxu0 0.0
        %2043 = vmatpush1.msra.mxu0 %v2037
        %2044 = vmatprep.subr.mxu0 0.0
        %2045 = vmatpush1.msra.mxu0 0.0
        %2046 = vmatprep.subr.mxu0 0.0
        %2047 = vmatpush1.msra.mxu0 0.0
        %2048 = vmatprep.subr.mxu0 0.0
        %2049 = vmatpush1.msra.mxu0 0.0
        %2050 = vmatprep.subr.mxu0 0.0
        %2051 = vmatpush1.msra.mxu0 0.0
        %2052 = vmatprep.subr.mxu0 0.0
        %2053 = vmatpush1.msra.mxu0 0.0
        %2054 = vmatprep.subr.mxu0 0.0
        %2055 = vmatpush1.msra.mxu0 0.0
        %2056 = vmatprep.subr.mxu0 0.0
        %2057 = vmatpush1.msra.mxu0 0.0
        %2058 = vmatprep.subr.mxu0 0.0
        %2059 = vmatpush1.msra.mxu0 0.0
        %2060 = vmatprep.subr.mxu0 0.0
        %2061 = vmatpush1.msra.mxu0 0.0
        %2062 = vmatprep.subr.mxu0 0.0
        %2063 = vmatpush1.msra.mxu0 0.0
        %2064 = vmatprep.subr.mxu0 0.0
        %2065 = vmatpush1.msra.mxu0 0.0
        %2066 = vmatprep.subr.mxu0 0.0
        %2067 = vmatpush1.msra.mxu0 0.0
        %2068 = vmatprep.subr.mxu0 0.0
        %2069 = vmatpush1.msra.mxu0 0.0
        %2070 = vmatprep.subr.mxu0 0.0
        %2071 = vmatpush1.msra.mxu0 0.0
        %2072 = vmatprep.subr.mxu0 0.0
        %2073 = vmatpush1.msra.mxu0 0.0
        %2074 = vmatprep.subr.mxu0 0.0
        %2075 = vmatpush1.msra.mxu0 0.0
        %2076 = vmatprep.subr.mxu0 0.0
        %2077 = vmatpush1.msra.mxu0 0.0
        %2078 = vmatprep.subr.mxu0 0.0
        %2079 = vmatpush1.msra.mxu0 0.0
        %2080 = vmatprep.subr.mxu0 0.0
        %2081 = vmatpush1.msra.mxu0 0.0
        %2082 = vmatprep.subr.mxu0 0.0
        %2083 = vmatpush1.msra.mxu0 0.0
        %2084 = vmatprep.subr.mxu0 0.0
        %2085 = vmatpush1.msra.mxu0 0.0
        %2086 = vmatprep.subr.mxu0 0.0
        %2087 = vmatpush1.msra.mxu0 0.0
        %2088 = vmatprep.subr.mxu0 0.0
        %2089 = vmatpush1.msra.mxu0 0.0
        %2090 = vmatprep.subr.mxu0 0.0
        %2091 = vmatpush1.msra.mxu0 0.0
        %2092 = vmatprep.subr.mxu0 0.0
        %2093 = vmatpush1.msra.mxu0 0.0
        %2094 = vmatprep.subr.mxu0 0.0
        %2095 = vmatpush1.msra.mxu0 0.0
        %2096 = vmatprep.subr.mxu0 0.0
        %2097 = vmatpush1.msra.mxu0 0.0
        %2098 = vmatprep.subr.mxu0 0.0
        %2099 = vmatpush1.msra.mxu0 0.0
        %2100 = vmatprep.subr.mxu0 0.0
        %2101 = vmatpush1.msra.mxu0 0.0
        %2102 = vmatprep.subr.mxu0 0.0
        %2103 = vmatpush1.msra.mxu0 0.0
        %2104 = vmatprep.subr.mxu0 0.0
        %2105 = vmatpush1.msra.mxu0 0.0
        %2106 = vmatprep.mubr.f32.mxu0 0.0
        %2107 = vmatmul.mubr.f32.gmra.mrb[0].mxu0 %v2040
        %v2108 = vpop.f32.mrb[0].mxu0
        %v2109 = vadd.f32 0.0, %v2108
        %v2110 = vpop.f32.mrb[0].mxu0
        %2111 = vdwg.mxu0
        %2112 = vrot.lane.b32.xlu0 %v890, 112
        %v2113 = vpop.permute.xlu0 %2112
        %v2116 = vsel %vm967, %v1958, 0
        %2118 = vmatprep.subr.mxu0 0.0
        %2119 = vmatpush1.msra.mxu0 %v2113
        %2120 = vmatprep.subr.mxu0 0.0
        %2121 = vmatpush1.msra.mxu0 0.0
        %2122 = vmatprep.subr.mxu0 0.0
        %2123 = vmatpush1.msra.mxu0 0.0
        %2124 = vmatprep.subr.mxu0 0.0
        %2125 = vmatpush1.msra.mxu0 0.0
        %2126 = vmatprep.subr.mxu0 0.0
        %2127 = vmatpush1.msra.mxu0 0.0
        %2128 = vmatprep.subr.mxu0 0.0
        %2129 = vmatpush1.msra.mxu0 0.0
        %2130 = vmatprep.subr.mxu0 0.0
        %2131 = vmatpush1.msra.mxu0 0.0
        %2132 = vmatprep.subr.mxu0 0.0
        %2133 = vmatpush1.msra.mxu0 0.0
        %2134 = vmatprep.subr.mxu0 0.0
        %2135 = vmatpush1.msra.mxu0 0.0
        %2136 = vmatprep.subr.mxu0 0.0
        %2137 = vmatpush1.msra.mxu0 0.0
        %2138 = vmatprep.subr.mxu0 0.0
        %2139 = vmatpush1.msra.mxu0 0.0
        %2140 = vmatprep.subr.mxu0 0.0
        %2141 = vmatpush1.msra.mxu0 0.0
        %2142 = vmatprep.subr.mxu0 0.0
        %2143 = vmatpush1.msra.mxu0 0.0
        %2144 = vmatprep.subr.mxu0 0.0
        %2145 = vmatpush1.msra.mxu0 0.0
        %2146 = vmatprep.subr.mxu0 0.0
        %2147 = vmatpush1.msra.mxu0 0.0
        %2148 = vmatprep.subr.mxu0 0.0
        %2149 = vmatpush1.msra.mxu0 0.0
        %2150 = vmatprep.subr.mxu0 0.0
        %2151 = vmatpush1.msra.mxu0 0.0
        %2152 = vmatprep.subr.mxu0 0.0
        %2153 = vmatpush1.msra.mxu0 0.0
        %2154 = vmatprep.subr.mxu0 0.0
        %2155 = vmatpush1.msra.mxu0 0.0
        %2156 = vmatprep.subr.mxu0 0.0
        %2157 = vmatpush1.msra.mxu0 0.0
        %2158 = vmatprep.subr.mxu0 0.0
        %2159 = vmatpush1.msra.mxu0 0.0
        %2160 = vmatprep.subr.mxu0 0.0
        %2161 = vmatpush1.msra.mxu0 0.0
        %2162 = vmatprep.subr.mxu0 0.0
        %2163 = vmatpush1.msra.mxu0 0.0
        %2164 = vmatprep.subr.mxu0 0.0
        %2165 = vmatpush1.msra.mxu0 0.0
        %2166 = vmatprep.subr.mxu0 0.0
        %2167 = vmatpush1.msra.mxu0 0.0
        %2168 = vmatprep.subr.mxu0 0.0
        %2169 = vmatpush1.msra.mxu0 0.0
        %2170 = vmatprep.subr.mxu0 0.0
        %2171 = vmatpush1.msra.mxu0 0.0
        %2172 = vmatprep.subr.mxu0 0.0
        %2173 = vmatpush1.msra.mxu0 0.0
        %2174 = vmatprep.subr.mxu0 0.0
        %2175 = vmatpush1.msra.mxu0 0.0
        %2176 = vmatprep.subr.mxu0 0.0
        %2177 = vmatpush1.msra.mxu0 0.0
        %2178 = vmatprep.subr.mxu0 0.0
        %2179 = vmatpush1.msra.mxu0 0.0
        %2180 = vmatprep.subr.mxu0 0.0
        %2181 = vmatpush1.msra.mxu0 0.0
        %2182 = vmatprep.mubr.f32.mxu0 0.0
        %2183 = vmatmul.mubr.f32.gmra.mrb[0].mxu0 %v2116
        %v2184 = vpop.f32.mrb[0].mxu0
        %v2185 = vadd.f32 0.0, %v2184
        %v2186 = vpop.f32.mrb[0].mxu0
        %2187 = vdwg.mxu0
        %2188 = vrot.lane.b32.xlu0 %v960, 112
        %v2189 = vpop.permute.xlu0 %2188
        %v2192 = vsel %vm967, %v1959, 0
        %2194 = vmatprep.subr.mxu0 0.0
        %2195 = vmatpush1.msra.mxu0 %v2189
        %2196 = vmatprep.subr.mxu0 0.0
        %2197 = vmatpush1.msra.mxu0 0.0
        %2198 = vmatprep.subr.mxu0 0.0
        %2199 = vmatpush1.msra.mxu0 0.0
        %2200 = vmatprep.subr.mxu0 0.0
        %2201 = vmatpush1.msra.mxu0 0.0
        %2202 = vmatprep.subr.mxu0 0.0
        %2203 = vmatpush1.msra.mxu0 0.0
        %2204 = vmatprep.subr.mxu0 0.0
        %2205 = vmatpush1.msra.mxu0 0.0
        %2206 = vmatprep.subr.mxu0 0.0
        %2207 = vmatpush1.msra.mxu0 0.0
        %2208 = vmatprep.subr.mxu0 0.0
        %2209 = vmatpush1.msra.mxu0 0.0
        %2210 = vmatprep.subr.mxu0 0.0
        %2211 = vmatpush1.msra.mxu0 0.0
        %2212 = vmatprep.subr.mxu0 0.0
        %2213 = vmatpush1.msra.mxu0 0.0
        %2214 = vmatprep.subr.mxu0 0.0
        %2215 = vmatpush1.msra.mxu0 0.0
        %2216 = vmatprep.subr.mxu0 0.0
        %2217 = vmatpush1.msra.mxu0 0.0
        %2218 = vmatprep.subr.mxu0 0.0
        %2219 = vmatpush1.msra.mxu0 0.0
        %2220 = vmatprep.subr.mxu0 0.0
        %2221 = vmatpush1.msra.mxu0 0.0
        %2222 = vmatprep.subr.mxu0 0.0
        %2223 = vmatpush1.msra.mxu0 0.0
        %2224 = vmatprep.subr.mxu0 0.0
        %2225 = vmatpush1.msra.mxu0 0.0
        %2226 = vmatprep.subr.mxu0 0.0
        %2227 = vmatpush1.msra.mxu0 0.0
        %2228 = vmatprep.subr.mxu0 0.0
        %2229 = vmatpush1.msra.mxu0 0.0
        %2230 = vmatprep.subr.mxu0 0.0
        %2231 = vmatpush1.msra.mxu0 0.0
        %2232 = vmatprep.subr.mxu0 0.0
        %2233 = vmatpush1.msra.mxu0 0.0
        %2234 = vmatprep.subr.mxu0 0.0
        %2235 = vmatpush1.msra.mxu0 0.0
        %2236 = vmatprep.subr.mxu0 0.0
        %2237 = vmatpush1.msra.mxu0 0.0
        %2238 = vmatprep.subr.mxu0 0.0
        %2239 = vmatpush1.msra.mxu0 0.0
        %2240 = vmatprep.subr.mxu0 0.0
        %2241 = vmatpush1.msra.mxu0 0.0
        %2242 = vmatprep.subr.mxu0 0.0
        %2243 = vmatpush1.msra.mxu0 0.0
        %2244 = vmatprep.subr.mxu0 0.0
        %2245 = vmatpush1.msra.mxu0 0.0
        %2246 = vmatprep.subr.mxu0 0.0
        %2247 = vmatpush1.msra.mxu0 0.0
        %2248 = vmatprep.subr.mxu0 0.0
        %2249 = vmatpush1.msra.mxu0 0.0
        %2250 = vmatprep.subr.mxu0 0.0
        %2251 = vmatpush1.msra.mxu0 0.0
        %2252 = vmatprep.subr.mxu0 0.0
        %2253 = vmatpush1.msra.mxu0 0.0
        %2254 = vmatprep.subr.mxu0 0.0
        %2255 = vmatpush1.msra.mxu0 0.0
        %2256 = vmatprep.subr.mxu0 0.0
        %2257 = vmatpush1.msra.mxu0 0.0
        %2258 = vmatprep.mubr.f32.mxu0 0.0
        %2259 = vmatmul.mubr.f32.gmra.mrb[0].mxu0 %v2192
        %v2260 = vpop.f32.mrb[0].mxu0
        %v2261 = vadd.f32 0.0, %v2260
        %v2262 = vpop.f32.mrb[0].mxu0
        %2263 = vdwg.mxu0
        %v2264 = vld [vmem:[%s7] sm:$0xff]
        %v2265 = vld [vmem:[%s7 + $0x8] sm:$0xff]
        %v2266 = vld [vmem:[%s7 + $0x10] sm:$0xff]
        %v2267 = vld [vmem:[%s7 + $0x18] sm:$0xff]
        %v2269 = vsel %vm967, %v2033, 0
        %2271 = vmatprep.subr.mxu0 0.0
        %2272 = vmatpush1.msra.mxu0 %v2264
        %2273 = vmatprep.subr.mxu0 0.0
        %2274 = vmatpush1.msra.mxu0 0.0
        %2275 = vmatprep.subr.mxu0 0.0
        %2276 = vmatpush1.msra.mxu0 0.0
        %2277 = vmatprep.subr.mxu0 0.0
        %2278 = vmatpush1.msra.mxu0 0.0
        %2279 = vmatprep.subr.mxu0 0.0
        %2280 = vmatpush1.msra.mxu0 0.0
        %2281 = vmatprep.subr.mxu0 0.0
        %2282 = vmatpush1.msra.mxu0 0.0
        %2283 = vmatprep.subr.mxu0 0.0
        %2284 = vmatpush1.msra.mxu0 0.0
        %2285 = vmatprep.subr.mxu0 0.0
        %2286 = vmatpush1.msra.mxu0 0.0
        %2287 = vmatprep.subr.mxu0 0.0
        %2288 = vmatpush1.msra.mxu0 0.0
        %2289 = vmatprep.subr.mxu0 0.0
        %2290 = vmatpush1.msra.mxu0 0.0
        %2291 = vmatprep.subr.mxu0 0.0
        %2292 = vmatpush1.msra.mxu0 0.0
        %2293 = vmatprep.subr.mxu0 0.0
        %2294 = vmatpush1.msra.mxu0 0.0
        %2295 = vmatprep.subr.mxu0 0.0
        %2296 = vmatpush1.msra.mxu0 0.0
        %2297 = vmatprep.subr.mxu0 0.0
        %2298 = vmatpush1.msra.mxu0 0.0
        %2299 = vmatprep.subr.mxu0 0.0
        %2300 = vmatpush1.msra.mxu0 0.0
        %2301 = vmatprep.subr.mxu0 0.0
        %2302 = vmatpush1.msra.mxu0 0.0
        %2303 = vmatprep.subr.mxu0 0.0
        %2304 = vmatpush1.msra.mxu0 0.0
        %2305 = vmatprep.subr.mxu0 0.0
        %2306 = vmatpush1.msra.mxu0 0.0
        %2307 = vmatprep.subr.mxu0 0.0
        %2308 = vmatpush1.msra.mxu0 0.0
        %2309 = vmatprep.subr.mxu0 0.0
        %2310 = vmatpush1.msra.mxu0 0.0
        %2311 = vmatprep.subr.mxu0 0.0
        %2312 = vmatpush1.msra.mxu0 0.0
        %2313 = vmatprep.subr.mxu0 0.0
        %2314 = vmatpush1.msra.mxu0 0.0
        %2315 = vmatprep.subr.mxu0 0.0
        %2316 = vmatpush1.msra.mxu0 0.0
        %2317 = vmatprep.subr.mxu0 0.0
        %2318 = vmatpush1.msra.mxu0 0.0
        %2319 = vmatprep.subr.mxu0 0.0
        %2320 = vmatpush1.msra.mxu0 0.0
        %2321 = vmatprep.subr.mxu0 0.0
        %2322 = vmatpush1.msra.mxu0 0.0
        %2323 = vmatprep.subr.mxu0 0.0
        %2324 = vmatpush1.msra.mxu0 0.0
        %2325 = vmatprep.subr.mxu0 0.0
        %2326 = vmatpush1.msra.mxu0 0.0
        %2327 = vmatprep.subr.mxu0 0.0
        %2328 = vmatpush1.msra.mxu0 0.0
        %2329 = vmatprep.subr.mxu0 0.0
        %2330 = vmatpush1.msra.mxu0 0.0
        %2331 = vmatprep.subr.mxu0 0.0
        %2332 = vmatpush1.msra.mxu0 0.0
        %2333 = vmatprep.subr.mxu0 0.0
        %2334 = vmatpush1.msra.mxu0 0.0
        %2335 = vmatprep.mubr.f32.mxu0 0.0
        %2336 = vmatmul.mubr.f32.gmra.mrb[0].mxu0 %v2269
        %v2337 = vpop.f32.mrb[0].mxu0
        %v2338 = vadd.f32 0.0, %v2337
        %v2339 = vpop.f32.mrb[0].mxu0
        %2340 = vdwg.mxu0
        %v2342 = vsel %vm967, %v2109, 0
        %2344 = vmatprep.subr.mxu0 0.0
        %2345 = vmatpush1.msra.mxu0 %v2265
        %2346 = vmatprep.subr.mxu0 0.0
        %2347 = vmatpush1.msra.mxu0 0.0
        %2348 = vmatprep.subr.mxu0 0.0
        %2349 = vmatpush1.msra.mxu0 0.0
        %2350 = vmatprep.subr.mxu0 0.0
        %2351 = vmatpush1.msra.mxu0 0.0
        %2352 = vmatprep.subr.mxu0 0.0
        %2353 = vmatpush1.msra.mxu0 0.0
        %2354 = vmatprep.subr.mxu0 0.0
        %2355 = vmatpush1.msra.mxu0 0.0
        %2356 = vmatprep.subr.mxu0 0.0
        %2357 = vmatpush1.msra.mxu0 0.0
        %2358 = vmatprep.subr.mxu0 0.0
        %2359 = vmatpush1.msra.mxu0 0.0
        %2360 = vmatprep.subr.mxu0 0.0
        %2361 = vmatpush1.msra.mxu0 0.0
        %2362 = vmatprep.subr.mxu0 0.0
        %2363 = vmatpush1.msra.mxu0 0.0
        %2364 = vmatprep.subr.mxu0 0.0
        %2365 = vmatpush1.msra.mxu0 0.0
        %2366 = vmatprep.subr.mxu0 0.0
        %2367 = vmatpush1.msra.mxu0 0.0
        %2368 = vmatprep.subr.mxu0 0.0
        %2369 = vmatpush1.msra.mxu0 0.0
        %2370 = vmatprep.subr.mxu0 0.0
        %2371 = vmatpush1.msra.mxu0 0.0
        %2372 = vmatprep.subr.mxu0 0.0
        %2373 = vmatpush1.msra.mxu0 0.0
        %2374 = vmatprep.subr.mxu0 0.0
        %2375 = vmatpush1.msra.mxu0 0.0
        %2376 = vmatprep.subr.mxu0 0.0
        %2377 = vmatpush1.msra.mxu0 0.0
        %2378 = vmatprep.subr.mxu0 0.0
        %2379 = vmatpush1.msra.mxu0 0.0
        %2380 = vmatprep.subr.mxu0 0.0
        %2381 = vmatpush1.msra.mxu0 0.0
        %2382 = vmatprep.subr.mxu0 0.0
        %2383 = vmatpush1.msra.mxu0 0.0
        %2384 = vmatprep.subr.mxu0 0.0
        %2385 = vmatpush1.msra.mxu0 0.0
        %2386 = vmatprep.subr.mxu0 0.0
        %2387 = vmatpush1.msra.mxu0 0.0
        %2388 = vmatprep.subr.mxu0 0.0
        %2389 = vmatpush1.msra.mxu0 0.0
        %2390 = vmatprep.subr.mxu0 0.0
        %2391 = vmatpush1.msra.mxu0 0.0
        %2392 = vmatprep.subr.mxu0 0.0
        %2393 = vmatpush1.msra.mxu0 0.0
        %2394 = vmatprep.subr.mxu0 0.0
        %2395 = vmatpush1.msra.mxu0 0.0
        %2396 = vmatprep.subr.mxu0 0.0
        %2397 = vmatpush1.msra.mxu0 0.0
        %2398 = vmatprep.subr.mxu0 0.0
        %2399 = vmatpush1.msra.mxu0 0.0
        %2400 = vmatprep.subr.mxu0 0.0
        %2401 = vmatpush1.msra.mxu0 0.0
        %2402 = vmatprep.subr.mxu0 0.0
        %2403 = vmatpush1.msra.mxu0 0.0
        %2404 = vmatprep.subr.mxu0 0.0
        %2405 = vmatpush1.msra.mxu0 0.0
        %2406 = vmatprep.subr.mxu0 0.0
        %2407 = vmatpush1.msra.mxu0 0.0
        %2408 = vmatprep.mubr.f32.mxu0 0.0
        %2409 = vmatmul.mubr.f32.gmra.mrb[0].mxu0 %v2342
        %v2410 = vpop.f32.mrb[0].mxu0
        %v2411 = vadd.f32 0.0, %v2410
        %v2412 = vpop.f32.mrb[0].mxu0
        %2413 = vdwg.mxu0
        %v2415 = vsel %vm967, %v2185, 0
        %2417 = vmatprep.subr.mxu0 0.0
        %2418 = vmatpush1.msra.mxu0 %v2266
        %2419 = vmatprep.subr.mxu0 0.0
        %2420 = vmatpush1.msra.mxu0 0.0
        %2421 = vmatprep.subr.mxu0 0.0
        %2422 = vmatpush1.msra.mxu0 0.0
        %2423 = vmatprep.subr.mxu0 0.0
        %2424 = vmatpush1.msra.mxu0 0.0
        %2425 = vmatprep.subr.mxu0 0.0
        %2426 = vmatpush1.msra.mxu0 0.0
        %2427 = vmatprep.subr.mxu0 0.0
        %2428 = vmatpush1.msra.mxu0 0.0
        %2429 = vmatprep.subr.mxu0 0.0
        %2430 = vmatpush1.msra.mxu0 0.0
        %2431 = vmatprep.subr.mxu0 0.0
        %2432 = vmatpush1.msra.mxu0 0.0
        %2433 = vmatprep.subr.mxu0 0.0
        %2434 = vmatpush1.msra.mxu0 0.0
        %2435 = vmatprep.subr.mxu0 0.0
        %2436 = vmatpush1.msra.mxu0 0.0
        %2437 = vmatprep.subr.mxu0 0.0
        %2438 = vmatpush1.msra.mxu0 0.0
        %2439 = vmatprep.subr.mxu0 0.0
        %2440 = vmatpush1.msra.mxu0 0.0
        %2441 = vmatprep.subr.mxu0 0.0
        %2442 = vmatpush1.msra.mxu0 0.0
        %2443 = vmatprep.subr.mxu0 0.0
        %2444 = vmatpush1.msra.mxu0 0.0
        %2445 = vmatprep.subr.mxu0 0.0
        %2446 = vmatpush1.msra.mxu0 0.0
        %2447 = vmatprep.subr.mxu0 0.0
        %2448 = vmatpush1.msra.mxu0 0.0
        %2449 = vmatprep.subr.mxu0 0.0
        %2450 = vmatpush1.msra.mxu0 0.0
        %2451 = vmatprep.subr.mxu0 0.0
        %2452 = vmatpush1.msra.mxu0 0.0
        %2453 = vmatprep.subr.mxu0 0.0
        %2454 = vmatpush1.msra.mxu0 0.0
        %2455 = vmatprep.subr.mxu0 0.0
        %2456 = vmatpush1.msra.mxu0 0.0
        %2457 = vmatprep.subr.mxu0 0.0
        %2458 = vmatpush1.msra.mxu0 0.0
        %2459 = vmatprep.subr.mxu0 0.0
        %2460 = vmatpush1.msra.mxu0 0.0
        %2461 = vmatprep.subr.mxu0 0.0
        %2462 = vmatpush1.msra.mxu0 0.0
        %2463 = vmatprep.subr.mxu0 0.0
        %2464 = vmatpush1.msra.mxu0 0.0
        %2465 = vmatprep.subr.mxu0 0.0
        %2466 = vmatpush1.msra.mxu0 0.0
        %2467 = vmatprep.subr.mxu0 0.0
        %2468 = vmatpush1.msra.mxu0 0.0
        %2469 = vmatprep.subr.mxu0 0.0
        %2470 = vmatpush1.msra.mxu0 0.0
        %2471 = vmatprep.subr.mxu0 0.0
        %2472 = vmatpush1.msra.mxu0 0.0
        %2473 = vmatprep.subr.mxu0 0.0
        %2474 = vmatpush1.msra.mxu0 0.0
        %2475 = vmatprep.subr.mxu0 0.0
        %2476 = vmatpush1.msra.mxu0 0.0
        %2477 = vmatprep.subr.mxu0 0.0
        %2478 = vmatpush1.msra.mxu0 0.0
        %2479 = vmatprep.subr.mxu0 0.0
        %2480 = vmatpush1.msra.mxu0 0.0
        %2481 = vmatprep.mubr.f32.mxu0 0.0
        %2482 = vmatmul.mubr.f32.gmra.mrb[0].mxu0 %v2415
        %v2483 = vpop.f32.mrb[0].mxu0
        %v2484 = vadd.f32 0.0, %v2483
        %v2485 = vpop.f32.mrb[0].mxu0
        %2486 = vdwg.mxu0
        %v2488 = vsel %vm967, %v2261, 0
        %2490 = vmatprep.subr.mxu0 0.0
        %2491 = vmatpush1.msra.mxu0 %v2267
        %2492 = vmatprep.subr.mxu0 0.0
        %2493 = vmatpush1.msra.mxu0 0.0
        %2494 = vmatprep.subr.mxu0 0.0
        %2495 = vmatpush1.msra.mxu0 0.0
        %2496 = vmatprep.subr.mxu0 0.0
        %2497 = vmatpush1.msra.mxu0 0.0
        %2498 = vmatprep.subr.mxu0 0.0
        %2499 = vmatpush1.msra.mxu0 0.0
        %2500 = vmatprep.subr.mxu0 0.0
        %2501 = vmatpush1.msra.mxu0 0.0
        %2502 = vmatprep.subr.mxu0 0.0
        %2503 = vmatpush1.msra.mxu0 0.0
        %2504 = vmatprep.subr.mxu0 0.0
        %2505 = vmatpush1.msra.mxu0 0.0
        %2506 = vmatprep.subr.mxu0 0.0
        %2507 = vmatpush1.msra.mxu0 0.0
        %2508 = vmatprep.subr.mxu0 0.0
        %2509 = vmatpush1.msra.mxu0 0.0
        %2510 = vmatprep.subr.mxu0 0.0
        %2511 = vmatpush1.msra.mxu0 0.0
        %2512 = vmatprep.subr.mxu0 0.0
        %2513 = vmatpush1.msra.mxu0 0.0
        %2514 = vmatprep.subr.mxu0 0.0
        %2515 = vmatpush1.msra.mxu0 0.0
        %2516 = vmatprep.subr.mxu0 0.0
        %2517 = vmatpush1.msra.mxu0 0.0
        %2518 = vmatprep.subr.mxu0 0.0
        %2519 = vmatpush1.msra.mxu0 0.0
        %2520 = vmatprep.subr.mxu0 0.0
        %2521 = vmatpush1.msra.mxu0 0.0
        %2522 = vmatprep.subr.mxu0 0.0
        %2523 = vmatpush1.msra.mxu0 0.0
        %2524 = vmatprep.subr.mxu0 0.0
        %2525 = vmatpush1.msra.mxu0 0.0
        %2526 = vmatprep.subr.mxu0 0.0
        %2527 = vmatpush1.msra.mxu0 0.0
        %2528 = vmatprep.subr.mxu0 0.0
        %2529 = vmatpush1.msra.mxu0 0.0
        %2530 = vmatprep.subr.mxu0 0.0
        %2531 = vmatpush1.msra.mxu0 0.0
        %2532 = vmatprep.subr.mxu0 0.0
        %2533 = vmatpush1.msra.mxu0 0.0
        %2534 = vmatprep.subr.mxu0 0.0
        %2535 = vmatpush1.msra.mxu0 0.0
        %2536 = vmatprep.subr.mxu0 0.0
        %2537 = vmatpush1.msra.mxu0 0.0
        %2538 = vmatprep.subr.mxu0 0.0
        %2539 = vmatpush1.msra.mxu0 0.0
        %2540 = vmatprep.subr.mxu0 0.0
        %2541 = vmatpush1.msra.mxu0 0.0
        %2542 = vmatprep.subr.mxu0 0.0
        %2543 = vmatpush1.msra.mxu0 0.0
        %2544 = vmatprep.subr.mxu0 0.0
        %2545 = vmatpush1.msra.mxu0 0.0
        %2546 = vmatprep.subr.mxu0 0.0
        %2547 = vmatpush1.msra.mxu0 0.0
        %2548 = vmatprep.subr.mxu0 0.0
        %2549 = vmatpush1.msra.mxu0 0.0
        %2550 = vmatprep.subr.mxu0 0.0
        %2551 = vmatpush1.msra.mxu0 0.0
        %2552 = vmatprep.subr.mxu0 0.0
        %2553 = vmatpush1.msra.mxu0 0.0
        %2554 = vmatprep.mubr.f32.mxu0 0.0
        %2555 = vmatmul.mubr.f32.gmra.mrb[0].mxu0 %v2488
        %v2556 = vpop.f32.mrb[0].mxu0
        %v2557 = vadd.f32 0.0, %v2556
        %v2558 = vpop.f32.mrb[0].mxu0
        %2559 = vdwg.mxu0
        %v2560 = vadd.f32 %v2338, %v2411
        %v2561 = vadd.f32 %v2560, %v2484
        %v2562 = vadd.f32 %v2561, %v2557
        %v2563 = vadd.f32 %v605, %v2562
        %v2564 = vld [vmem:[%s8] sm:$0x1]
        %v2566 = vlaneseq
        %v2567 = vshrl.u32 %v2566, 7
        %v2568 = vsub.s32 0, %v2567
        %v2569 = vrot.slane %v2564, %v2568
        %v2571 = vadd.f32 %v2563, %v2569
        %v2572 = vld [vmem:[%s10] sm:$0x1]
        %v2573 = vmul.f32 %v2571, %v2571
        %v2574 = vsel %vm620, %v2573, 0.0
        %2575 = vadd.xlane.f32.xlu0 %v2574
        %v2576 = vpop.xlane.xlu0 %2575
        %v2577 = vmul.f32 %v2576, %v624
        %v2578 = vadd.f32 %v2577, 1e-05
        %v2579 = vrsqrt.pop %v2578
        %v2580 = vmul.f32 %v2571, %v2579
        %v2582 = vlaneseq
        %v2583 = vshrl.u32 %v2582, 7
        %v2584 = vsub.s32 0, %v2583
        %v2585 = vrot.slane %v2572, %v2584
        %v2587 = vmul.f32 %v2580, %v2585
        %v2588 = vld [vmem:[%s11] sm:$0xff]
        %v2589 = vld [vmem:[%s11 + $0x8] sm:$0xff]
        %v2590 = vld [vmem:[%s11 + $0x10] sm:$0xff]
        %v2591 = vld [vmem:[%s11 + $0x18] sm:$0xff]
        %v2592 = vld [vmem:[%s11 + $0x20] sm:$0xff]
        %v2593 = vld [vmem:[%s11 + $0x28] sm:$0xff]
        %v2594 = vld [vmem:[%s11 + $0x30] sm:$0xff]
        %v2595 = vld [vmem:[%s11 + $0x38] sm:$0xff]
        %v2597 = vsel %vm620, %v2587, 0
        %2599 = vmatprep.subr.mxu0 %v2589
        %2600 = vmatpush1.msra.mxu0 %v2588
        %2601 = vmatprep.subr.mxu0 %v2591
        %2602 = vmatpush1.msra.mxu0 %v2590
        %2603 = vmatprep.subr.mxu0 %v2593
        %2604 = vmatpush1.msra.mxu0 %v2592
        %2605 = vmatprep.subr.mxu0 %v2595
        %2606 = vmatpush1.msra.mxu0 %v2594
        %2607 = vmatprep.subr.mxu0 0.0
        %2608 = vmatpush1.msra.mxu0 0.0
        %2609 = vmatprep.subr.mxu0 0.0
        %2610 = vmatpush1.msra.mxu0 0.0
        %2611 = vmatprep.subr.mxu0 0.0
        %2612 = vmatpush1.msra.mxu0 0.0
        %2613 = vmatprep.subr.mxu0 0.0
        %2614 = vmatpush1.msra.mxu0 0.0
        %2615 = vmatprep.subr.mxu0 0.0
        %2616 = vmatpush1.msra.mxu0 0.0
        %2617 = vmatprep.subr.mxu0 0.0
        %2618 = vmatpush1.msra.mxu0 0.0
        %2619 = vmatprep.subr.mxu0 0.0
        %2620 = vmatpush1.msra.mxu0 0.0
        %2621 = vmatprep.subr.mxu0 0.0
        %2622 = vmatpush1.msra.mxu0 0.0
        %2623 = vmatprep.subr.mxu0 0.0
        %2624 = vmatpush1.msra.mxu0 0.0
        %2625 = vmatprep.subr.mxu0 0.0
        %2626 = vmatpush1.msra.mxu0 0.0
        %2627 = vmatprep.subr.mxu0 0.0
        %2628 = vmatpush1.msra.mxu0 0.0
        %2629 = vmatprep.subr.mxu0 0.0
        %2630 = vmatpush1.msra.mxu0 0.0
        %2631 = vmatprep.subr.mxu0 0.0
        %2632 = vmatpush1.msra.mxu0 0.0
        %2633 = vmatprep.subr.mxu0 0.0
        %2634 = vmatpush1.msra.mxu0 0.0
        %2635 = vmatprep.subr.mxu0 0.0
        %2636 = vmatpush1.msra.mxu0 0.0
        %2637 = vmatprep.subr.mxu0 0.0
        %2638 = vmatpush1.msra.mxu0 0.0
        %2639 = vmatprep.subr.mxu0 0.0
        %2640 = vmatpush1.msra.mxu0 0.0
        %2641 = vmatprep.subr.mxu0 0.0
        %2642 = vmatpush1.msra.mxu0 0.0
        %2643 = vmatprep.subr.mxu0 0.0
        %2644 = vmatpush1.msra.mxu0 0.0
        %2645 = vmatprep.subr.mxu0 0.0
        %2646 = vmatpush1.msra.mxu0 0.0
        %2647 = vmatprep.subr.mxu0 0.0
        %2648 = vmatpush1.msra.mxu0 0.0
        %2649 = vmatprep.subr.mxu0 0.0
        %2650 = vmatpush1.msra.mxu0 0.0
        %2651 = vmatprep.subr.mxu0 0.0
        %2652 = vmatpush1.msra.mxu0 0.0
        %2653 = vmatprep.subr.mxu0 0.0
        %2654 = vmatpush1.msra.mxu0 0.0
        %2655 = vmatprep.subr.mxu0 0.0
        %2656 = vmatpush1.msra.mxu0 0.0
        %2657 = vmatprep.subr.mxu0 0.0
        %2658 = vmatpush1.msra.mxu0 0.0
        %2659 = vmatprep.subr.mxu0 0.0
        %2660 = vmatpush1.msra.mxu0 0.0
        %2661 = vmatprep.subr.mxu0 0.0
        %2662 = vmatpush1.msra.mxu0 0.0
        %2663 = vmatprep.mubr.f32.mxu0 0.0
        %2664 = vmatmul.mubr.f32.gmra.mrb[0].mxu0 %v2597
        %v2665 = vpop.f32.mrb[0].mxu0
        %v2666 = vadd.f32 0.0, %v2665
        %v2667 = vpop.f32.mrb[0].mxu0
        %v2668 = vadd.f32 0.0, %v2667
        %2669 = vdwg.mxu0
        %v2670 = vxor.u32 %v2666, 2147483648
        %v2671 = vmul.f32 %v2670, 1.442695
        %v2672 = vpow.pop %v2671
        %v2673 = vadd.f32 %v2672, 1.0
        %v2674 = vrcp.pop %v2673
        %v2675 = vmul.f32 1.0, %v2674
        %v2676 = vmul.f32 %v2666, %v2675
        %v2677 = vmul.f32 %v2676, %v2668
        %v2678 = vld [vmem:[%s12] sm:$0xff]
        %v2679 = vld [vmem:[%s12 + $0x8] sm:$0xff]
        %v2680 = vld [vmem:[%s12 + $0x10] sm:$0xff]
        %v2681 = vld [vmem:[%s12 + $0x18] sm:$0xff]
        %v2682 = vld [vmem:[%s12 + $0x20] sm:$0xff]
        %v2683 = vld [vmem:[%s12 + $0x28] sm:$0xff]
        %v2684 = vld [vmem:[%s12 + $0x30] sm:$0xff]
        %v2685 = vld [vmem:[%s12 + $0x38] sm:$0xff]
        %v2686 = vld [vmem:[%s12 + $0x40] sm:$0xff]
        %v2687 = vld [vmem:[%s12 + $0x48] sm:$0xff]
        %v2688 = vld [vmem:[%s12 + $0x50] sm:$0xff]
        %v2689 = vld [vmem:[%s12 + $0x58] sm:$0xff]
        %v2690 = vld [vmem:[%s12 + $0x60] sm:$0xff]
        %v2691 = vld [vmem:[%s12 + $0x68] sm:$0xff]
        %v2692 = vld [vmem:[%s12 + $0x70] sm:$0xff]
        %v2693 = vld [vmem:[%s12 + $0x78] sm:$0xff]
        %2694 = vmatprep.subr.mxu0 0.0
        %2695 = vmatpush1.msra.mxu0 %v2678
        %2696 = vmatprep.subr.mxu0 0.0
        %2697 = vmatpush1.msra.mxu0 %v2679
        %2698 = vmatprep.subr.mxu0 0.0
        %2699 = vmatpush1.msra.mxu0 %v2680
        %2700 = vmatprep.subr.mxu0 0.0
        %2701 = vmatpush1.msra.mxu0 %v2681
        %2702 = vmatprep.subr.mxu0 0.0
        %2703 = vmatpush1.msra.mxu0 %v2682
        %2704 = vmatprep.subr.mxu0 0.0
        %2705 = vmatpush1.msra.mxu0 %v2683
        %2706 = vmatprep.subr.mxu0 0.0
        %2707 = vmatpush1.msra.mxu0 %v2684
        %2708 = vmatprep.subr.mxu0 0.0
        %2709 = vmatpush1.msra.mxu0 %v2685
        %2710 = vmatprep.subr.mxu0 0.0
        %2711 = vmatpush1.msra.mxu0 %v2686
        %2712 = vmatprep.subr.mxu0 0.0
        %2713 = vmatpush1.msra.mxu0 %v2687
        %2714 = vmatprep.subr.mxu0 0.0
        %2715 = vmatpush1.msra.mxu0 %v2688
        %2716 = vmatprep.subr.mxu0 0.0
        %2717 = vmatpush1.msra.mxu0 %v2689
        %2718 = vmatprep.subr.mxu0 0.0
        %2719 = vmatpush1.msra.mxu0 %v2690
        %2720 = vmatprep.subr.mxu0 0.0
        %2721 = vmatpush1.msra.mxu0 %v2691
        %2722 = vmatprep.subr.mxu0 0.0
        %2723 = vmatpush1.msra.mxu0 %v2692
        %2724 = vmatprep.subr.mxu0 0.0
        %2725 = vmatpush1.msra.mxu0 %v2693
        %2726 = vmatprep.subr.mxu0 0.0
        %2727 = vmatpush1.msra.mxu0 0.0
        %2728 = vmatprep.subr.mxu0 0.0
        %2729 = vmatpush1.msra.mxu0 0.0
        %2730 = vmatprep.subr.mxu0 0.0
        %2731 = vmatpush1.msra.mxu0 0.0
        %2732 = vmatprep.subr.mxu0 0.0
        %2733 = vmatpush1.msra.mxu0 0.0
        %2734 = vmatprep.subr.mxu0 0.0
        %2735 = vmatpush1.msra.mxu0 0.0
        %2736 = vmatprep.subr.mxu0 0.0
        %2737 = vmatpush1.msra.mxu0 0.0
        %2738 = vmatprep.subr.mxu0 0.0
        %2739 = vmatpush1.msra.mxu0 0.0
        %2740 = vmatprep.subr.mxu0 0.0
        %2741 = vmatpush1.msra.mxu0 0.0
        %2742 = vmatprep.subr.mxu0 0.0
        %2743 = vmatpush1.msra.mxu0 0.0
        %2744 = vmatprep.subr.mxu0 0.0
        %2745 = vmatpush1.msra.mxu0 0.0
        %2746 = vmatprep.subr.mxu0 0.0
        %2747 = vmatpush1.msra.mxu0 0.0
        %2748 = vmatprep.subr.mxu0 0.0
        %2749 = vmatpush1.msra.mxu0 0.0
        %2750 = vmatprep.subr.mxu0 0.0
        %2751 = vmatpush1.msra.mxu0 0.0
        %2752 = vmatprep.subr.mxu0 0.0
        %2753 = vmatpush1.msra.mxu0 0.0
        %2754 = vmatprep.subr.mxu0 0.0
        %2755 = vmatpush1.msra.mxu0 0.0
        %2756 = vmatprep.subr.mxu0 0.0
        %2757 = vmatpush1.msra.mxu0 0.0
        %2758 = vmatprep.mubr.f32.mxu0 0.0
        %2759 = vmatmul.mubr.f32.gmra.mrb[0].mxu0 %v2677
        %v2760 = vpop.f32.mrb[0].mxu0
        %v2761 = vadd.f32 0.0, %v2760
        %v2762 = vpop.f32.mrb[0].mxu0
        %2763 = vdwg.mxu0
        %v2764 = vadd.f32 %v2571, %v2761
        %s2765 = scalar_lea.vmem %s9, 1
        %v2766 = vld [vmem:[%s2765] sm:$0x1]
        %v2767 = vmul.f32 %v2764, %v2764
        %v2768 = vsel %vm620, %v2767, 0.0
        %2769 = vadd.xlane.f32.xlu0 %v2768
        %v2770 = vpop.xlane.xlu0 %2769
        %v2771 = vmul.f32 %v2770, %v624
        %v2772 = vadd.f32 %v2771, 1e-05
        %v2773 = vrsqrt.pop %v2772
        %v2774 = vmul.f32 %v2764, %v2773
        %v2776 = vlaneseq
        %v2777 = vshrl.u32 %v2776, 7
        %v2778 = vsub.s32 0, %v2777
        %v2779 = vrot.slane %v2766, %v2778
        %v2781 = vmul.f32 %v2774, %v2779
        %s2782 = scalar_lea.vmem %s5, 128
        %v2783 = vld [vmem:[%s2782] sm:$0xff]
        %v2784 = vld [vmem:[%s2782 + $0x8] sm:$0xff]
        %v2785 = vld [vmem:[%s2782 + $0x10] sm:$0xff]
        %v2786 = vld [vmem:[%s2782 + $0x18] sm:$0xff]
        %v2787 = vld [vmem:[%s2782 + $0x20] sm:$0xff]
        %v2788 = vld [vmem:[%s2782 + $0x28] sm:$0xff]
        %v2789 = vld [vmem:[%s2782 + $0x30] sm:$0xff]
        %v2790 = vld [vmem:[%s2782 + $0x38] sm:$0xff]
        %v2791 = vld [vmem:[%s2782 + $0x40] sm:$0xff]
        %v2792 = vld [vmem:[%s2782 + $0x48] sm:$0xff]
        %v2793 = vld [vmem:[%s2782 + $0x50] sm:$0xff]
        %v2794 = vld [vmem:[%s2782 + $0x58] sm:$0xff]
        %v2795 = vld [vmem:[%s2782 + $0x60] sm:$0xff]
        %v2796 = vld [vmem:[%s2782 + $0x68] sm:$0xff]
        %v2797 = vld [vmem:[%s2782 + $0x70] sm:$0xff]
        %v2798 = vld [vmem:[%s2782 + $0x78] sm:$0xff]
        %s2799 = scalar_lea.vmem %s6, 4
        %v2800 = vld [vmem:[%s2799] sm:$0x1]
        %v2801 = vld [vmem:[%s2799 + $0x1] sm:$0x1]
        %v2802 = vld [vmem:[%s2799 + $0x2] sm:$0x1]
        %v2803 = vld [vmem:[%s2799 + $0x3] sm:$0x1]
        %v2808 = vlaneseq
        %v2809 = vshrl.u32 %v2808, 7
        %v2810 = vsub.s32 0, %v2809
        %v2811 = vrot.slane %v2800, %v2810
        %v2812 = vlaneseq
        %v2813 = vshrl.u32 %v2812, 7
        %v2814 = vsub.s32 0, %v2813
        %v2815 = vrot.slane %v2801, %v2814
        %v2816 = vlaneseq
        %v2817 = vshrl.u32 %v2816, 7
        %v2818 = vsub.s32 0, %v2817
        %v2819 = vrot.slane %v2802, %v2818
        %v2820 = vlaneseq
        %v2821 = vshrl.u32 %v2820, 7
        %v2822 = vsub.s32 0, %v2821
        %v2823 = vrot.slane %v2803, %v2822
        %v2829 = vsel %vm620, %v2781, 0
        %2831 = vmatprep.subr.mxu0 0.0
        %2832 = vmatpush1.msra.mxu0 %v2783
        %2833 = vmatprep.subr.mxu0 0.0
        %2834 = vmatpush1.msra.mxu0 %v2784
        %2835 = vmatprep.subr.mxu0 0.0
        %2836 = vmatpush1.msra.mxu0 %v2785
        %2837 = vmatprep.subr.mxu0 0.0
        %2838 = vmatpush1.msra.mxu0 %v2786
        %2839 = vmatprep.subr.mxu0 0.0
        %2840 = vmatpush1.msra.mxu0 0.0
        %2841 = vmatprep.subr.mxu0 0.0
        %2842 = vmatpush1.msra.mxu0 0.0
        %2843 = vmatprep.subr.mxu0 0.0
        %2844 = vmatpush1.msra.mxu0 0.0
        %2845 = vmatprep.subr.mxu0 0.0
        %2846 = vmatpush1.msra.mxu0 0.0
        %2847 = vmatprep.subr.mxu0 0.0
        %2848 = vmatpush1.msra.mxu0 0.0
        %2849 = vmatprep.subr.mxu0 0.0
        %2850 = vmatpush1.msra.mxu0 0.0
        %2851 = vmatprep.subr.mxu0 0.0
        %2852 = vmatpush1.msra.mxu0 0.0
        %2853 = vmatprep.subr.mxu0 0.0
        %2854 = vmatpush1.msra.mxu0 0.0
        %2855 = vmatprep.subr.mxu0 0.0
        %2856 = vmatpush1.msra.mxu0 0.0
        %2857 = vmatprep.subr.mxu0 0.0
        %2858 = vmatpush1.msra.mxu0 0.0
        %2859 = vmatprep.subr.mxu0 0.0
        %2860 = vmatpush1.msra.mxu0 0.0
        %2861 = vmatprep.subr.mxu0 0.0
        %2862 = vmatpush1.msra.mxu0 0.0
        %2863 = vmatprep.subr.mxu0 0.0
        %2864 = vmatpush1.msra.mxu0 0.0
        %2865 = vmatprep.subr.mxu0 0.0
        %2866 = vmatpush1.msra.mxu0 0.0
        %2867 = vmatprep.subr.mxu0 0.0
        %2868 = vmatpush1.msra.mxu0 0.0
        %2869 = vmatprep.subr.mxu0 0.0
        %2870 = vmatpush1.msra.mxu0 0.0
        %2871 = vmatprep.subr.mxu0 0.0
        %2872 = vmatpush1.msra.mxu0 0.0
        %2873 = vmatprep.subr.mxu0 0.0
        %2874 = vmatpush1.msra.mxu0 0.0
        %2875 = vmatprep.subr.mxu0 0.0
        %2876 = vmatpush1.msra.mxu0 0.0
        %2877 = vmatprep.subr.mxu0 0.0
        %2878 = vmatpush1.msra.mxu0 0.0
        %2879 = vmatprep.subr.mxu0 0.0
        %2880 = vmatpush1.msra.mxu0 0.0
        %2881 = vmatprep.subr.mxu0 0.0
        %2882 = vmatpush1.msra.mxu0 0.0
        %2883 = vmatprep.subr.mxu0 0.0
        %2884 = vmatpush1.msra.mxu0 0.0
        %2885 = vmatprep.subr.mxu0 0.0
        %2886 = vmatpush1.msra.mxu0 0.0
        %2887 = vmatprep.subr.mxu0 0.0
        %2888 = vmatpush1.msra.mxu0 0.0
        %2889 = vmatprep.subr.mxu0 0.0
        %2890 = vmatpush1.msra.mxu0 0.0
        %2891 = vmatprep.subr.mxu0 0.0
        %2892 = vmatpush1.msra.mxu0 0.0
        %2893 = vmatprep.subr.mxu0 0.0
        %2894 = vmatpush1.msra.mxu0 0.0
        %2895 = vmatprep.mubr.f32.mxu0 0.0
        %2896 = vmatmul.mubr.f32.gmra.mrb[0].mxu0 %v2829
        %v2897 = vpop.f32.mrb[0].mxu0
        %v2898 = vadd.f32 %v2811, %v2897
        %v2899 = vpop.f32.mrb[0].mxu0
        %2900 = vdwg.mxu0
        %2901 = vmatprep.subr.mxu0 0.0
        %2902 = vmatpush1.msra.mxu0 %v2787
        %2903 = vmatprep.subr.mxu0 0.0
        %2904 = vmatpush1.msra.mxu0 %v2788
        %2905 = vmatprep.subr.mxu0 0.0
        %2906 = vmatpush1.msra.mxu0 %v2789
        %2907 = vmatprep.subr.mxu0 0.0
        %2908 = vmatpush1.msra.mxu0 %v2790
        %2909 = vmatprep.subr.mxu0 0.0
        %2910 = vmatpush1.msra.mxu0 0.0
        %2911 = vmatprep.subr.mxu0 0.0
        %2912 = vmatpush1.msra.mxu0 0.0
        %2913 = vmatprep.subr.mxu0 0.0
        %2914 = vmatpush1.msra.mxu0 0.0
        %2915 = vmatprep.subr.mxu0 0.0
        %2916 = vmatpush1.msra.mxu0 0.0
        %2917 = vmatprep.subr.mxu0 0.0
        %2918 = vmatpush1.msra.mxu0 0.0
        %2919 = vmatprep.subr.mxu0 0.0
        %2920 = vmatpush1.msra.mxu0 0.0
        %2921 = vmatprep.subr.mxu0 0.0
        %2922 = vmatpush1.msra.mxu0 0.0
        %2923 = vmatprep.subr.mxu0 0.0
        %2924 = vmatpush1.msra.mxu0 0.0
        %2925 = vmatprep.subr.mxu0 0.0
        %2926 = vmatpush1.msra.mxu0 0.0
        %2927 = vmatprep.subr.mxu0 0.0
        %2928 = vmatpush1.msra.mxu0 0.0
        %2929 = vmatprep.subr.mxu0 0.0
        %2930 = vmatpush1.msra.mxu0 0.0
        %2931 = vmatprep.subr.mxu0 0.0
        %2932 = vmatpush1.msra.mxu0 0.0
        %2933 = vmatprep.subr.mxu0 0.0
        %2934 = vmatpush1.msra.mxu0 0.0
        %2935 = vmatprep.subr.mxu0 0.0
        %2936 = vmatpush1.msra.mxu0 0.0
        %2937 = vmatprep.subr.mxu0 0.0
        %2938 = vmatpush1.msra.mxu0 0.0
        %2939 = vmatprep.subr.mxu0 0.0
        %2940 = vmatpush1.msra.mxu0 0.0
        %2941 = vmatprep.subr.mxu0 0.0
        %2942 = vmatpush1.msra.mxu0 0.0
        %2943 = vmatprep.subr.mxu0 0.0
        %2944 = vmatpush1.msra.mxu0 0.0
        %2945 = vmatprep.subr.mxu0 0.0
        %2946 = vmatpush1.msra.mxu0 0.0
        %2947 = vmatprep.subr.mxu0 0.0
        %2948 = vmatpush1.msra.mxu0 0.0
        %2949 = vmatprep.subr.mxu0 0.0
        %2950 = vmatpush1.msra.mxu0 0.0
        %2951 = vmatprep.subr.mxu0 0.0
        %2952 = vmatpush1.msra.mxu0 0.0
        %2953 = vmatprep.subr.mxu0 0.0
        %2954 = vmatpush1.msra.mxu0 0.0
        %2955 = vmatprep.subr.mxu0 0.0
        %2956 = vmatpush1.msra.mxu0 0.0
        %2957 = vmatprep.subr.mxu0 0.0
        %2958 = vmatpush1.msra.mxu0 0.0
        %2959 = vmatprep.subr.mxu0 0.0
        %2960 = vmatpush1.msra.mxu0 0.0
        %2961 = vmatprep.subr.mxu0 0.0
        %2962 = vmatpush1.msra.mxu0 0.0
        %2963 = vmatprep.subr.mxu0 0.0
        %2964 = vmatpush1.msra.mxu0 0.0
        %2965 = vmatprep.mubr.f32.mxu0 0.0
        %2966 = vmatmul.mubr.f32.gmra.mrb[0].mxu0 %v2829
        %v2967 = vpop.f32.mrb[0].mxu0
        %v2968 = vadd.f32 %v2815, %v2967
        %v2969 = vpop.f32.mrb[0].mxu0
        %2970 = vdwg.mxu0
        %2971 = vmatprep.subr.mxu0 0.0
        %2972 = vmatpush1.msra.mxu0 %v2791
        %2973 = vmatprep.subr.mxu0 0.0
        %2974 = vmatpush1.msra.mxu0 %v2792
        %2975 = vmatprep.subr.mxu0 0.0
        %2976 = vmatpush1.msra.mxu0 %v2793
        %2977 = vmatprep.subr.mxu0 0.0
        %2978 = vmatpush1.msra.mxu0 %v2794
        %2979 = vmatprep.subr.mxu0 0.0
        %2980 = vmatpush1.msra.mxu0 0.0
        %2981 = vmatprep.subr.mxu0 0.0
        %2982 = vmatpush1.msra.mxu0 0.0
        %2983 = vmatprep.subr.mxu0 0.0
        %2984 = vmatpush1.msra.mxu0 0.0
        %2985 = vmatprep.subr.mxu0 0.0
        %2986 = vmatpush1.msra.mxu0 0.0
        %2987 = vmatprep.subr.mxu0 0.0
        %2988 = vmatpush1.msra.mxu0 0.0
        %2989 = vmatprep.subr.mxu0 0.0
        %2990 = vmatpush1.msra.mxu0 0.0
        %2991 = vmatprep.subr.mxu0 0.0
        %2992 = vmatpush1.msra.mxu0 0.0
        %2993 = vmatprep.subr.mxu0 0.0
        %2994 = vmatpush1.msra.mxu0 0.0
        %2995 = vmatprep.subr.mxu0 0.0
        %2996 = vmatpush1.msra.mxu0 0.0
        %2997 = vmatprep.subr.mxu0 0.0
        %2998 = vmatpush1.msra.mxu0 0.0
        %2999 = vmatprep.subr.mxu0 0.0
        %3000 = vmatpush1.msra.mxu0 0.0
        %3001 = vmatprep.subr.mxu0 0.0
        %3002 = vmatpush1.msra.mxu0 0.0
        %3003 = vmatprep.subr.mxu0 0.0
        %3004 = vmatpush1.msra.mxu0 0.0
        %3005 = vmatprep.subr.mxu0 0.0
        %3006 = vmatpush1.msra.mxu0 0.0
        %3007 = vmatprep.subr.mxu0 0.0
        %3008 = vmatpush1.msra.mxu0 0.0
        %3009 = vmatprep.subr.mxu0 0.0
        %3010 = vmatpush1.msra.mxu0 0.0
        %3011 = vmatprep.subr.mxu0 0.0
        %3012 = vmatpush1.msra.mxu0 0.0
        %3013 = vmatprep.subr.mxu0 0.0
        %3014 = vmatpush1.msra.mxu0 0.0
        %3015 = vmatprep.subr.mxu0 0.0
        %3016 = vmatpush1.msra.mxu0 0.0
        %3017 = vmatprep.subr.mxu0 0.0
        %3018 = vmatpush1.msra.mxu0 0.0
        %3019 = vmatprep.subr.mxu0 0.0
        %3020 = vmatpush1.msra.mxu0 0.0
        %3021 = vmatprep.subr.mxu0 0.0
        %3022 = vmatpush1.msra.mxu0 0.0
        %3023 = vmatprep.subr.mxu0 0.0
        %3024 = vmatpush1.msra.mxu0 0.0
        %3025 = vmatprep.subr.mxu0 0.0
        %3026 = vmatpush1.msra.mxu0 0.0
        %3027 = vmatprep.subr.mxu0 0.0
        %3028 = vmatpush1.msra.mxu0 0.0
        %3029 = vmatprep.subr.mxu0 0.0
        %3030 = vmatpush1.msra.mxu0 0.0
        %3031 = vmatprep.subr.mxu0 0.0
        %3032 = vmatpush1.msra.mxu0 0.0
        %3033 = vmatprep.subr.mxu0 0.0
        %3034 = vmatpush1.msra.mxu0 0.0
        %3035 = vmatprep.mubr.f32.mxu0 0.0
        %3036 = vmatmul.mubr.f32.gmra.mrb[0].mxu0 %v2829
        %v3037 = vpop.f32.mrb[0].mxu0
        %v3038 = vadd.f32 %v2819, %v3037
        %v3039 = vpop.f32.mrb[0].mxu0
        %3040 = vdwg.mxu0
        %3041 = vmatprep.subr.mxu0 0.0
        %3042 = vmatpush1.msra.mxu0 %v2795
        %3043 = vmatprep.subr.mxu0 0.0
        %3044 = vmatpush1.msra.mxu0 %v2796
        %3045 = vmatprep.subr.mxu0 0.0
        %3046 = vmatpush1.msra.mxu0 %v2797
        %3047 = vmatprep.subr.mxu0 0.0
        %3048 = vmatpush1.msra.mxu0 %v2798
        %3049 = vmatprep.subr.mxu0 0.0
        %3050 = vmatpush1.msra.mxu0 0.0
        %3051 = vmatprep.subr.mxu0 0.0
        %3052 = vmatpush1.msra.mxu0 0.0
        %3053 = vmatprep.subr.mxu0 0.0
        %3054 = vmatpush1.msra.mxu0 0.0
        %3055 = vmatprep.subr.mxu0 0.0
        %3056 = vmatpush1.msra.mxu0 0.0
        %3057 = vmatprep.subr.mxu0 0.0
        %3058 = vmatpush1.msra.mxu0 0.0
        %3059 = vmatprep.subr.mxu0 0.0
        %3060 = vmatpush1.msra.mxu0 0.0
        %3061 = vmatprep.subr.mxu0 0.0
        %3062 = vmatpush1.msra.mxu0 0.0
        %3063 = vmatprep.subr.mxu0 0.0
        %3064 = vmatpush1.msra.mxu0 0.0
        %3065 = vmatprep.subr.mxu0 0.0
        %3066 = vmatpush1.msra.mxu0 0.0
        %3067 = vmatprep.subr.mxu0 0.0
        %3068 = vmatpush1.msra.mxu0 0.0
        %3069 = vmatprep.subr.mxu0 0.0
        %3070 = vmatpush1.msra.mxu0 0.0
        %3071 = vmatprep.subr.mxu0 0.0
        %3072 = vmatpush1.msra.mxu0 0.0
        %3073 = vmatprep.subr.mxu0 0.0
        %3074 = vmatpush1.msra.mxu0 0.0
        %3075 = vmatprep.subr.mxu0 0.0
        %3076 = vmatpush1.msra.mxu0 0.0
        %3077 = vmatprep.subr.mxu0 0.0
        %3078 = vmatpush1.msra.mxu0 0.0
        %3079 = vmatprep.subr.mxu0 0.0
        %3080 = vmatpush1.msra.mxu0 0.0
        %3081 = vmatprep.subr.mxu0 0.0
        %3082 = vmatpush1.msra.mxu0 0.0
        %3083 = vmatprep.subr.mxu0 0.0
        %3084 = vmatpush1.msra.mxu0 0.0
        %3085 = vmatprep.subr.mxu0 0.0
        %3086 = vmatpush1.msra.mxu0 0.0
        %3087 = vmatprep.subr.mxu0 0.0
        %3088 = vmatpush1.msra.mxu0 0.0
        %3089 = vmatprep.subr.mxu0 0.0
        %3090 = vmatpush1.msra.mxu0 0.0
        %3091 = vmatprep.subr.mxu0 0.0
        %3092 = vmatpush1.msra.mxu0 0.0
        %3093 = vmatprep.subr.mxu0 0.0
        %3094 = vmatpush1.msra.mxu0 0.0
        %3095 = vmatprep.subr.mxu0 0.0
        %3096 = vmatpush1.msra.mxu0 0.0
        %3097 = vmatprep.subr.mxu0 0.0
        %3098 = vmatpush1.msra.mxu0 0.0
        %3099 = vmatprep.subr.mxu0 0.0
        %3100 = vmatpush1.msra.mxu0 0.0
        %3101 = vmatprep.subr.mxu0 0.0
        %3102 = vmatpush1.msra.mxu0 0.0
        %3103 = vmatprep.subr.mxu0 0.0
        %3104 = vmatpush1.msra.mxu0 0.0
        %3105 = vmatprep.mubr.f32.mxu0 0.0
        %3106 = vmatmul.mubr.f32.gmra.mrb[0].mxu0 %v2829
        %v3107 = vpop.f32.mrb[0].mxu0
        %v3108 = vadd.f32 %v2823, %v3107
        %v3109 = vpop.f32.mrb[0].mxu0
        %3110 = vdwg.mxu0
        %v3111 = vmul.f32 %v2898, %v608
        %v3112 = vmul.f32 %v2968, %v608
        %v3113 = vmul.f32 %v3038, %v608
        %v3114 = vmul.f32 %v3108, %v608
        %v3116 = vsel %vm967, %v2898, 0
        %3118 = vmatprep.subr.mxu0 0.0
        %3119 = vmatpush1.msra.mxu0 %v610
        %3120 = vmatprep.subr.mxu0 0.0
        %3121 = vmatpush1.msra.mxu0 0.0
        %3122 = vmatprep.subr.mxu0 0.0
        %3123 = vmatpush1.msra.mxu0 0.0
        %3124 = vmatprep.subr.mxu0 0.0
        %3125 = vmatpush1.msra.mxu0 0.0
        %3126 = vmatprep.subr.mxu0 0.0
        %3127 = vmatpush1.msra.mxu0 0.0
        %3128 = vmatprep.subr.mxu0 0.0
        %3129 = vmatpush1.msra.mxu0 0.0
        %3130 = vmatprep.subr.mxu0 0.0
        %3131 = vmatpush1.msra.mxu0 0.0
        %3132 = vmatprep.subr.mxu0 0.0
        %3133 = vmatpush1.msra.mxu0 0.0
        %3134 = vmatprep.subr.mxu0 0.0
        %3135 = vmatpush1.msra.mxu0 0.0
        %3136 = vmatprep.subr.mxu0 0.0
        %3137 = vmatpush1.msra.mxu0 0.0
        %3138 = vmatprep.subr.mxu0 0.0
        %3139 = vmatpush1.msra.mxu0 0.0
        %3140 = vmatprep.subr.mxu0 0.0
        %3141 = vmatpush1.msra.mxu0 0.0
        %3142 = vmatprep.subr.mxu0 0.0
        %3143 = vmatpush1.msra.mxu0 0.0
        %3144 = vmatprep.subr.mxu0 0.0
        %3145 = vmatpush1.msra.mxu0 0.0
        %3146 = vmatprep.subr.mxu0 0.0
        %3147 = vmatpush1.msra.mxu0 0.0
        %3148 = vmatprep.subr.mxu0 0.0
        %3149 = vmatpush1.msra.mxu0 0.0
        %3150 = vmatprep.subr.mxu0 0.0
        %3151 = vmatpush1.msra.mxu0 0.0
        %3152 = vmatprep.subr.mxu0 0.0
        %3153 = vmatpush1.msra.mxu0 0.0
        %3154 = vmatprep.subr.mxu0 0.0
        %3155 = vmatpush1.msra.mxu0 0.0
        %3156 = vmatprep.subr.mxu0 0.0
        %3157 = vmatpush1.msra.mxu0 0.0
        %3158 = vmatprep.subr.mxu0 0.0
        %3159 = vmatpush1.msra.mxu0 0.0
        %3160 = vmatprep.subr.mxu0 0.0
        %3161 = vmatpush1.msra.mxu0 0.0
        %3162 = vmatprep.subr.mxu0 0.0
        %3163 = vmatpush1.msra.mxu0 0.0
        %3164 = vmatprep.subr.mxu0 0.0
        %3165 = vmatpush1.msra.mxu0 0.0
        %3166 = vmatprep.subr.mxu0 0.0
        %3167 = vmatpush1.msra.mxu0 0.0
        %3168 = vmatprep.subr.mxu0 0.0
        %3169 = vmatpush1.msra.mxu0 0.0
        %3170 = vmatprep.subr.mxu0 0.0
        %3171 = vmatpush1.msra.mxu0 0.0
        %3172 = vmatprep.subr.mxu0 0.0
        %3173 = vmatpush1.msra.mxu0 0.0
        %3174 = vmatprep.subr.mxu0 0.0
        %3175 = vmatpush1.msra.mxu0 0.0
        %3176 = vmatprep.subr.mxu0 0.0
        %3177 = vmatpush1.msra.mxu0 0.0
        %3178 = vmatprep.subr.mxu0 0.0
        %3179 = vmatpush1.msra.mxu0 0.0
        %3180 = vmatprep.subr.mxu0 0.0
        %3181 = vmatpush1.msra.mxu0 0.0
        %3182 = vmatprep.mubr.f32.mxu0 0.0
        %3183 = vmatmul.mubr.f32.gmra.mrb[0].mxu0 %v3116
        %v3184 = vpop.f32.mrb[0].mxu0
        %v3185 = vadd.f32 0.0, %v3184
        %v3186 = vpop.f32.mrb[0].mxu0
        %3187 = vdwg.mxu0
        %v3189 = vsel %vm967, %v2968, 0
        %3191 = vmatprep.subr.mxu0 0.0
        %3192 = vmatpush1.msra.mxu0 %v611
        %3193 = vmatprep.subr.mxu0 0.0
        %3194 = vmatpush1.msra.mxu0 0.0
        %3195 = vmatprep.subr.mxu0 0.0
        %3196 = vmatpush1.msra.mxu0 0.0
        %3197 = vmatprep.subr.mxu0 0.0
        %3198 = vmatpush1.msra.mxu0 0.0
        %3199 = vmatprep.subr.mxu0 0.0
        %3200 = vmatpush1.msra.mxu0 0.0
        %3201 = vmatprep.subr.mxu0 0.0
        %3202 = vmatpush1.msra.mxu0 0.0
        %3203 = vmatprep.subr.mxu0 0.0
        %3204 = vmatpush1.msra.mxu0 0.0
        %3205 = vmatprep.subr.mxu0 0.0
        %3206 = vmatpush1.msra.mxu0 0.0
        %3207 = vmatprep.subr.mxu0 0.0
        %3208 = vmatpush1.msra.mxu0 0.0
        %3209 = vmatprep.subr.mxu0 0.0
        %3210 = vmatpush1.msra.mxu0 0.0
        %3211 = vmatprep.subr.mxu0 0.0
        %3212 = vmatpush1.msra.mxu0 0.0
        %3213 = vmatprep.subr.mxu0 0.0
        %3214 = vmatpush1.msra.mxu0 0.0
        %3215 = vmatprep.subr.mxu0 0.0
        %3216 = vmatpush1.msra.mxu0 0.0
        %3217 = vmatprep.subr.mxu0 0.0
        %3218 = vmatpush1.msra.mxu0 0.0
        %3219 = vmatprep.subr.mxu0 0.0
        %3220 = vmatpush1.msra.mxu0 0.0
        %3221 = vmatprep.subr.mxu0 0.0
        %3222 = vmatpush1.msra.mxu0 0.0
        %3223 = vmatprep.subr.mxu0 0.0
        %3224 = vmatpush1.msra.mxu0 0.0
        %3225 = vmatprep.subr.mxu0 0.0
        %3226 = vmatpush1.msra.mxu0 0.0
        %3227 = vmatprep.subr.mxu0 0.0
        %3228 = vmatpush1.msra.mxu0 0.0
        %3229 = vmatprep.subr.mxu0 0.0
        %3230 = vmatpush1.msra.mxu0 0.0
        %3231 = vmatprep.subr.mxu0 0.0
        %3232 = vmatpush1.msra.mxu0 0.0
        %3233 = vmatprep.subr.mxu0 0.0
        %3234 = vmatpush1.msra.mxu0 0.0
        %3235 = vmatprep.subr.mxu0 0.0
        %3236 = vmatpush1.msra.mxu0 0.0
        %3237 = vmatprep.subr.mxu0 0.0
        %3238 = vmatpush1.msra.mxu0 0.0
        %3239 = vmatprep.subr.mxu0 0.0
        %3240 = vmatpush1.msra.mxu0 0.0
        %3241 = vmatprep.subr.mxu0 0.0
        %3242 = vmatpush1.msra.mxu0 0.0
        %3243 = vmatprep.subr.mxu0 0.0
        %3244 = vmatpush1.msra.mxu0 0.0
        %3245 = vmatprep.subr.mxu0 0.0
        %3246 = vmatpush1.msra.mxu0 0.0
        %3247 = vmatprep.subr.mxu0 0.0
        %3248 = vmatpush1.msra.mxu0 0.0
        %3249 = vmatprep.subr.mxu0 0.0
        %3250 = vmatpush1.msra.mxu0 0.0
        %3251 = vmatprep.subr.mxu0 0.0
        %3252 = vmatpush1.msra.mxu0 0.0
        %3253 = vmatprep.subr.mxu0 0.0
        %3254 = vmatpush1.msra.mxu0 0.0
        %3255 = vmatprep.mubr.f32.mxu0 0.0
        %3256 = vmatmul.mubr.f32.gmra.mrb[0].mxu0 %v3189
        %v3257 = vpop.f32.mrb[0].mxu0
        %v3258 = vadd.f32 0.0, %v3257
        %v3259 = vpop.f32.mrb[0].mxu0
        %3260 = vdwg.mxu0
        %v3262 = vsel %vm967, %v3038, 0
        %3264 = vmatprep.subr.mxu0 0.0
        %3265 = vmatpush1.msra.mxu0 %v612
        %3266 = vmatprep.subr.mxu0 0.0
        %3267 = vmatpush1.msra.mxu0 0.0
        %3268 = vmatprep.subr.mxu0 0.0
        %3269 = vmatpush1.msra.mxu0 0.0
        %3270 = vmatprep.subr.mxu0 0.0
        %3271 = vmatpush1.msra.mxu0 0.0
        %3272 = vmatprep.subr.mxu0 0.0
        %3273 = vmatpush1.msra.mxu0 0.0
        %3274 = vmatprep.subr.mxu0 0.0
        %3275 = vmatpush1.msra.mxu0 0.0
        %3276 = vmatprep.subr.mxu0 0.0
        %3277 = vmatpush1.msra.mxu0 0.0
        %3278 = vmatprep.subr.mxu0 0.0
        %3279 = vmatpush1.msra.mxu0 0.0
        %3280 = vmatprep.subr.mxu0 0.0
        %3281 = vmatpush1.msra.mxu0 0.0
        %3282 = vmatprep.subr.mxu0 0.0
        %3283 = vmatpush1.msra.mxu0 0.0
        %3284 = vmatprep.subr.mxu0 0.0
        %3285 = vmatpush1.msra.mxu0 0.0
        %3286 = vmatprep.subr.mxu0 0.0
        %3287 = vmatpush1.msra.mxu0 0.0
        %3288 = vmatprep.subr.mxu0 0.0
        %3289 = vmatpush1.msra.mxu0 0.0
        %3290 = vmatprep.subr.mxu0 0.0
        %3291 = vmatpush1.msra.mxu0 0.0
        %3292 = vmatprep.subr.mxu0 0.0
        %3293 = vmatpush1.msra.mxu0 0.0
        %3294 = vmatprep.subr.mxu0 0.0
        %3295 = vmatpush1.msra.mxu0 0.0
        %3296 = vmatprep.subr.mxu0 0.0
        %3297 = vmatpush1.msra.mxu0 0.0
        %3298 = vmatprep.subr.mxu0 0.0
        %3299 = vmatpush1.msra.mxu0 0.0
        %3300 = vmatprep.subr.mxu0 0.0
        %3301 = vmatpush1.msra.mxu0 0.0
        %3302 = vmatprep.subr.mxu0 0.0
        %3303 = vmatpush1.msra.mxu0 0.0
        %3304 = vmatprep.subr.mxu0 0.0
        %3305 = vmatpush1.msra.mxu0 0.0
        %3306 = vmatprep.subr.mxu0 0.0
        %3307 = vmatpush1.msra.mxu0 0.0
        %3308 = vmatprep.subr.mxu0 0.0
        %3309 = vmatpush1.msra.mxu0 0.0
        %3310 = vmatprep.subr.mxu0 0.0
        %3311 = vmatpush1.msra.mxu0 0.0
        %3312 = vmatprep.subr.mxu0 0.0
        %3313 = vmatpush1.msra.mxu0 0.0
        %3314 = vmatprep.subr.mxu0 0.0
        %3315 = vmatpush1.msra.mxu0 0.0
        %3316 = vmatprep.subr.mxu0 0.0
        %3317 = vmatpush1.msra.mxu0 0.0
        %3318 = vmatprep.subr.mxu0 0.0
        %3319 = vmatpush1.msra.mxu0 0.0
        %3320 = vmatprep.subr.mxu0 0.0
        %3321 = vmatpush1.msra.mxu0 0.0
        %3322 = vmatprep.subr.mxu0 0.0
        %3323 = vmatpush1.msra.mxu0 0.0
        %3324 = vmatprep.subr.mxu0 0.0
        %3325 = vmatpush1.msra.mxu0 0.0
        %3326 = vmatprep.subr.mxu0 0.0
        %3327 = vmatpush1.msra.mxu0 0.0
        %3328 = vmatprep.mubr.f32.mxu0 0.0
        %3329 = vmatmul.mubr.f32.gmra.mrb[0].mxu0 %v3262
        %v3330 = vpop.f32.mrb[0].mxu0
        %v3331 = vadd.f32 0.0, %v3330
        %v3332 = vpop.f32.mrb[0].mxu0
        %3333 = vdwg.mxu0
        %v3335 = vsel %vm967, %v3108, 0
        %3337 = vmatprep.subr.mxu0 0.0
        %3338 = vmatpush1.msra.mxu0 %v613
        %3339 = vmatprep.subr.mxu0 0.0
        %3340 = vmatpush1.msra.mxu0 0.0
        %3341 = vmatprep.subr.mxu0 0.0
        %3342 = vmatpush1.msra.mxu0 0.0
        %3343 = vmatprep.subr.mxu0 0.0
        %3344 = vmatpush1.msra.mxu0 0.0
        %3345 = vmatprep.subr.mxu0 0.0
        %3346 = vmatpush1.msra.mxu0 0.0
        %3347 = vmatprep.subr.mxu0 0.0
        %3348 = vmatpush1.msra.mxu0 0.0
        %3349 = vmatprep.subr.mxu0 0.0
        %3350 = vmatpush1.msra.mxu0 0.0
        %3351 = vmatprep.subr.mxu0 0.0
        %3352 = vmatpush1.msra.mxu0 0.0
        %3353 = vmatprep.subr.mxu0 0.0
        %3354 = vmatpush1.msra.mxu0 0.0
        %3355 = vmatprep.subr.mxu0 0.0
        %3356 = vmatpush1.msra.mxu0 0.0
        %3357 = vmatprep.subr.mxu0 0.0
        %3358 = vmatpush1.msra.mxu0 0.0
        %3359 = vmatprep.subr.mxu0 0.0
        %3360 = vmatpush1.msra.mxu0 0.0
        %3361 = vmatprep.subr.mxu0 0.0
        %3362 = vmatpush1.msra.mxu0 0.0
        %3363 = vmatprep.subr.mxu0 0.0
        %3364 = vmatpush1.msra.mxu0 0.0
        %3365 = vmatprep.subr.mxu0 0.0
        %3366 = vmatpush1.msra.mxu0 0.0
        %3367 = vmatprep.subr.mxu0 0.0
        %3368 = vmatpush1.msra.mxu0 0.0
        %3369 = vmatprep.subr.mxu0 0.0
        %3370 = vmatpush1.msra.mxu0 0.0
        %3371 = vmatprep.subr.mxu0 0.0
        %3372 = vmatpush1.msra.mxu0 0.0
        %3373 = vmatprep.subr.mxu0 0.0
        %3374 = vmatpush1.msra.mxu0 0.0
        %3375 = vmatprep.subr.mxu0 0.0
        %3376 = vmatpush1.msra.mxu0 0.0
        %3377 = vmatprep.subr.mxu0 0.0
        %3378 = vmatpush1.msra.mxu0 0.0
        %3379 = vmatprep.subr.mxu0 0.0
        %3380 = vmatpush1.msra.mxu0 0.0
        %3381 = vmatprep.subr.mxu0 0.0
        %3382 = vmatpush1.msra.mxu0 0.0
        %3383 = vmatprep.subr.mxu0 0.0
        %3384 = vmatpush1.msra.mxu0 0.0
        %3385 = vmatprep.subr.mxu0 0.0
        %3386 = vmatpush1.msra.mxu0 0.0
        %3387 = vmatprep.subr.mxu0 0.0
        %3388 = vmatpush1.msra.mxu0 0.0
        %3389 = vmatprep.subr.mxu0 0.0
        %3390 = vmatpush1.msra.mxu0 0.0
        %3391 = vmatprep.subr.mxu0 0.0
        %3392 = vmatpush1.msra.mxu0 0.0
        %3393 = vmatprep.subr.mxu0 0.0
        %3394 = vmatpush1.msra.mxu0 0.0
        %3395 = vmatprep.subr.mxu0 0.0
        %3396 = vmatpush1.msra.mxu0 0.0
        %3397 = vmatprep.subr.mxu0 0.0
        %3398 = vmatpush1.msra.mxu0 0.0
        %3399 = vmatprep.subr.mxu0 0.0
        %3400 = vmatpush1.msra.mxu0 0.0
        %3401 = vmatprep.mubr.f32.mxu0 0.0
        %3402 = vmatmul.mubr.f32.gmra.mrb[0].mxu0 %v3335
        %v3403 = vpop.f32.mrb[0].mxu0
        %v3404 = vadd.f32 0.0, %v3403
        %v3405 = vpop.f32.mrb[0].mxu0
        %3406 = vdwg.mxu0
        %v3407 = vmul.f32 %v3185, %v609
        %v3408 = vmul.f32 %v3258, %v609
        %v3409 = vmul.f32 %v3331, %v609
        %v3410 = vmul.f32 %v3404, %v609
        %v3411 = vadd.f32 %v3111, %v3407
        %v3412 = vadd.f32 %v3112, %v3408
        %v3413 = vadd.f32 %v3113, %v3409
        %v3414 = vadd.f32 %v3114, %v3410
        %v3415 = vmul.f32 %v2898, %v1270
        %v3416 = vmul.f32 %v2968, %v1270
        %v3417 = vmul.f32 %v3038, %v1270
        %v3418 = vmul.f32 %v3108, %v1270
        %3419 = vrot.lane.b32.xlu0 %v2898, 120
        %v3420 = vpop.permute.xlu0 %3419
        %v3421 = vsel %vm967, %v3420, 0
        %3423 = vmatprep.subr.mxu0 0.0
        %3424 = vmatpush1.msra.mxu0 %v610
        %3425 = vmatprep.subr.mxu0 0.0
        %3426 = vmatpush1.msra.mxu0 0.0
        %3427 = vmatprep.subr.mxu0 0.0
        %3428 = vmatpush1.msra.mxu0 0.0
        %3429 = vmatprep.subr.mxu0 0.0
        %3430 = vmatpush1.msra.mxu0 0.0
        %3431 = vmatprep.subr.mxu0 0.0
        %3432 = vmatpush1.msra.mxu0 0.0
        %3433 = vmatprep.subr.mxu0 0.0
        %3434 = vmatpush1.msra.mxu0 0.0
        %3435 = vmatprep.subr.mxu0 0.0
        %3436 = vmatpush1.msra.mxu0 0.0
        %3437 = vmatprep.subr.mxu0 0.0
        %3438 = vmatpush1.msra.mxu0 0.0
        %3439 = vmatprep.subr.mxu0 0.0
        %3440 = vmatpush1.msra.mxu0 0.0
        %3441 = vmatprep.subr.mxu0 0.0
        %3442 = vmatpush1.msra.mxu0 0.0
        %3443 = vmatprep.subr.mxu0 0.0
        %3444 = vmatpush1.msra.mxu0 0.0
        %3445 = vmatprep.subr.mxu0 0.0
        %3446 = vmatpush1.msra.mxu0 0.0
        %3447 = vmatprep.subr.mxu0 0.0
        %3448 = vmatpush1.msra.mxu0 0.0
        %3449 = vmatprep.subr.mxu0 0.0
        %3450 = vmatpush1.msra.mxu0 0.0
        %3451 = vmatprep.subr.mxu0 0.0
        %3452 = vmatpush1.msra.mxu0 0.0
        %3453 = vmatprep.subr.mxu0 0.0
        %3454 = vmatpush1.msra.mxu0 0.0
        %3455 = vmatprep.subr.mxu0 0.0
        %3456 = vmatpush1.msra.mxu0 0.0
        %3457 = vmatprep.subr.mxu0 0.0
        %3458 = vmatpush1.msra.mxu0 0.0
        %3459 = vmatprep.subr.mxu0 0.0
        %3460 = vmatpush1.msra.mxu0 0.0
        %3461 = vmatprep.subr.mxu0 0.0
        %3462 = vmatpush1.msra.mxu0 0.0
        %3463 = vmatprep.subr.mxu0 0.0
        %3464 = vmatpush1.msra.mxu0 0.0
        %3465 = vmatprep.subr.mxu0 0.0
        %3466 = vmatpush1.msra.mxu0 0.0
        %3467 = vmatprep.subr.mxu0 0.0
        %3468 = vmatpush1.msra.mxu0 0.0
        %3469 = vmatprep.subr.mxu0 0.0
        %3470 = vmatpush1.msra.mxu0 0.0
        %3471 = vmatprep.subr.mxu0 0.0
        %3472 = vmatpush1.msra.mxu0 0.0
        %3473 = vmatprep.subr.mxu0 0.0
        %3474 = vmatpush1.msra.mxu0 0.0
        %3475 = vmatprep.subr.mxu0 0.0
        %3476 = vmatpush1.msra.mxu0 0.0
        %3477 = vmatprep.subr.mxu0 0.0
        %3478 = vmatpush1.msra.mxu0 0.0
        %3479 = vmatprep.subr.mxu0 0.0
        %3480 = vmatpush1.msra.mxu0 0.0
        %3481 = vmatprep.subr.mxu0 0.0
        %3482 = vmatpush1.msra.mxu0 0.0
        %3483 = vmatprep.subr.mxu0 0.0
        %3484 = vmatpush1.msra.mxu0 0.0
        %3485 = vmatprep.subr.mxu0 0.0
        %3486 = vmatpush1.msra.mxu0 0.0
        %3487 = vmatprep.mubr.f32.mxu0 0.0
        %3488 = vmatmul.mubr.f32.gmra.mrb[0].mxu0 %v3421
        %v3489 = vpop.f32.mrb[0].mxu0
        %v3490 = vadd.f32 0.0, %v3489
        %v3491 = vpop.f32.mrb[0].mxu0
        %3492 = vdwg.mxu0
        %3493 = vrot.lane.b32.xlu0 %v2968, 120
        %v3494 = vpop.permute.xlu0 %3493
        %v3495 = vsel %vm967, %v3494, 0
        %3497 = vmatprep.subr.mxu0 0.0
        %3498 = vmatpush1.msra.mxu0 %v611
        %3499 = vmatprep.subr.mxu0 0.0
        %3500 = vmatpush1.msra.mxu0 0.0
        %3501 = vmatprep.subr.mxu0 0.0
        %3502 = vmatpush1.msra.mxu0 0.0
        %3503 = vmatprep.subr.mxu0 0.0
        %3504 = vmatpush1.msra.mxu0 0.0
        %3505 = vmatprep.subr.mxu0 0.0
        %3506 = vmatpush1.msra.mxu0 0.0
        %3507 = vmatprep.subr.mxu0 0.0
        %3508 = vmatpush1.msra.mxu0 0.0
        %3509 = vmatprep.subr.mxu0 0.0
        %3510 = vmatpush1.msra.mxu0 0.0
        %3511 = vmatprep.subr.mxu0 0.0
        %3512 = vmatpush1.msra.mxu0 0.0
        %3513 = vmatprep.subr.mxu0 0.0
        %3514 = vmatpush1.msra.mxu0 0.0
        %3515 = vmatprep.subr.mxu0 0.0
        %3516 = vmatpush1.msra.mxu0 0.0
        %3517 = vmatprep.subr.mxu0 0.0
        %3518 = vmatpush1.msra.mxu0 0.0
        %3519 = vmatprep.subr.mxu0 0.0
        %3520 = vmatpush1.msra.mxu0 0.0
        %3521 = vmatprep.subr.mxu0 0.0
        %3522 = vmatpush1.msra.mxu0 0.0
        %3523 = vmatprep.subr.mxu0 0.0
        %3524 = vmatpush1.msra.mxu0 0.0
        %3525 = vmatprep.subr.mxu0 0.0
        %3526 = vmatpush1.msra.mxu0 0.0
        %3527 = vmatprep.subr.mxu0 0.0
        %3528 = vmatpush1.msra.mxu0 0.0
        %3529 = vmatprep.subr.mxu0 0.0
        %3530 = vmatpush1.msra.mxu0 0.0
        %3531 = vmatprep.subr.mxu0 0.0
        %3532 = vmatpush1.msra.mxu0 0.0
        %3533 = vmatprep.subr.mxu0 0.0
        %3534 = vmatpush1.msra.mxu0 0.0
        %3535 = vmatprep.subr.mxu0 0.0
        %3536 = vmatpush1.msra.mxu0 0.0
        %3537 = vmatprep.subr.mxu0 0.0
        %3538 = vmatpush1.msra.mxu0 0.0
        %3539 = vmatprep.subr.mxu0 0.0
        %3540 = vmatpush1.msra.mxu0 0.0
        %3541 = vmatprep.subr.mxu0 0.0
        %3542 = vmatpush1.msra.mxu0 0.0
        %3543 = vmatprep.subr.mxu0 0.0
        %3544 = vmatpush1.msra.mxu0 0.0
        %3545 = vmatprep.subr.mxu0 0.0
        %3546 = vmatpush1.msra.mxu0 0.0
        %3547 = vmatprep.subr.mxu0 0.0
        %3548 = vmatpush1.msra.mxu0 0.0
        %3549 = vmatprep.subr.mxu0 0.0
        %3550 = vmatpush1.msra.mxu0 0.0
        %3551 = vmatprep.subr.mxu0 0.0
        %3552 = vmatpush1.msra.mxu0 0.0
        %3553 = vmatprep.subr.mxu0 0.0
        %3554 = vmatpush1.msra.mxu0 0.0
        %3555 = vmatprep.subr.mxu0 0.0
        %3556 = vmatpush1.msra.mxu0 0.0
        %3557 = vmatprep.subr.mxu0 0.0
        %3558 = vmatpush1.msra.mxu0 0.0
        %3559 = vmatprep.subr.mxu0 0.0
        %3560 = vmatpush1.msra.mxu0 0.0
        %3561 = vmatprep.mubr.f32.mxu0 0.0
        %3562 = vmatmul.mubr.f32.gmra.mrb[0].mxu0 %v3495
        %v3563 = vpop.f32.mrb[0].mxu0
        %v3564 = vadd.f32 0.0, %v3563
        %v3565 = vpop.f32.mrb[0].mxu0
        %3566 = vdwg.mxu0
        %3567 = vrot.lane.b32.xlu0 %v3038, 120
        %v3568 = vpop.permute.xlu0 %3567
        %v3569 = vsel %vm967, %v3568, 0
        %3571 = vmatprep.subr.mxu0 0.0
        %3572 = vmatpush1.msra.mxu0 %v612
        %3573 = vmatprep.subr.mxu0 0.0
        %3574 = vmatpush1.msra.mxu0 0.0
        %3575 = vmatprep.subr.mxu0 0.0
        %3576 = vmatpush1.msra.mxu0 0.0
        %3577 = vmatprep.subr.mxu0 0.0
        %3578 = vmatpush1.msra.mxu0 0.0
        %3579 = vmatprep.subr.mxu0 0.0
        %3580 = vmatpush1.msra.mxu0 0.0
        %3581 = vmatprep.subr.mxu0 0.0
        %3582 = vmatpush1.msra.mxu0 0.0
        %3583 = vmatprep.subr.mxu0 0.0
        %3584 = vmatpush1.msra.mxu0 0.0
        %3585 = vmatprep.subr.mxu0 0.0
        %3586 = vmatpush1.msra.mxu0 0.0
        %3587 = vmatprep.subr.mxu0 0.0
        %3588 = vmatpush1.msra.mxu0 0.0
        %3589 = vmatprep.subr.mxu0 0.0
        %3590 = vmatpush1.msra.mxu0 0.0
        %3591 = vmatprep.subr.mxu0 0.0
        %3592 = vmatpush1.msra.mxu0 0.0
        %3593 = vmatprep.subr.mxu0 0.0
        %3594 = vmatpush1.msra.mxu0 0.0
        %3595 = vmatprep.subr.mxu0 0.0
        %3596 = vmatpush1.msra.mxu0 0.0
        %3597 = vmatprep.subr.mxu0 0.0
        %3598 = vmatpush1.msra.mxu0 0.0
        %3599 = vmatprep.subr.mxu0 0.0
        %3600 = vmatpush1.msra.mxu0 0.0
        %3601 = vmatprep.subr.mxu0 0.0
        %3602 = vmatpush1.msra.mxu0 0.0
        %3603 = vmatprep.subr.mxu0 0.0
        %3604 = vmatpush1.msra.mxu0 0.0
        %3605 = vmatprep.subr.mxu0 0.0
        %3606 = vmatpush1.msra.mxu0 0.0
        %3607 = vmatprep.subr.mxu0 0.0
        %3608 = vmatpush1.msra.mxu0 0.0
        %3609 = vmatprep.subr.mxu0 0.0
        %3610 = vmatpush1.msra.mxu0 0.0
        %3611 = vmatprep.subr.mxu0 0.0
        %3612 = vmatpush1.msra.mxu0 0.0
        %3613 = vmatprep.subr.mxu0 0.0
        %3614 = vmatpush1.msra.mxu0 0.0
        %3615 = vmatprep.subr.mxu0 0.0
        %3616 = vmatpush1.msra.mxu0 0.0
        %3617 = vmatprep.subr.mxu0 0.0
        %3618 = vmatpush1.msra.mxu0 0.0
        %3619 = vmatprep.subr.mxu0 0.0
        %3620 = vmatpush1.msra.mxu0 0.0
        %3621 = vmatprep.subr.mxu0 0.0
        %3622 = vmatpush1.msra.mxu0 0.0
        %3623 = vmatprep.subr.mxu0 0.0
        %3624 = vmatpush1.msra.mxu0 0.0
        %3625 = vmatprep.subr.mxu0 0.0
        %3626 = vmatpush1.msra.mxu0 0.0
        %3627 = vmatprep.subr.mxu0 0.0
        %3628 = vmatpush1.msra.mxu0 0.0
        %3629 = vmatprep.subr.mxu0 0.0
        %3630 = vmatpush1.msra.mxu0 0.0
        %3631 = vmatprep.subr.mxu0 0.0
        %3632 = vmatpush1.msra.mxu0 0.0
        %3633 = vmatprep.subr.mxu0 0.0
        %3634 = vmatpush1.msra.mxu0 0.0
        %3635 = vmatprep.mubr.f32.mxu0 0.0
        %3636 = vmatmul.mubr.f32.gmra.mrb[0].mxu0 %v3569
        %v3637 = vpop.f32.mrb[0].mxu0
        %v3638 = vadd.f32 0.0, %v3637
        %v3639 = vpop.f32.mrb[0].mxu0
        %3640 = vdwg.mxu0
        %3641 = vrot.lane.b32.xlu0 %v3108, 120
        %v3642 = vpop.permute.xlu0 %3641
        %v3643 = vsel %vm967, %v3642, 0
        %3645 = vmatprep.subr.mxu0 0.0
        %3646 = vmatpush1.msra.mxu0 %v613
        %3647 = vmatprep.subr.mxu0 0.0
        %3648 = vmatpush1.msra.mxu0 0.0
        %3649 = vmatprep.subr.mxu0 0.0
        %3650 = vmatpush1.msra.mxu0 0.0
        %3651 = vmatprep.subr.mxu0 0.0
        %3652 = vmatpush1.msra.mxu0 0.0
        %3653 = vmatprep.subr.mxu0 0.0
        %3654 = vmatpush1.msra.mxu0 0.0
        %3655 = vmatprep.subr.mxu0 0.0
        %3656 = vmatpush1.msra.mxu0 0.0
        %3657 = vmatprep.subr.mxu0 0.0
        %3658 = vmatpush1.msra.mxu0 0.0
        %3659 = vmatprep.subr.mxu0 0.0
        %3660 = vmatpush1.msra.mxu0 0.0
        %3661 = vmatprep.subr.mxu0 0.0
        %3662 = vmatpush1.msra.mxu0 0.0
        %3663 = vmatprep.subr.mxu0 0.0
        %3664 = vmatpush1.msra.mxu0 0.0
        %3665 = vmatprep.subr.mxu0 0.0
        %3666 = vmatpush1.msra.mxu0 0.0
        %3667 = vmatprep.subr.mxu0 0.0
        %3668 = vmatpush1.msra.mxu0 0.0
        %3669 = vmatprep.subr.mxu0 0.0
        %3670 = vmatpush1.msra.mxu0 0.0
        %3671 = vmatprep.subr.mxu0 0.0
        %3672 = vmatpush1.msra.mxu0 0.0
        %3673 = vmatprep.subr.mxu0 0.0
        %3674 = vmatpush1.msra.mxu0 0.0
        %3675 = vmatprep.subr.mxu0 0.0
        %3676 = vmatpush1.msra.mxu0 0.0
        %3677 = vmatprep.subr.mxu0 0.0
        %3678 = vmatpush1.msra.mxu0 0.0
        %3679 = vmatprep.subr.mxu0 0.0
        %3680 = vmatpush1.msra.mxu0 0.0
        %3681 = vmatprep.subr.mxu0 0.0
        %3682 = vmatpush1.msra.mxu0 0.0
        %3683 = vmatprep.subr.mxu0 0.0
        %3684 = vmatpush1.msra.mxu0 0.0
        %3685 = vmatprep.subr.mxu0 0.0
        %3686 = vmatpush1.msra.mxu0 0.0
        %3687 = vmatprep.subr.mxu0 0.0
        %3688 = vmatpush1.msra.mxu0 0.0
        %3689 = vmatprep.subr.mxu0 0.0
        %3690 = vmatpush1.msra.mxu0 0.0
        %3691 = vmatprep.subr.mxu0 0.0
        %3692 = vmatpush1.msra.mxu0 0.0
        %3693 = vmatprep.subr.mxu0 0.0
        %3694 = vmatpush1.msra.mxu0 0.0
        %3695 = vmatprep.subr.mxu0 0.0
        %3696 = vmatpush1.msra.mxu0 0.0
        %3697 = vmatprep.subr.mxu0 0.0
        %3698 = vmatpush1.msra.mxu0 0.0
        %3699 = vmatprep.subr.mxu0 0.0
        %3700 = vmatpush1.msra.mxu0 0.0
        %3701 = vmatprep.subr.mxu0 0.0
        %3702 = vmatpush1.msra.mxu0 0.0
        %3703 = vmatprep.subr.mxu0 0.0
        %3704 = vmatpush1.msra.mxu0 0.0
        %3705 = vmatprep.subr.mxu0 0.0
        %3706 = vmatpush1.msra.mxu0 0.0
        %3707 = vmatprep.subr.mxu0 0.0
        %3708 = vmatpush1.msra.mxu0 0.0
        %3709 = vmatprep.mubr.f32.mxu0 0.0
        %3710 = vmatmul.mubr.f32.gmra.mrb[0].mxu0 %v3643
        %v3711 = vpop.f32.mrb[0].mxu0
        %v3712 = vadd.f32 0.0, %v3711
        %v3713 = vpop.f32.mrb[0].mxu0
        %3714 = vdwg.mxu0
        %v3715 = vmul.f32 %v3490, %v609
        %v3716 = vmul.f32 %v3564, %v609
        %v3717 = vmul.f32 %v3638, %v609
        %v3718 = vmul.f32 %v3712, %v609
        %3723 = vrot.lane.b32.xlu0 %v3715, 8
        %v3724 = vpop.permute.xlu0 %3723
        %3725 = vrot.lane.b32.xlu0 %v3716, 8
        %v3726 = vpop.permute.xlu0 %3725
        %3727 = vrot.lane.b32.xlu0 %v3717, 8
        %v3728 = vpop.permute.xlu0 %3727
        %3729 = vrot.lane.b32.xlu0 %v3718, 8
        %v3730 = vpop.permute.xlu0 %3729
        %v3735 = vadd.f32 %v3415, %v3724
        %v3736 = vadd.f32 %v3416, %v3726
        %v3737 = vadd.f32 %v3417, %v3728
        %v3738 = vadd.f32 %v3418, %v3730
        %3740 = vrot.lane.b32.xlu0 %v3735, 120
        %v3741 = vpop.permute.xlu0 %3740
        %v3743 = vsel %vm967, %v3411, 0
        %v3745 = vsel %vm967, %v3741, 0
        %3747 = vmatprep.subr.mxu0 0.0
        %3748 = vmatpush1.xpose.msra.mxu0 %v3745
        %3749 = vmatprep.subr.mxu0 0.0
        %3750 = vmatpush1.xpose.msra.mxu0 0.0
        %3751 = vmatprep.subr.mxu0 0.0
        %3752 = vmatpush1.xpose.msra.mxu0 0.0
        %3753 = vmatprep.subr.mxu0 0.0
        %3754 = vmatpush1.xpose.msra.mxu0 0.0
        %3755 = vmatprep.subr.mxu0 0.0
        %3756 = vmatpush1.xpose.msra.mxu0 0.0
        %3757 = vmatprep.subr.mxu0 0.0
        %3758 = vmatpush1.xpose.msra.mxu0 0.0
        %3759 = vmatprep.subr.mxu0 0.0
        %3760 = vmatpush1.xpose.msra.mxu0 0.0
        %3761 = vmatprep.subr.mxu0 0.0
        %3762 = vmatpush1.xpose.msra.mxu0 0.0
        %3763 = vmatprep.subr.mxu0 0.0
        %3764 = vmatpush1.xpose.msra.mxu0 0.0
        %3765 = vmatprep.subr.mxu0 0.0
        %3766 = vmatpush1.xpose.msra.mxu0 0.0
        %3767 = vmatprep.subr.mxu0 0.0
        %3768 = vmatpush1.xpose.msra.mxu0 0.0
        %3769 = vmatprep.subr.mxu0 0.0
        %3770 = vmatpush1.xpose.msra.mxu0 0.0
        %3771 = vmatprep.subr.mxu0 0.0
        %3772 = vmatpush1.xpose.msra.mxu0 0.0
        %3773 = vmatprep.subr.mxu0 0.0
        %3774 = vmatpush1.xpose.msra.mxu0 0.0
        %3775 = vmatprep.subr.mxu0 0.0
        %3776 = vmatpush1.xpose.msra.mxu0 0.0
        %3777 = vmatprep.subr.mxu0 0.0
        %3778 = vmatpush1.xpose.msra.mxu0 0.0
        %3779 = vmatprep.subr.mxu0 0.0
        %3780 = vmatpush1.xpose.msra.mxu0 0.0
        %3781 = vmatprep.subr.mxu0 0.0
        %3782 = vmatpush1.xpose.msra.mxu0 0.0
        %3783 = vmatprep.subr.mxu0 0.0
        %3784 = vmatpush1.xpose.msra.mxu0 0.0
        %3785 = vmatprep.subr.mxu0 0.0
        %3786 = vmatpush1.xpose.msra.mxu0 0.0
        %3787 = vmatprep.subr.mxu0 0.0
        %3788 = vmatpush1.xpose.msra.mxu0 0.0
        %3789 = vmatprep.subr.mxu0 0.0
        %3790 = vmatpush1.xpose.msra.mxu0 0.0
        %3791 = vmatprep.subr.mxu0 0.0
        %3792 = vmatpush1.xpose.msra.mxu0 0.0
        %3793 = vmatprep.subr.mxu0 0.0
        %3794 = vmatpush1.xpose.msra.mxu0 0.0
        %3795 = vmatprep.subr.mxu0 0.0
        %3796 = vmatpush1.xpose.msra.mxu0 0.0
        %3797 = vmatprep.subr.mxu0 0.0
        %3798 = vmatpush1.xpose.msra.mxu0 0.0
        %3799 = vmatprep.subr.mxu0 0.0
        %3800 = vmatpush1.xpose.msra.mxu0 0.0
        %3801 = vmatprep.subr.mxu0 0.0
        %3802 = vmatpush1.xpose.msra.mxu0 0.0
        %3803 = vmatprep.subr.mxu0 0.0
        %3804 = vmatpush1.xpose.msra.mxu0 0.0
        %3805 = vmatprep.subr.mxu0 0.0
        %3806 = vmatpush1.xpose.msra.mxu0 0.0
        %3807 = vmatprep.subr.mxu0 0.0
        %3808 = vmatpush1.xpose.msra.mxu0 0.0
        %3809 = vmatprep.subr.mxu0 0.0
        %3810 = vmatpush1.xpose.msra.mxu0 0.0
        %3811 = vmatprep.mubr.f32.mxu0 0.0
        %3812 = vmatmul.mubr.f32.gmra.mrb[0].mxu0 %v3743
        %v3813 = vpop.f32.mrb[0].mxu0
        %v3814 = vadd.f32 0.0, %v3813
        %v3815 = vpop.f32.mrb[0].mxu0
        %3816 = vdwg.mxu0
        %3818 = vrot.lane.b32.xlu0 %v3736, 120
        %v3819 = vpop.permute.xlu0 %3818
        %v3821 = vsel %vm967, %v3412, 0
        %v3823 = vsel %vm967, %v3819, 0
        %3825 = vmatprep.subr.mxu0 0.0
        %3826 = vmatpush1.xpose.msra.mxu0 %v3823
        %3827 = vmatprep.subr.mxu0 0.0
        %3828 = vmatpush1.xpose.msra.mxu0 0.0
        %3829 = vmatprep.subr.mxu0 0.0
        %3830 = vmatpush1.xpose.msra.mxu0 0.0
        %3831 = vmatprep.subr.mxu0 0.0
        %3832 = vmatpush1.xpose.msra.mxu0 0.0
        %3833 = vmatprep.subr.mxu0 0.0
        %3834 = vmatpush1.xpose.msra.mxu0 0.0
        %3835 = vmatprep.subr.mxu0 0.0
        %3836 = vmatpush1.xpose.msra.mxu0 0.0
        %3837 = vmatprep.subr.mxu0 0.0
        %3838 = vmatpush1.xpose.msra.mxu0 0.0
        %3839 = vmatprep.subr.mxu0 0.0
        %3840 = vmatpush1.xpose.msra.mxu0 0.0
        %3841 = vmatprep.subr.mxu0 0.0
        %3842 = vmatpush1.xpose.msra.mxu0 0.0
        %3843 = vmatprep.subr.mxu0 0.0
        %3844 = vmatpush1.xpose.msra.mxu0 0.0
        %3845 = vmatprep.subr.mxu0 0.0
        %3846 = vmatpush1.xpose.msra.mxu0 0.0
        %3847 = vmatprep.subr.mxu0 0.0
        %3848 = vmatpush1.xpose.msra.mxu0 0.0
        %3849 = vmatprep.subr.mxu0 0.0
        %3850 = vmatpush1.xpose.msra.mxu0 0.0
        %3851 = vmatprep.subr.mxu0 0.0
        %3852 = vmatpush1.xpose.msra.mxu0 0.0
        %3853 = vmatprep.subr.mxu0 0.0
        %3854 = vmatpush1.xpose.msra.mxu0 0.0
        %3855 = vmatprep.subr.mxu0 0.0
        %3856 = vmatpush1.xpose.msra.mxu0 0.0
        %3857 = vmatprep.subr.mxu0 0.0
        %3858 = vmatpush1.xpose.msra.mxu0 0.0
        %3859 = vmatprep.subr.mxu0 0.0
        %3860 = vmatpush1.xpose.msra.mxu0 0.0
        %3861 = vmatprep.subr.mxu0 0.0
        %3862 = vmatpush1.xpose.msra.mxu0 0.0
        %3863 = vmatprep.subr.mxu0 0.0
        %3864 = vmatpush1.xpose.msra.mxu0 0.0
        %3865 = vmatprep.subr.mxu0 0.0
        %3866 = vmatpush1.xpose.msra.mxu0 0.0
        %3867 = vmatprep.subr.mxu0 0.0
        %3868 = vmatpush1.xpose.msra.mxu0 0.0
        %3869 = vmatprep.subr.mxu0 0.0
        %3870 = vmatpush1.xpose.msra.mxu0 0.0
        %3871 = vmatprep.subr.mxu0 0.0
        %3872 = vmatpush1.xpose.msra.mxu0 0.0
        %3873 = vmatprep.subr.mxu0 0.0
        %3874 = vmatpush1.xpose.msra.mxu0 0.0
        %3875 = vmatprep.subr.mxu0 0.0
        %3876 = vmatpush1.xpose.msra.mxu0 0.0
        %3877 = vmatprep.subr.mxu0 0.0
        %3878 = vmatpush1.xpose.msra.mxu0 0.0
        %3879 = vmatprep.subr.mxu0 0.0
        %3880 = vmatpush1.xpose.msra.mxu0 0.0
        %3881 = vmatprep.subr.mxu0 0.0
        %3882 = vmatpush1.xpose.msra.mxu0 0.0
        %3883 = vmatprep.subr.mxu0 0.0
        %3884 = vmatpush1.xpose.msra.mxu0 0.0
        %3885 = vmatprep.subr.mxu0 0.0
        %3886 = vmatpush1.xpose.msra.mxu0 0.0
        %3887 = vmatprep.subr.mxu0 0.0
        %3888 = vmatpush1.xpose.msra.mxu0 0.0
        %3889 = vmatprep.mubr.f32.mxu0 0.0
        %3890 = vmatmul.mubr.f32.gmra.mrb[0].mxu0 %v3821
        %v3891 = vpop.f32.mrb[0].mxu0
        %v3892 = vadd.f32 0.0, %v3891
        %v3893 = vpop.f32.mrb[0].mxu0
        %3894 = vdwg.mxu0
        %3896 = vrot.lane.b32.xlu0 %v3737, 120
        %v3897 = vpop.permute.xlu0 %3896
        %v3899 = vsel %vm967, %v3413, 0
        %v3901 = vsel %vm967, %v3897, 0
        %3903 = vmatprep.subr.mxu0 0.0
        %3904 = vmatpush1.xpose.msra.mxu0 %v3901
        %3905 = vmatprep.subr.mxu0 0.0
        %3906 = vmatpush1.xpose.msra.mxu0 0.0
        %3907 = vmatprep.subr.mxu0 0.0
        %3908 = vmatpush1.xpose.msra.mxu0 0.0
        %3909 = vmatprep.subr.mxu0 0.0
        %3910 = vmatpush1.xpose.msra.mxu0 0.0
        %3911 = vmatprep.subr.mxu0 0.0
        %3912 = vmatpush1.xpose.msra.mxu0 0.0
        %3913 = vmatprep.subr.mxu0 0.0
        %3914 = vmatpush1.xpose.msra.mxu0 0.0
        %3915 = vmatprep.subr.mxu0 0.0
        %3916 = vmatpush1.xpose.msra.mxu0 0.0
        %3917 = vmatprep.subr.mxu0 0.0
        %3918 = vmatpush1.xpose.msra.mxu0 0.0
        %3919 = vmatprep.subr.mxu0 0.0
        %3920 = vmatpush1.xpose.msra.mxu0 0.0
        %3921 = vmatprep.subr.mxu0 0.0
        %3922 = vmatpush1.xpose.msra.mxu0 0.0
        %3923 = vmatprep.subr.mxu0 0.0
        %3924 = vmatpush1.xpose.msra.mxu0 0.0
        %3925 = vmatprep.subr.mxu0 0.0
        %3926 = vmatpush1.xpose.msra.mxu0 0.0
        %3927 = vmatprep.subr.mxu0 0.0
        %3928 = vmatpush1.xpose.msra.mxu0 0.0
        %3929 = vmatprep.subr.mxu0 0.0
        %3930 = vmatpush1.xpose.msra.mxu0 0.0
        %3931 = vmatprep.subr.mxu0 0.0
        %3932 = vmatpush1.xpose.msra.mxu0 0.0
        %3933 = vmatprep.subr.mxu0 0.0
        %3934 = vmatpush1.xpose.msra.mxu0 0.0
        %3935 = vmatprep.subr.mxu0 0.0
        %3936 = vmatpush1.xpose.msra.mxu0 0.0
        %3937 = vmatprep.subr.mxu0 0.0
        %3938 = vmatpush1.xpose.msra.mxu0 0.0
        %3939 = vmatprep.subr.mxu0 0.0
        %3940 = vmatpush1.xpose.msra.mxu0 0.0
        %3941 = vmatprep.subr.mxu0 0.0
        %3942 = vmatpush1.xpose.msra.mxu0 0.0
        %3943 = vmatprep.subr.mxu0 0.0
        %3944 = vmatpush1.xpose.msra.mxu0 0.0
        %3945 = vmatprep.subr.mxu0 0.0
        %3946 = vmatpush1.xpose.msra.mxu0 0.0
        %3947 = vmatprep.subr.mxu0 0.0
        %3948 = vmatpush1.xpose.msra.mxu0 0.0
        %3949 = vmatprep.subr.mxu0 0.0
        %3950 = vmatpush1.xpose.msra.mxu0 0.0
        %3951 = vmatprep.subr.mxu0 0.0
        %3952 = vmatpush1.xpose.msra.mxu0 0.0
        %3953 = vmatprep.subr.mxu0 0.0
        %3954 = vmatpush1.xpose.msra.mxu0 0.0
        %3955 = vmatprep.subr.mxu0 0.0
        %3956 = vmatpush1.xpose.msra.mxu0 0.0
        %3957 = vmatprep.subr.mxu0 0.0
        %3958 = vmatpush1.xpose.msra.mxu0 0.0
        %3959 = vmatprep.subr.mxu0 0.0
        %3960 = vmatpush1.xpose.msra.mxu0 0.0
        %3961 = vmatprep.subr.mxu0 0.0
        %3962 = vmatpush1.xpose.msra.mxu0 0.0
        %3963 = vmatprep.subr.mxu0 0.0
        %3964 = vmatpush1.xpose.msra.mxu0 0.0
        %3965 = vmatprep.subr.mxu0 0.0
        %3966 = vmatpush1.xpose.msra.mxu0 0.0
        %3967 = vmatprep.mubr.f32.mxu0 0.0
        %3968 = vmatmul.mubr.f32.gmra.mrb[0].mxu0 %v3899
        %v3969 = vpop.f32.mrb[0].mxu0
        %v3970 = vadd.f32 0.0, %v3969
        %v3971 = vpop.f32.mrb[0].mxu0
        %3972 = vdwg.mxu0
        %3974 = vrot.lane.b32.xlu0 %v3738, 120
        %v3975 = vpop.permute.xlu0 %3974
        %v3977 = vsel %vm967, %v3414, 0
        %v3979 = vsel %vm967, %v3975, 0
        %3981 = vmatprep.subr.mxu0 0.0
        %3982 = vmatpush1.xpose.msra.mxu0 %v3979
        %3983 = vmatprep.subr.mxu0 0.0
        %3984 = vmatpush1.xpose.msra.mxu0 0.0
        %3985 = vmatprep.subr.mxu0 0.0
        %3986 = vmatpush1.xpose.msra.mxu0 0.0
        %3987 = vmatprep.subr.mxu0 0.0
        %3988 = vmatpush1.xpose.msra.mxu0 0.0
        %3989 = vmatprep.subr.mxu0 0.0
        %3990 = vmatpush1.xpose.msra.mxu0 0.0
        %3991 = vmatprep.subr.mxu0 0.0
        %3992 = vmatpush1.xpose.msra.mxu0 0.0
        %3993 = vmatprep.subr.mxu0 0.0
        %3994 = vmatpush1.xpose.msra.mxu0 0.0
        %3995 = vmatprep.subr.mxu0 0.0
        %3996 = vmatpush1.xpose.msra.mxu0 0.0
        %3997 = vmatprep.subr.mxu0 0.0
        %3998 = vmatpush1.xpose.msra.mxu0 0.0
        %3999 = vmatprep.subr.mxu0 0.0
        %4000 = vmatpush1.xpose.msra.mxu0 0.0
        %4001 = vmatprep.subr.mxu0 0.0
        %4002 = vmatpush1.xpose.msra.mxu0 0.0
        %4003 = vmatprep.subr.mxu0 0.0
        %4004 = vmatpush1.xpose.msra.mxu0 0.0
        %4005 = vmatprep.subr.mxu0 0.0
        %4006 = vmatpush1.xpose.msra.mxu0 0.0
        %4007 = vmatprep.subr.mxu0 0.0
        %4008 = vmatpush1.xpose.msra.mxu0 0.0
        %4009 = vmatprep.subr.mxu0 0.0
        %4010 = vmatpush1.xpose.msra.mxu0 0.0
        %4011 = vmatprep.subr.mxu0 0.0
        %4012 = vmatpush1.xpose.msra.mxu0 0.0
        %4013 = vmatprep.subr.mxu0 0.0
        %4014 = vmatpush1.xpose.msra.mxu0 0.0
        %4015 = vmatprep.subr.mxu0 0.0
        %4016 = vmatpush1.xpose.msra.mxu0 0.0
        %4017 = vmatprep.subr.mxu0 0.0
        %4018 = vmatpush1.xpose.msra.mxu0 0.0
        %4019 = vmatprep.subr.mxu0 0.0
        %4020 = vmatpush1.xpose.msra.mxu0 0.0
        %4021 = vmatprep.subr.mxu0 0.0
        %4022 = vmatpush1.xpose.msra.mxu0 0.0
        %4023 = vmatprep.subr.mxu0 0.0
        %4024 = vmatpush1.xpose.msra.mxu0 0.0
        %4025 = vmatprep.subr.mxu0 0.0
        %4026 = vmatpush1.xpose.msra.mxu0 0.0
        %4027 = vmatprep.subr.mxu0 0.0
        %4028 = vmatpush1.xpose.msra.mxu0 0.0
        %4029 = vmatprep.subr.mxu0 0.0
        %4030 = vmatpush1.xpose.msra.mxu0 0.0
        %4031 = vmatprep.subr.mxu0 0.0
        %4032 = vmatpush1.xpose.msra.mxu0 0.0
        %4033 = vmatprep.subr.mxu0 0.0
        %4034 = vmatpush1.xpose.msra.mxu0 0.0
        %4035 = vmatprep.subr.mxu0 0.0
        %4036 = vmatpush1.xpose.msra.mxu0 0.0
        %4037 = vmatprep.subr.mxu0 0.0
        %4038 = vmatpush1.xpose.msra.mxu0 0.0
        %4039 = vmatprep.subr.mxu0 0.0
        %4040 = vmatpush1.xpose.msra.mxu0 0.0
        %4041 = vmatprep.subr.mxu0 0.0
        %4042 = vmatpush1.xpose.msra.mxu0 0.0
        %4043 = vmatprep.subr.mxu0 0.0
        %4044 = vmatpush1.xpose.msra.mxu0 0.0
        %4045 = vmatprep.mubr.f32.mxu0 0.0
        %4046 = vmatmul.mubr.f32.gmra.mrb[0].mxu0 %v3977
        %v4047 = vpop.f32.mrb[0].mxu0
        %v4048 = vadd.f32 0.0, %v4047
        %v4049 = vpop.f32.mrb[0].mxu0
        %4050 = vdwg.mxu0
        %v4051 = vmul.f32 %v3814, 0.35355338
        %v4052 = vmul.f32 %v3892, 0.35355338
        %v4053 = vmul.f32 %v3970, 0.35355338
        %v4054 = vmul.f32 %v4048, 0.35355338
        %v4055 = vadd.f32 %v4051, %v617
        %v4056 = vadd.f32 %v4052, %v617
        %v4057 = vadd.f32 %v4053, %v617
        %v4058 = vadd.f32 %v4054, %v617
        %v4059 = vsel %vm967, %v4055, -inf
        %4060 = vmax.xlane.f32.xlu0 %v4059
        %v4061 = vpop.xlane.xlu0 %4060
        %v4062 = vsel %vm967, %v4056, -inf
        %4063 = vmax.xlane.f32.xlu0 %v4062
        %v4064 = vpop.xlane.xlu0 %4063
        %v4065 = vsel %vm967, %v4057, -inf
        %4066 = vmax.xlane.f32.xlu0 %v4065
        %v4067 = vpop.xlane.xlu0 %4066
        %v4068 = vsel %vm967, %v4058, -inf
        %4069 = vmax.xlane.f32.xlu0 %v4068
        %v4070 = vpop.xlane.xlu0 %4069
        %v4071 = vsub.f32 %v4055, %v4061
        %v4072 = vsub.f32 %v4056, %v4064
        %v4073 = vsub.f32 %v4057, %v4067
        %v4074 = vsub.f32 %v4058, %v4070
        %v4075 = vmul.f32 %v4071, 1.442695
        %v4076 = vpow.pop %v4075
        %v4077 = vmul.f32 %v4072, 1.442695
        %v4078 = vpow.pop %v4077
        %v4079 = vmul.f32 %v4073, 1.442695
        %v4080 = vpow.pop %v4079
        %v4081 = vmul.f32 %v4074, 1.442695
        %v4082 = vpow.pop %v4081
        %v4083 = vsel %vm967, %v4076, 0.0
        %4084 = vadd.xlane.f32.xlu0 %v4083
        %v4085 = vpop.xlane.xlu0 %4084
        %v4086 = vsel %vm967, %v4078, 0.0
        %4087 = vadd.xlane.f32.xlu0 %v4086
        %v4088 = vpop.xlane.xlu0 %4087
        %v4089 = vsel %vm967, %v4080, 0.0
        %4090 = vadd.xlane.f32.xlu0 %v4089
        %v4091 = vpop.xlane.xlu0 %4090
        %v4092 = vsel %vm967, %v4082, 0.0
        %4093 = vadd.xlane.f32.xlu0 %v4092
        %v4094 = vpop.xlane.xlu0 %4093
        %v4095 = vrcp.pop %v4085
        %v4096 = vrcp.pop %v4088
        %v4097 = vrcp.pop %v4091
        %v4098 = vrcp.pop %v4094
        %v4099 = vmul.f32 %v4076, %v4095
        %v4100 = vmul.f32 %v4078, %v4096
        %v4101 = vmul.f32 %v4080, %v4097
        %v4102 = vmul.f32 %v4082, %v4098
        %4103 = vrot.lane.b32.xlu0 %v2898, 112
        %v4104 = vpop.permute.xlu0 %4103
        %v4107 = vsel %vm967, %v4099, 0
        %4109 = vmatprep.subr.mxu0 0.0
        %4110 = vmatpush1.msra.mxu0 %v4104
        %4111 = vmatprep.subr.mxu0 0.0
        %4112 = vmatpush1.msra.mxu0 0.0
        %4113 = vmatprep.subr.mxu0 0.0
        %4114 = vmatpush1.msra.mxu0 0.0
        %4115 = vmatprep.subr.mxu0 0.0
        %4116 = vmatpush1.msra.mxu0 0.0
        %4117 = vmatprep.subr.mxu0 0.0
        %4118 = vmatpush1.msra.mxu0 0.0
        %4119 = vmatprep.subr.mxu0 0.0
        %4120 = vmatpush1.msra.mxu0 0.0
        %4121 = vmatprep.subr.mxu0 0.0
        %4122 = vmatpush1.msra.mxu0 0.0
        %4123 = vmatprep.subr.mxu0 0.0
        %4124 = vmatpush1.msra.mxu0 0.0
        %4125 = vmatprep.subr.mxu0 0.0
        %4126 = vmatpush1.msra.mxu0 0.0
        %4127 = vmatprep.subr.mxu0 0.0
        %4128 = vmatpush1.msra.mxu0 0.0
        %4129 = vmatprep.subr.mxu0 0.0
        %4130 = vmatpush1.msra.mxu0 0.0
        %4131 = vmatprep.subr.mxu0 0.0
        %4132 = vmatpush1.msra.mxu0 0.0
        %4133 = vmatprep.subr.mxu0 0.0
        %4134 = vmatpush1.msra.mxu0 0.0
        %4135 = vmatprep.subr.mxu0 0.0
        %4136 = vmatpush1.msra.mxu0 0.0
        %4137 = vmatprep.subr.mxu0 0.0
        %4138 = vmatpush1.msra.mxu0 0.0
        %4139 = vmatprep.subr.mxu0 0.0
        %4140 = vmatpush1.msra.mxu0 0.0
        %4141 = vmatprep.subr.mxu0 0.0
        %4142 = vmatpush1.msra.mxu0 0.0
        %4143 = vmatprep.subr.mxu0 0.0
        %4144 = vmatpush1.msra.mxu0 0.0
        %4145 = vmatprep.subr.mxu0 0.0
        %4146 = vmatpush1.msra.mxu0 0.0
        %4147 = vmatprep.subr.mxu0 0.0
        %4148 = vmatpush1.msra.mxu0 0.0
        %4149 = vmatprep.subr.mxu0 0.0
        %4150 = vmatpush1.msra.mxu0 0.0
        %4151 = vmatprep.subr.mxu0 0.0
        %4152 = vmatpush1.msra.mxu0 0.0
        %4153 = vmatprep.subr.mxu0 0.0
        %4154 = vmatpush1.msra.mxu0 0.0
        %4155 = vmatprep.subr.mxu0 0.0
        %4156 = vmatpush1.msra.mxu0 0.0
        %4157 = vmatprep.subr.mxu0 0.0
        %4158 = vmatpush1.msra.mxu0 0.0
        %4159 = vmatprep.subr.mxu0 0.0
        %4160 = vmatpush1.msra.mxu0 0.0
        %4161 = vmatprep.subr.mxu0 0.0
        %4162 = vmatpush1.msra.mxu0 0.0
        %4163 = vmatprep.subr.mxu0 0.0
        %4164 = vmatpush1.msra.mxu0 0.0
        %4165 = vmatprep.subr.mxu0 0.0
        %4166 = vmatpush1.msra.mxu0 0.0
        %4167 = vmatprep.subr.mxu0 0.0
        %4168 = vmatpush1.msra.mxu0 0.0
        %4169 = vmatprep.subr.mxu0 0.0
        %4170 = vmatpush1.msra.mxu0 0.0
        %4171 = vmatprep.subr.mxu0 0.0
        %4172 = vmatpush1.msra.mxu0 0.0
        %4173 = vmatprep.mubr.f32.mxu0 0.0
        %4174 = vmatmul.mubr.f32.gmra.mrb[0].mxu0 %v4107
        %v4175 = vpop.f32.mrb[0].mxu0
        %v4176 = vadd.f32 0.0, %v4175
        %v4177 = vpop.f32.mrb[0].mxu0
        %4178 = vdwg.mxu0
        %4179 = vrot.lane.b32.xlu0 %v2968, 112
        %v4180 = vpop.permute.xlu0 %4179
        %v4183 = vsel %vm967, %v4100, 0
        %4185 = vmatprep.subr.mxu0 0.0
        %4186 = vmatpush1.msra.mxu0 %v4180
        %4187 = vmatprep.subr.mxu0 0.0
        %4188 = vmatpush1.msra.mxu0 0.0
        %4189 = vmatprep.subr.mxu0 0.0
        %4190 = vmatpush1.msra.mxu0 0.0
        %4191 = vmatprep.subr.mxu0 0.0
        %4192 = vmatpush1.msra.mxu0 0.0
        %4193 = vmatprep.subr.mxu0 0.0
        %4194 = vmatpush1.msra.mxu0 0.0
        %4195 = vmatprep.subr.mxu0 0.0
        %4196 = vmatpush1.msra.mxu0 0.0
        %4197 = vmatprep.subr.mxu0 0.0
        %4198 = vmatpush1.msra.mxu0 0.0
        %4199 = vmatprep.subr.mxu0 0.0
        %4200 = vmatpush1.msra.mxu0 0.0
        %4201 = vmatprep.subr.mxu0 0.0
        %4202 = vmatpush1.msra.mxu0 0.0
        %4203 = vmatprep.subr.mxu0 0.0
        %4204 = vmatpush1.msra.mxu0 0.0
        %4205 = vmatprep.subr.mxu0 0.0
        %4206 = vmatpush1.msra.mxu0 0.0
        %4207 = vmatprep.subr.mxu0 0.0
        %4208 = vmatpush1.msra.mxu0 0.0
        %4209 = vmatprep.subr.mxu0 0.0
        %4210 = vmatpush1.msra.mxu0 0.0
        %4211 = vmatprep.subr.mxu0 0.0
        %4212 = vmatpush1.msra.mxu0 0.0
        %4213 = vmatprep.subr.mxu0 0.0
        %4214 = vmatpush1.msra.mxu0 0.0
        %4215 = vmatprep.subr.mxu0 0.0
        %4216 = vmatpush1.msra.mxu0 0.0
        %4217 = vmatprep.subr.mxu0 0.0
        %4218 = vmatpush1.msra.mxu0 0.0
        %4219 = vmatprep.subr.mxu0 0.0
        %4220 = vmatpush1.msra.mxu0 0.0
        %4221 = vmatprep.subr.mxu0 0.0
        %4222 = vmatpush1.msra.mxu0 0.0
        %4223 = vmatprep.subr.mxu0 0.0
        %4224 = vmatpush1.msra.mxu0 0.0
        %4225 = vmatprep.subr.mxu0 0.0
        %4226 = vmatpush1.msra.mxu0 0.0
        %4227 = vmatprep.subr.mxu0 0.0
        %4228 = vmatpush1.msra.mxu0 0.0
        %4229 = vmatprep.subr.mxu0 0.0
        %4230 = vmatpush1.msra.mxu0 0.0
        %4231 = vmatprep.subr.mxu0 0.0
        %4232 = vmatpush1.msra.mxu0 0.0
        %4233 = vmatprep.subr.mxu0 0.0
        %4234 = vmatpush1.msra.mxu0 0.0
        %4235 = vmatprep.subr.mxu0 0.0
        %4236 = vmatpush1.msra.mxu0 0.0
        %4237 = vmatprep.subr.mxu0 0.0
        %4238 = vmatpush1.msra.mxu0 0.0
        %4239 = vmatprep.subr.mxu0 0.0
        %4240 = vmatpush1.msra.mxu0 0.0
        %4241 = vmatprep.subr.mxu0 0.0
        %4242 = vmatpush1.msra.mxu0 0.0
        %4243 = vmatprep.subr.mxu0 0.0
        %4244 = vmatpush1.msra.mxu0 0.0
        %4245 = vmatprep.subr.mxu0 0.0
        %4246 = vmatpush1.msra.mxu0 0.0
        %4247 = vmatprep.subr.mxu0 0.0
        %4248 = vmatpush1.msra.mxu0 0.0
        %4249 = vmatprep.mubr.f32.mxu0 0.0
        %4250 = vmatmul.mubr.f32.gmra.mrb[0].mxu0 %v4183
        %v4251 = vpop.f32.mrb[0].mxu0
        %v4252 = vadd.f32 0.0, %v4251
        %v4253 = vpop.f32.mrb[0].mxu0
        %4254 = vdwg.mxu0
        %4255 = vrot.lane.b32.xlu0 %v3038, 112
        %v4256 = vpop.permute.xlu0 %4255
        %v4259 = vsel %vm967, %v4101, 0
        %4261 = vmatprep.subr.mxu0 0.0
        %4262 = vmatpush1.msra.mxu0 %v4256
        %4263 = vmatprep.subr.mxu0 0.0
        %4264 = vmatpush1.msra.mxu0 0.0
        %4265 = vmatprep.subr.mxu0 0.0
        %4266 = vmatpush1.msra.mxu0 0.0
        %4267 = vmatprep.subr.mxu0 0.0
        %4268 = vmatpush1.msra.mxu0 0.0
        %4269 = vmatprep.subr.mxu0 0.0
        %4270 = vmatpush1.msra.mxu0 0.0
        %4271 = vmatprep.subr.mxu0 0.0
        %4272 = vmatpush1.msra.mxu0 0.0
        %4273 = vmatprep.subr.mxu0 0.0
        %4274 = vmatpush1.msra.mxu0 0.0
        %4275 = vmatprep.subr.mxu0 0.0
        %4276 = vmatpush1.msra.mxu0 0.0
        %4277 = vmatprep.subr.mxu0 0.0
        %4278 = vmatpush1.msra.mxu0 0.0
        %4279 = vmatprep.subr.mxu0 0.0
        %4280 = vmatpush1.msra.mxu0 0.0
        %4281 = vmatprep.subr.mxu0 0.0
        %4282 = vmatpush1.msra.mxu0 0.0
        %4283 = vmatprep.subr.mxu0 0.0
        %4284 = vmatpush1.msra.mxu0 0.0
        %4285 = vmatprep.subr.mxu0 0.0
        %4286 = vmatpush1.msra.mxu0 0.0
        %4287 = vmatprep.subr.mxu0 0.0
        %4288 = vmatpush1.msra.mxu0 0.0
        %4289 = vmatprep.subr.mxu0 0.0
        %4290 = vmatpush1.msra.mxu0 0.0
        %4291 = vmatprep.subr.mxu0 0.0
        %4292 = vmatpush1.msra.mxu0 0.0
        %4293 = vmatprep.subr.mxu0 0.0
        %4294 = vmatpush1.msra.mxu0 0.0
        %4295 = vmatprep.subr.mxu0 0.0
        %4296 = vmatpush1.msra.mxu0 0.0
        %4297 = vmatprep.subr.mxu0 0.0
        %4298 = vmatpush1.msra.mxu0 0.0
        %4299 = vmatprep.subr.mxu0 0.0
        %4300 = vmatpush1.msra.mxu0 0.0
        %4301 = vmatprep.subr.mxu0 0.0
        %4302 = vmatpush1.msra.mxu0 0.0
        %4303 = vmatprep.subr.mxu0 0.0
        %4304 = vmatpush1.msra.mxu0 0.0
        %4305 = vmatprep.subr.mxu0 0.0
        %4306 = vmatpush1.msra.mxu0 0.0
        %4307 = vmatprep.subr.mxu0 0.0
        %4308 = vmatpush1.msra.mxu0 0.0
        %4309 = vmatprep.subr.mxu0 0.0
        %4310 = vmatpush1.msra.mxu0 0.0
        %4311 = vmatprep.subr.mxu0 0.0
        %4312 = vmatpush1.msra.mxu0 0.0
        %4313 = vmatprep.subr.mxu0 0.0
        %4314 = vmatpush1.msra.mxu0 0.0
        %4315 = vmatprep.subr.mxu0 0.0
        %4316 = vmatpush1.msra.mxu0 0.0
        %4317 = vmatprep.subr.mxu0 0.0
        %4318 = vmatpush1.msra.mxu0 0.0
        %4319 = vmatprep.subr.mxu0 0.0
        %4320 = vmatpush1.msra.mxu0 0.0
        %4321 = vmatprep.subr.mxu0 0.0
        %4322 = vmatpush1.msra.mxu0 0.0
        %4323 = vmatprep.subr.mxu0 0.0
        %4324 = vmatpush1.msra.mxu0 0.0
        %4325 = vmatprep.mubr.f32.mxu0 0.0
        %4326 = vmatmul.mubr.f32.gmra.mrb[0].mxu0 %v4259
        %v4327 = vpop.f32.mrb[0].mxu0
        %v4328 = vadd.f32 0.0, %v4327
        %v4329 = vpop.f32.mrb[0].mxu0
        %4330 = vdwg.mxu0
        %4331 = vrot.lane.b32.xlu0 %v3108, 112
        %v4332 = vpop.permute.xlu0 %4331
        %v4335 = vsel %vm967, %v4102, 0
        %4337 = vmatprep.subr.mxu0 0.0
        %4338 = vmatpush1.msra.mxu0 %v4332
        %4339 = vmatprep.subr.mxu0 0.0
        %4340 = vmatpush1.msra.mxu0 0.0
        %4341 = vmatprep.subr.mxu0 0.0
        %4342 = vmatpush1.msra.mxu0 0.0
        %4343 = vmatprep.subr.mxu0 0.0
        %4344 = vmatpush1.msra.mxu0 0.0
        %4345 = vmatprep.subr.mxu0 0.0
        %4346 = vmatpush1.msra.mxu0 0.0
        %4347 = vmatprep.subr.mxu0 0.0
        %4348 = vmatpush1.msra.mxu0 0.0
        %4349 = vmatprep.subr.mxu0 0.0
        %4350 = vmatpush1.msra.mxu0 0.0
        %4351 = vmatprep.subr.mxu0 0.0
        %4352 = vmatpush1.msra.mxu0 0.0
        %4353 = vmatprep.subr.mxu0 0.0
        %4354 = vmatpush1.msra.mxu0 0.0
        %4355 = vmatprep.subr.mxu0 0.0
        %4356 = vmatpush1.msra.mxu0 0.0
        %4357 = vmatprep.subr.mxu0 0.0
        %4358 = vmatpush1.msra.mxu0 0.0
        %4359 = vmatprep.subr.mxu0 0.0
        %4360 = vmatpush1.msra.mxu0 0.0
        %4361 = vmatprep.subr.mxu0 0.0
        %4362 = vmatpush1.msra.mxu0 0.0
        %4363 = vmatprep.subr.mxu0 0.0
        %4364 = vmatpush1.msra.mxu0 0.0
        %4365 = vmatprep.subr.mxu0 0.0
        %4366 = vmatpush1.msra.mxu0 0.0
        %4367 = vmatprep.subr.mxu0 0.0
        %4368 = vmatpush1.msra.mxu0 0.0
        %4369 = vmatprep.subr.mxu0 0.0
        %4370 = vmatpush1.msra.mxu0 0.0
        %4371 = vmatprep.subr.mxu0 0.0
        %4372 = vmatpush1.msra.mxu0 0.0
        %4373 = vmatprep.subr.mxu0 0.0
        %4374 = vmatpush1.msra.mxu0 0.0
        %4375 = vmatprep.subr.mxu0 0.0
        %4376 = vmatpush1.msra.mxu0 0.0
        %4377 = vmatprep.subr.mxu0 0.0
        %4378 = vmatpush1.msra.mxu0 0.0
        %4379 = vmatprep.subr.mxu0 0.0
        %4380 = vmatpush1.msra.mxu0 0.0
        %4381 = vmatprep.subr.mxu0 0.0
        %4382 = vmatpush1.msra.mxu0 0.0
        %4383 = vmatprep.subr.mxu0 0.0
        %4384 = vmatpush1.msra.mxu0 0.0
        %4385 = vmatprep.subr.mxu0 0.0
        %4386 = vmatpush1.msra.mxu0 0.0
        %4387 = vmatprep.subr.mxu0 0.0
        %4388 = vmatpush1.msra.mxu0 0.0
        %4389 = vmatprep.subr.mxu0 0.0
        %4390 = vmatpush1.msra.mxu0 0.0
        %4391 = vmatprep.subr.mxu0 0.0
        %4392 = vmatpush1.msra.mxu0 0.0
        %4393 = vmatprep.subr.mxu0 0.0
        %4394 = vmatpush1.msra.mxu0 0.0
        %4395 = vmatprep.subr.mxu0 0.0
        %4396 = vmatpush1.msra.mxu0 0.0
        %4397 = vmatprep.subr.mxu0 0.0
        %4398 = vmatpush1.msra.mxu0 0.0
        %4399 = vmatprep.subr.mxu0 0.0
        %4400 = vmatpush1.msra.mxu0 0.0
        %4401 = vmatprep.mubr.f32.mxu0 0.0
        %4402 = vmatmul.mubr.f32.gmra.mrb[0].mxu0 %v4335
        %v4403 = vpop.f32.mrb[0].mxu0
        %v4404 = vadd.f32 0.0, %v4403
        %v4405 = vpop.f32.mrb[0].mxu0
        %4406 = vdwg.mxu0
        %s4407 = scalar_lea.vmem %s7, 32
        %v4408 = vld [vmem:[%s4407] sm:$0xff]
        %v4409 = vld [vmem:[%s4407 + $0x8] sm:$0xff]
        %v4410 = vld [vmem:[%s4407 + $0x10] sm:$0xff]
        %v4411 = vld [vmem:[%s4407 + $0x18] sm:$0xff]
        %v4413 = vsel %vm967, %v4176, 0
        %4415 = vmatprep.subr.mxu0 0.0
        %4416 = vmatpush1.msra.mxu0 %v4408
        %4417 = vmatprep.subr.mxu0 0.0
        %4418 = vmatpush1.msra.mxu0 0.0
        %4419 = vmatprep.subr.mxu0 0.0
        %4420 = vmatpush1.msra.mxu0 0.0
        %4421 = vmatprep.subr.mxu0 0.0
        %4422 = vmatpush1.msra.mxu0 0.0
        %4423 = vmatprep.subr.mxu0 0.0
        %4424 = vmatpush1.msra.mxu0 0.0
        %4425 = vmatprep.subr.mxu0 0.0
        %4426 = vmatpush1.msra.mxu0 0.0
        %4427 = vmatprep.subr.mxu0 0.0
        %4428 = vmatpush1.msra.mxu0 0.0
        %4429 = vmatprep.subr.mxu0 0.0
        %4430 = vmatpush1.msra.mxu0 0.0
        %4431 = vmatprep.subr.mxu0 0.0
        %4432 = vmatpush1.msra.mxu0 0.0
        %4433 = vmatprep.subr.mxu0 0.0
        %4434 = vmatpush1.msra.mxu0 0.0
        %4435 = vmatprep.subr.mxu0 0.0
        %4436 = vmatpush1.msra.mxu0 0.0
        %4437 = vmatprep.subr.mxu0 0.0
        %4438 = vmatpush1.msra.mxu0 0.0
        %4439 = vmatprep.subr.mxu0 0.0
        %4440 = vmatpush1.msra.mxu0 0.0
        %4441 = vmatprep.subr.mxu0 0.0
        %4442 = vmatpush1.msra.mxu0 0.0
        %4443 = vmatprep.subr.mxu0 0.0
        %4444 = vmatpush1.msra.mxu0 0.0
        %4445 = vmatprep.subr.mxu0 0.0
        %4446 = vmatpush1.msra.mxu0 0.0
        %4447 = vmatprep.subr.mxu0 0.0
        %4448 = vmatpush1.msra.mxu0 0.0
        %4449 = vmatprep.subr.mxu0 0.0
        %4450 = vmatpush1.msra.mxu0 0.0
        %4451 = vmatprep.subr.mxu0 0.0
        %4452 = vmatpush1.msra.mxu0 0.0
        %4453 = vmatprep.subr.mxu0 0.0
        %4454 = vmatpush1.msra.mxu0 0.0
        %4455 = vmatprep.subr.mxu0 0.0
        %4456 = vmatpush1.msra.mxu0 0.0
        %4457 = vmatprep.subr.mxu0 0.0
        %4458 = vmatpush1.msra.mxu0 0.0
        %4459 = vmatprep.subr.mxu0 0.0
        %4460 = vmatpush1.msra.mxu0 0.0
        %4461 = vmatprep.subr.mxu0 0.0
        %4462 = vmatpush1.msra.mxu0 0.0
        %4463 = vmatprep.subr.mxu0 0.0
        %4464 = vmatpush1.msra.mxu0 0.0
        %4465 = vmatprep.subr.mxu0 0.0
        %4466 = vmatpush1.msra.mxu0 0.0
        %4467 = vmatprep.subr.mxu0 0.0
        %4468 = vmatpush1.msra.mxu0 0.0
        %4469 = vmatprep.subr.mxu0 0.0
        %4470 = vmatpush1.msra.mxu0 0.0
        %4471 = vmatprep.subr.mxu0 0.0
        %4472 = vmatpush1.msra.mxu0 0.0
        %4473 = vmatprep.subr.mxu0 0.0
        %4474 = vmatpush1.msra.mxu0 0.0
        %4475 = vmatprep.subr.mxu0 0.0
        %4476 = vmatpush1.msra.mxu0 0.0
        %4477 = vmatprep.subr.mxu0 0.0
        %4478 = vmatpush1.msra.mxu0 0.0
        %4479 = vmatprep.mubr.f32.mxu0 0.0
        %4480 = vmatmul.mubr.f32.gmra.mrb[0].mxu0 %v4413
        %v4481 = vpop.f32.mrb[0].mxu0
        %v4482 = vadd.f32 0.0, %v4481
        %v4483 = vpop.f32.mrb[0].mxu0
        %4484 = vdwg.mxu0
        %v4486 = vsel %vm967, %v4252, 0
        %4488 = vmatprep.subr.mxu0 0.0
        %4489 = vmatpush1.msra.mxu0 %v4409
        %4490 = vmatprep.subr.mxu0 0.0
        %4491 = vmatpush1.msra.mxu0 0.0
        %4492 = vmatprep.subr.mxu0 0.0
        %4493 = vmatpush1.msra.mxu0 0.0
        %4494 = vmatprep.subr.mxu0 0.0
        %4495 = vmatpush1.msra.mxu0 0.0
        %4496 = vmatprep.subr.mxu0 0.0
        %4497 = vmatpush1.msra.mxu0 0.0
        %4498 = vmatprep.subr.mxu0 0.0
        %4499 = vmatpush1.msra.mxu0 0.0
        %4500 = vmatprep.subr.mxu0 0.0
        %4501 = vmatpush1.msra.mxu0 0.0
        %4502 = vmatprep.subr.mxu0 0.0
        %4503 = vmatpush1.msra.mxu0 0.0
        %4504 = vmatprep.subr.mxu0 0.0
        %4505 = vmatpush1.msra.mxu0 0.0
        %4506 = vmatprep.subr.mxu0 0.0
        %4507 = vmatpush1.msra.mxu0 0.0
        %4508 = vmatprep.subr.mxu0 0.0
        %4509 = vmatpush1.msra.mxu0 0.0
        %4510 = vmatprep.subr.mxu0 0.0
        %4511 = vmatpush1.msra.mxu0 0.0
        %4512 = vmatprep.subr.mxu0 0.0
        %4513 = vmatpush1.msra.mxu0 0.0
        %4514 = vmatprep.subr.mxu0 0.0
        %4515 = vmatpush1.msra.mxu0 0.0
        %4516 = vmatprep.subr.mxu0 0.0
        %4517 = vmatpush1.msra.mxu0 0.0
        %4518 = vmatprep.subr.mxu0 0.0
        %4519 = vmatpush1.msra.mxu0 0.0
        %4520 = vmatprep.subr.mxu0 0.0
        %4521 = vmatpush1.msra.mxu0 0.0
        %4522 = vmatprep.subr.mxu0 0.0
        %4523 = vmatpush1.msra.mxu0 0.0
        %4524 = vmatprep.subr.mxu0 0.0
        %4525 = vmatpush1.msra.mxu0 0.0
        %4526 = vmatprep.subr.mxu0 0.0
        %4527 = vmatpush1.msra.mxu0 0.0
        %4528 = vmatprep.subr.mxu0 0.0
        %4529 = vmatpush1.msra.mxu0 0.0
        %4530 = vmatprep.subr.mxu0 0.0
        %4531 = vmatpush1.msra.mxu0 0.0
        %4532 = vmatprep.subr.mxu0 0.0
        %4533 = vmatpush1.msra.mxu0 0.0
        %4534 = vmatprep.subr.mxu0 0.0
        %4535 = vmatpush1.msra.mxu0 0.0
        %4536 = vmatprep.subr.mxu0 0.0
        %4537 = vmatpush1.msra.mxu0 0.0
        %4538 = vmatprep.subr.mxu0 0.0
        %4539 = vmatpush1.msra.mxu0 0.0
        %4540 = vmatprep.subr.mxu0 0.0
        %4541 = vmatpush1.msra.mxu0 0.0
        %4542 = vmatprep.subr.mxu0 0.0
        %4543 = vmatpush1.msra.mxu0 0.0
        %4544 = vmatprep.subr.mxu0 0.0
        %4545 = vmatpush1.msra.mxu0 0.0
        %4546 = vmatprep.subr.mxu0 0.0
        %4547 = vmatpush1.msra.mxu0 0.0
        %4548 = vmatprep.subr.mxu0 0.0
        %4549 = vmatpush1.msra.mxu0 0.0
        %4550 = vmatprep.subr.mxu0 0.0
        %4551 = vmatpush1.msra.mxu0 0.0
        %4552 = vmatprep.mubr.f32.mxu0 0.0
        %4553 = vmatmul.mubr.f32.gmra.mrb[0].mxu0 %v4486
        %v4554 = vpop.f32.mrb[0].mxu0
        %v4555 = vadd.f32 0.0, %v4554
        %v4556 = vpop.f32.mrb[0].mxu0
        %4557 = vdwg.mxu0
        %v4559 = vsel %vm967, %v4328, 0
        %4561 = vmatprep.subr.mxu0 0.0
        %4562 = vmatpush1.msra.mxu0 %v4410
        %4563 = vmatprep.subr.mxu0 0.0
        %4564 = vmatpush1.msra.mxu0 0.0
        %4565 = vmatprep.subr.mxu0 0.0
        %4566 = vmatpush1.msra.mxu0 0.0
        %4567 = vmatprep.subr.mxu0 0.0
        %4568 = vmatpush1.msra.mxu0 0.0
        %4569 = vmatprep.subr.mxu0 0.0
        %4570 = vmatpush1.msra.mxu0 0.0
        %4571 = vmatprep.subr.mxu0 0.0
        %4572 = vmatpush1.msra.mxu0 0.0
        %4573 = vmatprep.subr.mxu0 0.0
        %4574 = vmatpush1.msra.mxu0 0.0
        %4575 = vmatprep.subr.mxu0 0.0
        %4576 = vmatpush1.msra.mxu0 0.0
        %4577 = vmatprep.subr.mxu0 0.0
        %4578 = vmatpush1.msra.mxu0 0.0
        %4579 = vmatprep.subr.mxu0 0.0
        %4580 = vmatpush1.msra.mxu0 0.0
        %4581 = vmatprep.subr.mxu0 0.0
        %4582 = vmatpush1.msra.mxu0 0.0
        %4583 = vmatprep.subr.mxu0 0.0
        %4584 = vmatpush1.msra.mxu0 0.0
        %4585 = vmatprep.subr.mxu0 0.0
        %4586 = vmatpush1.msra.mxu0 0.0
        %4587 = vmatprep.subr.mxu0 0.0
        %4588 = vmatpush1.msra.mxu0 0.0
        %4589 = vmatprep.subr.mxu0 0.0
        %4590 = vmatpush1.msra.mxu0 0.0
        %4591 = vmatprep.subr.mxu0 0.0
        %4592 = vmatpush1.msra.mxu0 0.0
        %4593 = vmatprep.subr.mxu0 0.0
        %4594 = vmatpush1.msra.mxu0 0.0
        %4595 = vmatprep.subr.mxu0 0.0
        %4596 = vmatpush1.msra.mxu0 0.0
        %4597 = vmatprep.subr.mxu0 0.0
        %4598 = vmatpush1.msra.mxu0 0.0
        %4599 = vmatprep.subr.mxu0 0.0
        %4600 = vmatpush1.msra.mxu0 0.0
        %4601 = vmatprep.subr.mxu0 0.0
        %4602 = vmatpush1.msra.mxu0 0.0
        %4603 = vmatprep.subr.mxu0 0.0
        %4604 = vmatpush1.msra.mxu0 0.0
        %4605 = vmatprep.subr.mxu0 0.0
        %4606 = vmatpush1.msra.mxu0 0.0
        %4607 = vmatprep.subr.mxu0 0.0
        %4608 = vmatpush1.msra.mxu0 0.0
        %4609 = vmatprep.subr.mxu0 0.0
        %4610 = vmatpush1.msra.mxu0 0.0
        %4611 = vmatprep.subr.mxu0 0.0
        %4612 = vmatpush1.msra.mxu0 0.0
        %4613 = vmatprep.subr.mxu0 0.0
        %4614 = vmatpush1.msra.mxu0 0.0
        %4615 = vmatprep.subr.mxu0 0.0
        %4616 = vmatpush1.msra.mxu0 0.0
        %4617 = vmatprep.subr.mxu0 0.0
        %4618 = vmatpush1.msra.mxu0 0.0
        %4619 = vmatprep.subr.mxu0 0.0
        %4620 = vmatpush1.msra.mxu0 0.0
        %4621 = vmatprep.subr.mxu0 0.0
        %4622 = vmatpush1.msra.mxu0 0.0
        %4623 = vmatprep.subr.mxu0 0.0
        %4624 = vmatpush1.msra.mxu0 0.0
        %4625 = vmatprep.mubr.f32.mxu0 0.0
        %4626 = vmatmul.mubr.f32.gmra.mrb[0].mxu0 %v4559
        %v4627 = vpop.f32.mrb[0].mxu0
        %v4628 = vadd.f32 0.0, %v4627
        %v4629 = vpop.f32.mrb[0].mxu0
        %4630 = vdwg.mxu0
        %v4632 = vsel %vm967, %v4404, 0
        %4634 = vmatprep.subr.mxu0 0.0
        %4635 = vmatpush1.msra.mxu0 %v4411
        %4636 = vmatprep.subr.mxu0 0.0
        %4637 = vmatpush1.msra.mxu0 0.0
        %4638 = vmatprep.subr.mxu0 0.0
        %4639 = vmatpush1.msra.mxu0 0.0
        %4640 = vmatprep.subr.mxu0 0.0
        %4641 = vmatpush1.msra.mxu0 0.0
        %4642 = vmatprep.subr.mxu0 0.0
        %4643 = vmatpush1.msra.mxu0 0.0
        %4644 = vmatprep.subr.mxu0 0.0
        %4645 = vmatpush1.msra.mxu0 0.0
        %4646 = vmatprep.subr.mxu0 0.0
        %4647 = vmatpush1.msra.mxu0 0.0
        %4648 = vmatprep.subr.mxu0 0.0
        %4649 = vmatpush1.msra.mxu0 0.0
        %4650 = vmatprep.subr.mxu0 0.0
        %4651 = vmatpush1.msra.mxu0 0.0
        %4652 = vmatprep.subr.mxu0 0.0
        %4653 = vmatpush1.msra.mxu0 0.0
        %4654 = vmatprep.subr.mxu0 0.0
        %4655 = vmatpush1.msra.mxu0 0.0
        %4656 = vmatprep.subr.mxu0 0.0
        %4657 = vmatpush1.msra.mxu0 0.0
        %4658 = vmatprep.subr.mxu0 0.0
        %4659 = vmatpush1.msra.mxu0 0.0
        %4660 = vmatprep.subr.mxu0 0.0
        %4661 = vmatpush1.msra.mxu0 0.0
        %4662 = vmatprep.subr.mxu0 0.0
        %4663 = vmatpush1.msra.mxu0 0.0
        %4664 = vmatprep.subr.mxu0 0.0
        %4665 = vmatpush1.msra.mxu0 0.0
        %4666 = vmatprep.subr.mxu0 0.0
        %4667 = vmatpush1.msra.mxu0 0.0
        %4668 = vmatprep.subr.mxu0 0.0
        %4669 = vmatpush1.msra.mxu0 0.0
        %4670 = vmatprep.subr.mxu0 0.0
        %4671 = vmatpush1.msra.mxu0 0.0
        %4672 = vmatprep.subr.mxu0 0.0
        %4673 = vmatpush1.msra.mxu0 0.0
        %4674 = vmatprep.subr.mxu0 0.0
        %4675 = vmatpush1.msra.mxu0 0.0
        %4676 = vmatprep.subr.mxu0 0.0
        %4677 = vmatpush1.msra.mxu0 0.0
        %4678 = vmatprep.subr.mxu0 0.0
        %4679 = vmatpush1.msra.mxu0 0.0
        %4680 = vmatprep.subr.mxu0 0.0
        %4681 = vmatpush1.msra.mxu0 0.0
        %4682 = vmatprep.subr.mxu0 0.0
        %4683 = vmatpush1.msra.mxu0 0.0
        %4684 = vmatprep.subr.mxu0 0.0
        %4685 = vmatpush1.msra.mxu0 0.0
        %4686 = vmatprep.subr.mxu0 0.0
        %4687 = vmatpush1.msra.mxu0 0.0
        %4688 = vmatprep.subr.mxu0 0.0
        %4689 = vmatpush1.msra.mxu0 0.0
        %4690 = vmatprep.subr.mxu0 0.0
        %4691 = vmatpush1.msra.mxu0 0.0
        %4692 = vmatprep.subr.mxu0 0.0
        %4693 = vmatpush1.msra.mxu0 0.0
        %4694 = vmatprep.subr.mxu0 0.0
        %4695 = vmatpush1.msra.mxu0 0.0
        %4696 = vmatprep.subr.mxu0 0.0
        %4697 = vmatpush1.msra.mxu0 0.0
        %4698 = vmatprep.mubr.f32.mxu0 0.0
        %4699 = vmatmul.mubr.f32.gmra.mrb[0].mxu0 %v4632
        %v4700 = vpop.f32.mrb[0].mxu0
        %v4701 = vadd.f32 0.0, %v4700
        %v4702 = vpop.f32.mrb[0].mxu0
        %4703 = vdwg.mxu0
        %v4704 = vadd.f32 %v4482, %v4555
        %v4705 = vadd.f32 %v4704, %v4628
        %v4706 = vadd.f32 %v4705, %v4701
        %v4707 = vadd.f32 %v2764, %v4706
        %s4708 = scalar_lea.vmem %s8, 1
        %v4709 = vld [vmem:[%s4708] sm:$0x1]
        %v4711 = vlaneseq
        %v4712 = vshrl.u32 %v4711, 7
        %v4713 = vsub.s32 0, %v4712
        %v4714 = vrot.slane %v4709, %v4713
        %v4716 = vadd.f32 %v4707, %v4714
        %s4717 = scalar_lea.vmem %s10, 1
        %v4718 = vld [vmem:[%s4717] sm:$0x1]
        %v4719 = vmul.f32 %v4716, %v4716
        %v4720 = vsel %vm620, %v4719, 0.0
        %4721 = vadd.xlane.f32.xlu0 %v4720
        %v4722 = vpop.xlane.xlu0 %4721
        %v4723 = vmul.f32 %v4722, %v624
        %v4724 = vadd.f32 %v4723, 1e-05
        %v4725 = vrsqrt.pop %v4724
        %v4726 = vmul.f32 %v4716, %v4725
        %v4728 = vlaneseq
        %v4729 = vshrl.u32 %v4728, 7
        %v4730 = vsub.s32 0, %v4729
        %v4731 = vrot.slane %v4718, %v4730
        %v4733 = vmul.f32 %v4726, %v4731
        %s4734 = scalar_lea.vmem %s11, 64
        %v4735 = vld [vmem:[%s4734] sm:$0xff]
        %v4736 = vld [vmem:[%s4734 + $0x8] sm:$0xff]
        %v4737 = vld [vmem:[%s4734 + $0x10] sm:$0xff]
        %v4738 = vld [vmem:[%s4734 + $0x18] sm:$0xff]
        %v4739 = vld [vmem:[%s4734 + $0x20] sm:$0xff]
        %v4740 = vld [vmem:[%s4734 + $0x28] sm:$0xff]
        %v4741 = vld [vmem:[%s4734 + $0x30] sm:$0xff]
        %v4742 = vld [vmem:[%s4734 + $0x38] sm:$0xff]
        %v4744 = vsel %vm620, %v4733, 0
        %4746 = vmatprep.subr.mxu0 %v4736
        %4747 = vmatpush1.msra.mxu0 %v4735
        %4748 = vmatprep.subr.mxu0 %v4738
        %4749 = vmatpush1.msra.mxu0 %v4737
        %4750 = vmatprep.subr.mxu0 %v4740
        %4751 = vmatpush1.msra.mxu0 %v4739
        %4752 = vmatprep.subr.mxu0 %v4742
        %4753 = vmatpush1.msra.mxu0 %v4741
        %4754 = vmatprep.subr.mxu0 0.0
        %4755 = vmatpush1.msra.mxu0 0.0
        %4756 = vmatprep.subr.mxu0 0.0
        %4757 = vmatpush1.msra.mxu0 0.0
        %4758 = vmatprep.subr.mxu0 0.0
        %4759 = vmatpush1.msra.mxu0 0.0
        %4760 = vmatprep.subr.mxu0 0.0
        %4761 = vmatpush1.msra.mxu0 0.0
        %4762 = vmatprep.subr.mxu0 0.0
        %4763 = vmatpush1.msra.mxu0 0.0
        %4764 = vmatprep.subr.mxu0 0.0
        %4765 = vmatpush1.msra.mxu0 0.0
        %4766 = vmatprep.subr.mxu0 0.0
        %4767 = vmatpush1.msra.mxu0 0.0
        %4768 = vmatprep.subr.mxu0 0.0
        %4769 = vmatpush1.msra.mxu0 0.0
        %4770 = vmatprep.subr.mxu0 0.0
        %4771 = vmatpush1.msra.mxu0 0.0
        %4772 = vmatprep.subr.mxu0 0.0
        %4773 = vmatpush1.msra.mxu0 0.0
        %4774 = vmatprep.subr.mxu0 0.0
        %4775 = vmatpush1.msra.mxu0 0.0
        %4776 = vmatprep.subr.mxu0 0.0
        %4777 = vmatpush1.msra.mxu0 0.0
        %4778 = vmatprep.subr.mxu0 0.0
        %4779 = vmatpush1.msra.mxu0 0.0
        %4780 = vmatprep.subr.mxu0 0.0
        %4781 = vmatpush1.msra.mxu0 0.0
        %4782 = vmatprep.subr.mxu0 0.0
        %4783 = vmatpush1.msra.mxu0 0.0
        %4784 = vmatprep.subr.mxu0 0.0
        %4785 = vmatpush1.msra.mxu0 0.0
        %4786 = vmatprep.subr.mxu0 0.0
        %4787 = vmatpush1.msra.mxu0 0.0
        %4788 = vmatprep.subr.mxu0 0.0
        %4789 = vmatpush1.msra.mxu0 0.0
        %4790 = vmatprep.subr.mxu0 0.0
        %4791 = vmatpush1.msra.mxu0 0.0
        %4792 = vmatprep.subr.mxu0 0.0
        %4793 = vmatpush1.msra.mxu0 0.0
        %4794 = vmatprep.subr.mxu0 0.0
        %4795 = vmatpush1.msra.mxu0 0.0
        %4796 = vmatprep.subr.mxu0 0.0
        %4797 = vmatpush1.msra.mxu0 0.0
        %4798 = vmatprep.subr.mxu0 0.0
        %4799 = vmatpush1.msra.mxu0 0.0
        %4800 = vmatprep.subr.mxu0 0.0
        %4801 = vmatpush1.msra.mxu0 0.0
        %4802 = vmatprep.subr.mxu0 0.0
        %4803 = vmatpush1.msra.mxu0 0.0
        %4804 = vmatprep.subr.mxu0 0.0
        %4805 = vmatpush1.msra.mxu0 0.0
        %4806 = vmatprep.subr.mxu0 0.0
        %4807 = vmatpush1.msra.mxu0 0.0
        %4808 = vmatprep.subr.mxu0 0.0
        %4809 = vmatpush1.msra.mxu0 0.0
        %4810 = vmatprep.mubr.f32.mxu0 0.0
        %4811 = vmatmul.mubr.f32.gmra.mrb[0].mxu0 %v4744
        %v4812 = vpop.f32.mrb[0].mxu0
        %v4813 = vadd.f32 0.0, %v4812
        %v4814 = vpop.f32.mrb[0].mxu0
        %v4815 = vadd.f32 0.0, %v4814
        %4816 = vdwg.mxu0
        %v4817 = vxor.u32 %v4813, 2147483648
        %v4818 = vmul.f32 %v4817, 1.442695
        %v4819 = vpow.pop %v4818
        %v4820 = vadd.f32 %v4819, 1.0
        %v4821 = vrcp.pop %v4820
        %v4822 = vmul.f32 1.0, %v4821
        %v4823 = vmul.f32 %v4813, %v4822
        %v4824 = vmul.f32 %v4823, %v4815
        %s4825 = scalar_lea.vmem %s12, 128
        %v4826 = vld [vmem:[%s4825] sm:$0xff]
        %v4827 = vld [vmem:[%s4825 + $0x8] sm:$0xff]
        %v4828 = vld [vmem:[%s4825 + $0x10] sm:$0xff]
        %v4829 = vld [vmem:[%s4825 + $0x18] sm:$0xff]
        %v4830 = vld [vmem:[%s4825 + $0x20] sm:$0xff]
        %v4831 = vld [vmem:[%s4825 + $0x28] sm:$0xff]
        %v4832 = vld [vmem:[%s4825 + $0x30] sm:$0xff]
        %v4833 = vld [vmem:[%s4825 + $0x38] sm:$0xff]
        %v4834 = vld [vmem:[%s4825 + $0x40] sm:$0xff]
        %v4835 = vld [vmem:[%s4825 + $0x48] sm:$0xff]
        %v4836 = vld [vmem:[%s4825 + $0x50] sm:$0xff]
        %v4837 = vld [vmem:[%s4825 + $0x58] sm:$0xff]
        %v4838 = vld [vmem:[%s4825 + $0x60] sm:$0xff]
        %v4839 = vld [vmem:[%s4825 + $0x68] sm:$0xff]
        %v4840 = vld [vmem:[%s4825 + $0x70] sm:$0xff]
        %v4841 = vld [vmem:[%s4825 + $0x78] sm:$0xff]
        %4842 = vmatprep.subr.mxu0 0.0
        %4843 = vmatpush1.msra.mxu0 %v4826
        %4844 = vmatprep.subr.mxu0 0.0
        %4845 = vmatpush1.msra.mxu0 %v4827
        %4846 = vmatprep.subr.mxu0 0.0
        %4847 = vmatpush1.msra.mxu0 %v4828
        %4848 = vmatprep.subr.mxu0 0.0
        %4849 = vmatpush1.msra.mxu0 %v4829
        %4850 = vmatprep.subr.mxu0 0.0
        %4851 = vmatpush1.msra.mxu0 %v4830
        %4852 = vmatprep.subr.mxu0 0.0
        %4853 = vmatpush1.msra.mxu0 %v4831
        %4854 = vmatprep.subr.mxu0 0.0
        %4855 = vmatpush1.msra.mxu0 %v4832
        %4856 = vmatprep.subr.mxu0 0.0
        %4857 = vmatpush1.msra.mxu0 %v4833
        %4858 = vmatprep.subr.mxu0 0.0
        %4859 = vmatpush1.msra.mxu0 %v4834
        %4860 = vmatprep.subr.mxu0 0.0
        %4861 = vmatpush1.msra.mxu0 %v4835
        %4862 = vmatprep.subr.mxu0 0.0
        %4863 = vmatpush1.msra.mxu0 %v4836
        %4864 = vmatprep.subr.mxu0 0.0
        %4865 = vmatpush1.msra.mxu0 %v4837
        %4866 = vmatprep.subr.mxu0 0.0
        %4867 = vmatpush1.msra.mxu0 %v4838
        %4868 = vmatprep.subr.mxu0 0.0
        %4869 = vmatpush1.msra.mxu0 %v4839
        %4870 = vmatprep.subr.mxu0 0.0
        %4871 = vmatpush1.msra.mxu0 %v4840
        %4872 = vmatprep.subr.mxu0 0.0
        %4873 = vmatpush1.msra.mxu0 %v4841
        %4874 = vmatprep.subr.mxu0 0.0
        %4875 = vmatpush1.msra.mxu0 0.0
        %4876 = vmatprep.subr.mxu0 0.0
        %4877 = vmatpush1.msra.mxu0 0.0
        %4878 = vmatprep.subr.mxu0 0.0
        %4879 = vmatpush1.msra.mxu0 0.0
        %4880 = vmatprep.subr.mxu0 0.0
        %4881 = vmatpush1.msra.mxu0 0.0
        %4882 = vmatprep.subr.mxu0 0.0
        %4883 = vmatpush1.msra.mxu0 0.0
        %4884 = vmatprep.subr.mxu0 0.0
        %4885 = vmatpush1.msra.mxu0 0.0
        %4886 = vmatprep.subr.mxu0 0.0
        %4887 = vmatpush1.msra.mxu0 0.0
        %4888 = vmatprep.subr.mxu0 0.0
        %4889 = vmatpush1.msra.mxu0 0.0
        %4890 = vmatprep.subr.mxu0 0.0
        %4891 = vmatpush1.msra.mxu0 0.0
        %4892 = vmatprep.subr.mxu0 0.0
        %4893 = vmatpush1.msra.mxu0 0.0
        %4894 = vmatprep.subr.mxu0 0.0
        %4895 = vmatpush1.msra.mxu0 0.0
        %4896 = vmatprep.subr.mxu0 0.0
        %4897 = vmatpush1.msra.mxu0 0.0
        %4898 = vmatprep.subr.mxu0 0.0
        %4899 = vmatpush1.msra.mxu0 0.0
        %4900 = vmatprep.subr.mxu0 0.0
        %4901 = vmatpush1.msra.mxu0 0.0
        %4902 = vmatprep.subr.mxu0 0.0
        %4903 = vmatpush1.msra.mxu0 0.0
        %4904 = vmatprep.subr.mxu0 0.0
        %4905 = vmatpush1.msra.mxu0 0.0
        %4906 = vmatprep.mubr.f32.mxu0 0.0
        %4907 = vmatmul.mubr.f32.gmra.mrb[0].mxu0 %v4824
        %v4908 = vpop.f32.mrb[0].mxu0
        %v4909 = vadd.f32 0.0, %v4908
        %v4910 = vpop.f32.mrb[0].mxu0
        %4911 = vdwg.mxu0
        %v4912 = vadd.f32 %v4716, %v4909
        %v4913 = vld [vmem:[%s13] sm:$0x1]
        %v4914 = vmul.f32 %v4912, %v4912
        %v4915 = vsel %vm620, %v4914, 0.0
        %4916 = vadd.xlane.f32.xlu0 %v4915
        %v4917 = vpop.xlane.xlu0 %4916
        %v4918 = vmul.f32 %v4917, %v624
        %v4919 = vadd.f32 %v4918, 1e-05
        %v4920 = vrsqrt.pop %v4919
        %v4921 = vmul.f32 %v4912, %v4920
        %v4923 = vlaneseq
        %v4924 = vshrl.u32 %v4923, 7
        %v4925 = vsub.s32 0, %v4924
        %v4926 = vrot.slane %v4913, %v4925
        %v4928 = vmul.f32 %v4921, %v4926
        %v4929 = vld [vmem:[%s14] sm:$0xff]
        %v4930 = vld [vmem:[%s14 + $0x8] sm:$0xff]
        %v4931 = vld [vmem:[%s14 + $0x10] sm:$0xff]
        %v4932 = vld [vmem:[%s14 + $0x18] sm:$0xff]
        %v4933 = vld [vmem:[%s15] sm:$0x1]
        %v4935 = vlaneseq
        %v4936 = vshrl.u32 %v4935, 7
        %v4937 = vsub.s32 0, %v4936
        %v4938 = vrot.slane %v4933, %v4937
        %v4941 = vsel %vm620, %v4928, 0
        %4943 = vmatprep.subr.mxu0 0.0
        %4944 = vmatpush1.msra.mxu0 %v4929
        %4945 = vmatprep.subr.mxu0 0.0
        %4946 = vmatpush1.msra.mxu0 %v4930
        %4947 = vmatprep.subr.mxu0 0.0
        %4948 = vmatpush1.msra.mxu0 %v4931
        %4949 = vmatprep.subr.mxu0 0.0
        %4950 = vmatpush1.msra.mxu0 %v4932
        %4951 = vmatprep.subr.mxu0 0.0
        %4952 = vmatpush1.msra.mxu0 0.0
        %4953 = vmatprep.subr.mxu0 0.0
        %4954 = vmatpush1.msra.mxu0 0.0
        %4955 = vmatprep.subr.mxu0 0.0
        %4956 = vmatpush1.msra.mxu0 0.0
        %4957 = vmatprep.subr.mxu0 0.0
        %4958 = vmatpush1.msra.mxu0 0.0
        %4959 = vmatprep.subr.mxu0 0.0
        %4960 = vmatpush1.msra.mxu0 0.0
        %4961 = vmatprep.subr.mxu0 0.0
        %4962 = vmatpush1.msra.mxu0 0.0
        %4963 = vmatprep.subr.mxu0 0.0
        %4964 = vmatpush1.msra.mxu0 0.0
        %4965 = vmatprep.subr.mxu0 0.0
        %4966 = vmatpush1.msra.mxu0 0.0
        %4967 = vmatprep.subr.mxu0 0.0
        %4968 = vmatpush1.msra.mxu0 0.0
        %4969 = vmatprep.subr.mxu0 0.0
        %4970 = vmatpush1.msra.mxu0 0.0
        %4971 = vmatprep.subr.mxu0 0.0
        %4972 = vmatpush1.msra.mxu0 0.0
        %4973 = vmatprep.subr.mxu0 0.0
        %4974 = vmatpush1.msra.mxu0 0.0
        %4975 = vmatprep.subr.mxu0 0.0
        %4976 = vmatpush1.msra.mxu0 0.0
        %4977 = vmatprep.subr.mxu0 0.0
        %4978 = vmatpush1.msra.mxu0 0.0
        %4979 = vmatprep.subr.mxu0 0.0
        %4980 = vmatpush1.msra.mxu0 0.0
        %4981 = vmatprep.subr.mxu0 0.0
        %4982 = vmatpush1.msra.mxu0 0.0
        %4983 = vmatprep.subr.mxu0 0.0
        %4984 = vmatpush1.msra.mxu0 0.0
        %4985 = vmatprep.subr.mxu0 0.0
        %4986 = vmatpush1.msra.mxu0 0.0
        %4987 = vmatprep.subr.mxu0 0.0
        %4988 = vmatpush1.msra.mxu0 0.0
        %4989 = vmatprep.subr.mxu0 0.0
        %4990 = vmatpush1.msra.mxu0 0.0
        %4991 = vmatprep.subr.mxu0 0.0
        %4992 = vmatpush1.msra.mxu0 0.0
        %4993 = vmatprep.subr.mxu0 0.0
        %4994 = vmatpush1.msra.mxu0 0.0
        %4995 = vmatprep.subr.mxu0 0.0
        %4996 = vmatpush1.msra.mxu0 0.0
        %4997 = vmatprep.subr.mxu0 0.0
        %4998 = vmatpush1.msra.mxu0 0.0
        %4999 = vmatprep.subr.mxu0 0.0
        %5000 = vmatpush1.msra.mxu0 0.0
        %5001 = vmatprep.subr.mxu0 0.0
        %5002 = vmatpush1.msra.mxu0 0.0
        %5003 = vmatprep.subr.mxu0 0.0
        %5004 = vmatpush1.msra.mxu0 0.0
        %5005 = vmatprep.subr.mxu0 0.0
        %5006 = vmatpush1.msra.mxu0 0.0
        %5007 = vmatprep.mubr.f32.mxu0 0.0
        %5008 = vmatmul.mubr.f32.gmra.mrb[0].mxu0 %v4941
        %v5009 = vpop.f32.mrb[0].mxu0
        %v5010 = vadd.f32 %v4938, %v5009
        %v5011 = vpop.f32.mrb[0].mxu0
        %5012 = vdwg.mxu0
        %5013 = vst.msk [vmem:[%s512] sm:$0xff] %vm534, %v5010
        %s5014 = sand.u32 %s379, 1
        %s5015 = scalar_lea.sflag [#allocation3], %s5014
        %s5016 = sand.u32 %s379, 1
        %s5017 = smul.addr %s5016, 8
        %s5018 = scalar_lea.vmem [#allocation2], %s5017
        // Predicated region
        $region85: #{llama_forward.1} parent=83 // pred_check
          %p5019 = pneg %p389
        $region86: #{llama_forward.1} parent=83 // pred_check_branch
          %5021 = sbr.rel (%p5019) target = $region88
        $region87: #{llama_forward.1} parent=83 // pred_region
          %s5023 = ssub.s32 128, 128
          %5024 = vsyncadd %s5015, %s5023
          %s5025 = smul.addr %s30, 128
          %s5026 = scalar_lea.hbm %s16, %s5025
          %s5028 = sshll.u32 %s5018, 4
          %s5029 = int_to_ptr.vmem [resolvable:$true] %s5028
          %5031 = dma.vmem_to_hbm [thread:$0]  %s5029, 128, %s5026, %s5015
        $region88: #{llama_forward.1} parent=83 // pred_fallthru
          _
      $region84: #{llama_forward.1} parent=5 // pred_fallthru
        _
      %p5032 = scmp.le.s32.totalorder 2, %s25
      // Predicated region
      $region89: #{llama_forward.1} parent=5 // pred_check
        %p5033 = pneg %p5032
      $region90: #{llama_forward.1} parent=5 // pred_check_branch
        %5035 = sbr.rel (%p5033) target = $region92
      $region91: #{llama_forward.1} parent=5 // pred_region
        %s5036 = ssub.s32 %s25, 2
        // Predicated region
        $region93: #{llama_forward.1} parent=91 // pred_check
          %p5037 = pneg %p395
        $region94: #{llama_forward.1} parent=91 // pred_check_branch
          %5039 = sbr.rel (%p5037) target = $region96
        $region95: #{llama_forward.1} parent=91 // pred_region
          %s5040 = sand.u32 %s380, 1
          %s5041 = scalar_lea.sflag [#allocation3], %s5040
          %s5042 = sand.u32 %s380, 1
          %s5043 = smul.addr %s5042, 8
          %s5044 = scalar_lea.vmem [#allocation2], %s5043
          %5045 = dma.done %s5041, 128
        $region96: #{llama_forward.1} parent=91 // pred_fallthru
          _
      $region92: #{llama_forward.1} parent=5 // pred_fallthru
        _
    $region6: #{llama_forward.1} parent=1 // loop_footer
      %s29 = sadd.s32 1, %s25
    $region7: #{llama_forward.1} parent=1 // loop_footer_branch
      %24 = sbr.rel target = $region3
    $region8: #{llama_forward.1} parent=1 // loop_exit
      _
    %5046 = vsyncpa [#allocation3], 1
    %s5047 = scalar_lea.sflag [#allocation3], 1
    %5048 = vsyncpa %s5047, 1

</llo_original>
